<compile_context>
chip_gen: v7x
topology: tpu7x:2x2x1
jax: 0.10.0
libtpu: 0.0.40
codegen_flags: <defaults>
</compile_context>

<pallas_src>
import functools

import jax
import jax.numpy as jnp
from jax import lax
from jax.experimental import pallas as pl
from jax.experimental.pallas import tpu as pltpu


def _round_up(x, m):
    return ((x + m - 1) // m) * m


def _pick_tile_h(n_batch, h):
    """Pick output-row tile TH and padded height H_pad (multiple of TH)."""
    if h < 8:
        return h, h
    for th in (32, 16, 8):
        hp = _round_up(h, th)
        waste = hp - h
        if waste * 4 > hp:          # >25% padded rows -> try a smaller tile
            continue
        if n_batch * (hp // th) >= 4 or th == 8:
            return th, hp
    return 8, _round_up(h, 8)


def _upconv_kernel(x_ref, w1_ref, b1_ref, w2_ref, b2_ref, o_ref, *, real_h):
    """Grid = (N, n_h); one batch element x one TH-row output tile per step.

    x_ref  : (TH+4, Wp, Cin_p)   bf16  halo-expanded input slab for this tile
    w1_ref : (3, 3*Cin_p, Cmid_p) bf16  conv1 weights grouped by kw, BN1 folded
    b1_ref : (1, Cmid_p)          f32   folded bias 1
    w2_ref : (3, 3*Cmid_p, Cmid_p) bf16 conv2 weights grouped by kw, BN2 folded
    b2_ref : (1, Cmid_p)          f32   folded bias 2
    o_ref  : (TH, W, Cmid_p)      bf16  output tile
    """
    TH, W, Cmid = o_ref.shape
    Cin = x_ref.shape[-1]
    Wp = x_ref.shape[-2]
    W1e = Wp - 2                  # conv1 eval width  (W+2 rounded to mult of 8)
    R1 = TH + 2                   # conv1 eval rows   (output rows + 1-row halo)

    r0 = pl.program_id(1) * TH    # top padded-image row of this tile's slab

    xt = x_ref[...]               # (TH+4, Wp, Cin) bf16

    # ---- Conv1: 3 accumulated dots (one per kw), K = 3*Cin ------------------
    acc1 = jnp.zeros((R1 * W1e, Cmid), jnp.float32)
    for kw in range(3):
        taps = [xt[kh:kh + R1, kw:kw + W1e, :] for kh in range(3)]
        p = jnp.concatenate(taps, axis=-1).reshape(R1 * W1e, 3 * Cin)
        acc1 = acc1 + jnp.dot(p, w1_ref[kw], preferred_element_type=jnp.float32)

    # BN1 folded into w1/b1 -> bias + ReLU (f32 epilogue).
    y1 = jnp.maximum(acc1 + b1_ref[...], 0.0).reshape(R1, W1e, Cmid)

    # Positions outside the real image are conv2's zero padding: mask them.
    # (local row j -> global row r0 - 1 + j; local col i -> real col i - 1)
    row = lax.broadcasted_iota(jnp.int32, (R1, W1e, 1), 0) + (r0 - 1)
    col = lax.broadcasted_iota(jnp.int32, (R1, W1e, 1), 1)
    inside = (row >= 0) & (row < real_h) & (col >= 1) & (col <= W)
    y1 = jnp.where(inside, y1, 0.0).astype(jnp.bfloat16)

    # ---- Conv2: 3 accumulated dots (one per kw), K = 3*Cmid ------------------
    acc2 = jnp.zeros((TH * W, Cmid), jnp.float32)
    for kw in range(3):
        taps = [y1[kh:kh + TH, kw:kw + W, :] for kh in range(3)]
        p = jnp.concatenate(taps, axis=-1).reshape(TH * W, 3 * Cmid)
        acc2 = acc2 + jnp.dot(p, w2_ref[kw], preferred_element_type=jnp.float32)

    # BN2 folded + ReLU.  Dropout: identity in eval mode.
    y2 = jnp.maximum(acc2 + b2_ref[...], 0.0)
    o_ref[...] = y2.reshape(TH, W, Cmid).astype(o_ref.dtype)


@functools.partial(jax.jit, static_argnames=("batch_norm",))
def up_conv_forward(x_nchw, params, batch_norm=True):
    """x_nchw: (N, Cin, H, W) float32.  Returns (N, Cin//2, H, W) float32."""
    N, Cin, H, W = x_nchw.shape
    Cmid = params["w1"].shape[0]      # PyTorch conv weight layout: (Cout, Cin, 3, 3)
    eps = 1e-5

    LANE = 128
    Cin_p = _round_up(Cin, LANE)
    Cmid_p = _round_up(Cmid, LANE)

    TH, H_pad = _pick_tile_h(N, H)
    n_h = H_pad // TH

    # conv1 is evaluated on a (TH+2, W1e) halo-expanded region so fused conv2
    # gets its 1-pixel halo without a staging scratch; W1e rounded to mult of 8
    # keeps in-kernel reshapes tile-aligned.
    W1e = _round_up(W + 2, 8)
    Wp = W1e + 2

    # bf16 FIRST (halves wrapper HBM traffic), then NCHW -> NHWC, halo pad,
    # channel pad to lane width.
    x_bf = x_nchw.astype(jnp.bfloat16)
    x_nhwc = jnp.transpose(x_bf, (0, 2, 3, 1))
    x_pad = jnp.pad(
        x_nhwc,
        ((0, 0), (2, 2 + H_pad - H), (2, Wp - W - 2), (0, Cin_p - Cin)))
    # Halo-slab the H axis: each grid step's input block is O(TH) VMEM and
    # auto double-buffered (instead of keeping the whole padded image resident).
    x_slabs = jnp.stack(
        [x_pad[:, h * TH:h * TH + TH + 4] for h in range(n_h)], axis=1)
    # -> (N, n_h, TH+4, Wp, Cin_p) bf16

    # Fold BatchNorm (eval) into per-output-channel scale (-> weights) and bias.
    if batch_norm:
        s1 = params["bn1_gamma"] / jnp.sqrt(params["bn1_var"] + eps)
        b1 = params["bn1_beta"] + s1 * (params["b1"] - params["bn1_mean"])
        s2 = params["bn2_gamma"] / jnp.sqrt(params["bn2_var"] + eps)
        b2 = params["bn2_beta"] + s2 * (params["b2"] - params["bn2_mean"])
    else:
        s1 = jnp.ones((Cmid,), jnp.float32)
        b1 = params["b1"]
        s2 = jnp.ones((Cmid,), jnp.float32)
        b2 = params["b2"]

    def prep_w(w, scale, cin, cin_p):
        # (Cout, Cin, 3, 3) -> fold BN scale -> (kw, kh, Cin_p, Cmid_p)
        # -> (3, 3*Cin_p, Cmid_p) bf16   (grouped by kw for the 3-dot form)
        w = (w * scale[:, None, None, None]).astype(jnp.float32)
        w = jnp.transpose(w, (3, 2, 1, 0))                      # (kw, kh, Cin, Cout)
        w = jnp.pad(w, ((0, 0), (0, 0), (0, cin_p - cin), (0, Cmid_p - Cmid)))
        return w.reshape(3, 3 * cin_p, Cmid_p).astype(jnp.bfloat16)

    w1f = prep_w(params["w1"], s1, Cin, Cin_p)
    w2f = prep_w(params["w2"], s2, Cmid, Cmid_p)
    b1f = jnp.pad(b1.astype(jnp.float32), (0, Cmid_p - Cmid)).reshape(1, Cmid_p)
    b2f = jnp.pad(b2.astype(jnp.float32), (0, Cmid_p - Cmid)).reshape(1, Cmid_p)

    # Cost estimate: 2*M*K*N per conv per step x total steps.
    total_steps = N * n_h
    flops = 2 * total_steps * (
        (TH + 2) * W1e * (9 * Cin_p) * Cmid_p + TH * W * (9 * Cmid_p) * Cmid_p)
    bytes_accessed = (x_slabs.size * 2 + w1f.size * 2 + w2f.size * 2
                      + b1f.size * 4 + b2f.size * 4
                      + N * H_pad * W * Cmid_p * 2)
    cost = pl.CostEstimate(flops=flops, transcendentals=0,
                           bytes_accessed=bytes_accessed)

    # VMEM budget: 75% of physical, capped (v5e/v6e ~96 MiB, v7x 48 MiB).
    try:
        vmem_cap = pltpu.get_tpu_info().vmem_capacity_bytes
    except Exception:
        vmem_cap = 64 * 1024 * 1024
    vmem_limit = min(int(vmem_cap * 3 // 4), 100 * 1024 * 1024)

    kernel = functools.partial(_upconv_kernel, real_h=H)

    out_nhwc = pl.pallas_call(
        kernel,
        out_shape=jax.ShapeDtypeStruct((N, H_pad, W, Cmid_p), jnp.bfloat16),
        grid_spec=pltpu.PrefetchScalarGridSpec(
            num_scalar_prefetch=0,
            grid=(N, n_h),
            in_specs=[
                pl.BlockSpec((None, None, TH + 4, Wp, Cin_p),
                             lambda n, h: (n, h, 0, 0, 0)),
                pl.BlockSpec((3, 3 * Cin_p, Cmid_p), lambda n, h: (0, 0, 0)),
                pl.BlockSpec((1, Cmid_p), lambda n, h: (0, 0)),
                pl.BlockSpec((3, 3 * Cmid_p, Cmid_p), lambda n, h: (0, 0, 0)),
                pl.BlockSpec((1, Cmid_p), lambda n, h: (0, 0)),
            ],
            out_specs=pl.BlockSpec((None, TH, W, Cmid_p),
                                   lambda n, h: (n, h, 0, 0)),
        ),
        compiler_params=pltpu.CompilerParams(
            dimension_semantics=("parallel", "parallel"),
            vmem_limit_bytes=vmem_limit),
        cost_estimate=cost,
    )(x_slabs, w1f, b1f, w2f, b2f)

    out_nhwc = out_nhwc[:, :H, :, :Cmid]
    # Module interface is NCHW float32; transpose-back reads bf16 (half traffic).
    return jnp.transpose(out_nhwc, (0, 3, 1, 2)).astype(jnp.float32)


def _reference_forward(x_nchw, params, batch_norm=True):
    """Pure-JAX (lax.conv) f32 reference for correctness checking."""
    eps = 1e-5

    def conv(x, w, b):
        y = lax.conv_general_dilated(
            x, w, window_strides=(1, 1), padding=((1, 1), (1, 1)),
            dimension_numbers=("NCHW", "OIHW", "NCHW"))
        return y + b[None, :, None, None]

    def bn(x, g, bta, m, v):
        return (x - m[None, :, None, None]) / jnp.sqrt(v + eps)[None, :, None, None] \
               * g[None, :, None, None] + bta[None, :, None, None]

    y = conv(x_nchw, params["w1"], params["b1"])
    if batch_norm:
        y = bn(y, params["bn1_gamma"], params["bn1_beta"],
               params["bn1_mean"], params["bn1_var"])
    y = jnp.maximum(y, 0.0)
    y = conv(y, params["w2"], params["b2"])
    if batch_norm:
        y = bn(y, params["bn2_gamma"], params["bn2_beta"],
               params["bn2_mean"], params["bn2_var"])
    y = jnp.maximum(y, 0.0)
    return y  # dropout: identity in eval mode


def init_params(key, in_channels, kernel_size=3):
    """Deterministic parameter init matching the PyTorch module's shapes."""
    cmid = in_channels // 2
    ks = kernel_size
    keys = jax.random.split(key, 8)
    return {
        # Conv2d weights, PyTorch layout (Cout, Cin, kh, kw)
        "w1": jax.random.normal(keys[0], (cmid, in_channels, ks, ks), jnp.float32) * 0.1,
        "b1": jax.random.normal(keys[1], (cmid,), jnp.float32) * 0.1,
        "w2": jax.random.normal(keys[2], (cmid, cmid, ks, ks), jnp.float32) * 0.1,
        "b2": jax.random.normal(keys[3], (cmid,), jnp.float32) * 0.1,
        # BatchNorm2d parameters (eval-mode running stats)
        "bn1_gamma": 1.0 + 0.1 * jax.random.normal(keys[4], (cmid,), jnp.float32),
        "bn1_beta": 0.1 * jax.random.normal(keys[5], (cmid,), jnp.float32),
        "bn1_mean": jnp.zeros((cmid,), jnp.float32),
        "bn1_var": jnp.ones((cmid,), jnp.float32),
        "bn2_gamma": 1.0 + 0.1 * jax.random.normal(keys[6], (cmid,), jnp.float32),
        "bn2_beta": 0.1 * jax.random.normal(keys[7], (cmid,), jnp.float32),
        "bn2_mean": jnp.zeros((cmid,), jnp.float32),
        "bn2_var": jnp.ones((cmid,), jnp.float32),
    }


if __name__ == "__main__":
    key = jax.random.PRNGKey(0)
    k_x, k_p = jax.random.split(key)

    # UpConv(in_channels=4, kernel_size=3, batch_norm=True, dropout=0.5)
    N, Cin, H, W = 2, 4, 16, 16
    x = jax.random.normal(k_x, (N, Cin, H, W), jnp.float32)
    params = init_params(k_p, Cin, kernel_size=3)

    out = up_conv_forward(x, params, batch_norm=True)
    out = jax.block_until_ready(out)

    ref = _reference_forward(x, params, batch_norm=True)
    assert out.shape == (N, Cin // 2, H, W), out.shape
    max_err = float(jnp.max(jnp.abs(out - ref)))
    # bf16 matmul operands + bf16 output writeback (f32 accumulate) ->
    # loosened tolerance vs the f32 reference.
    assert jnp.allclose(out, ref, atol=3e-2, rtol=3e-2), max_err

    print("KERNEL_OK")
</pallas_src>

<mosaic_0001>
module attributes {stable_mosaic.version = 11 : i64} {
  func.func @_upconv_kernel(%arg0: i32, %arg1: i32, %arg2: memref<1x1x12x26x128xbf16, #tpu.memory_space<vmem>>, %arg3: memref<3x384x128xbf16, #tpu.memory_space<vmem>>, %arg4: memref<1x128xf32, #tpu.memory_space<vmem>>, %arg5: memref<3x384x128xbf16, #tpu.memory_space<vmem>>, %arg6: memref<1x128xf32, #tpu.memory_space<vmem>>, %arg7: memref<1x8x16x128xbf16, #tpu.memory_space<vmem>>) attributes {dimension_semantics = [#tpu.dimension_semantics<parallel>, #tpu.dimension_semantics<parallel>], iteration_bounds = array<i64: 2, 2>, scalar_prefetch = 0 : i64, scratch_operands = 0 : i64, tpu.core_type = #tpu.core_type<tc>, window_params = [{transform_indices = @transform_0, window_bounds = array<i64: 1, 1, 12, 26, 128>}, {pipeline_mode = #tpu.pipeline_mode<synchronous>, transform_indices = @transform_1, window_bounds = array<i64: 3, 384, 128>}, {pipeline_mode = #tpu.pipeline_mode<synchronous>, transform_indices = @transform_2, window_bounds = array<i64: 1, 128>}, {pipeline_mode = #tpu.pipeline_mode<synchronous>, transform_indices = @transform_3, window_bounds = array<i64: 3, 384, 128>}, {pipeline_mode = #tpu.pipeline_mode<synchronous>, transform_indices = @transform_4, window_bounds = array<i64: 1, 128>}, {transform_indices = @transform_5, window_bounds = array<i64: 1, 8, 16, 128>}]} {
    %c8_i32 = arith.constant 8 : i32
    %0 = arith.muli %arg1, %c8_i32 : i32
    %c0 = arith.constant 0 : index
    %c0_0 = arith.constant 0 : index
    %c0_1 = arith.constant 0 : index
    %c0_2 = arith.constant 0 : index
    %c0_3 = arith.constant 0 : index
    %1 = vector.load %arg2[%c0, %c0_0, %c0_1, %c0_2, %c0_3] : memref<1x1x12x26x128xbf16, #tpu.memory_space<vmem>>, vector<1x1x12x26x128xbf16>
    %2 = vector.shape_cast %1 : vector<1x1x12x26x128xbf16> to vector<12x26x128xbf16>
    %cst = arith.constant 0.000000e+00 : f32
    %3 = vector.broadcast %cst : f32 to vector<240x128xf32>
    %4 = vector.extract_strided_slice %2 {offsets = [0, 0, 0], sizes = [10, 24, 128], strides = [1, 1, 1]} : vector<12x26x128xbf16> to vector<10x24x128xbf16>
    %5 = vector.extract_strided_slice %2 {offsets = [1, 0, 0], sizes = [10, 24, 128], strides = [1, 1, 1]} : vector<12x26x128xbf16> to vector<10x24x128xbf16>
    %6 = vector.extract_strided_slice %2 {offsets = [2, 0, 0], sizes = [10, 24, 128], strides = [1, 1, 1]} : vector<12x26x128xbf16> to vector<10x24x128xbf16>
    %7 = tpu.concatenate %4, %5, %6 in 2 : vector<10x24x128xbf16>, vector<10x24x128xbf16>, vector<10x24x128xbf16> -> vector<10x24x384xbf16>
    %8 = vector.shape_cast %7 : vector<10x24x384xbf16> to vector<240x384xbf16>
    %c0_4 = arith.constant 0 : index
    %c0_5 = arith.constant 0 : index
    %c0_6 = arith.constant 0 : index
    %9 = vector.load %arg3[%c0_4, %c0_5, %c0_6] : memref<3x384x128xbf16, #tpu.memory_space<vmem>>, vector<1x384x128xbf16>
    %10 = vector.shape_cast %9 : vector<1x384x128xbf16> to vector<384x128xbf16>
    %cst_7 = arith.constant dense<0.000000e+00> : vector<240x128xf32>
    %11 = tpu.matmul %8, %10, %cst_7 {dimension_numbers = #tpu.dot_dimension_numbers<[1], [0], [0], [1], [0, 0, 1, 1], [], []>} : vector<240x384xbf16>, vector<384x128xbf16>, vector<240x128xf32> -> vector<240x128xf32>
    %12 = arith.addf %3, %11 : vector<240x128xf32>
    %13 = vector.extract_strided_slice %2 {offsets = [0, 1, 0], sizes = [10, 24, 128], strides = [1, 1, 1]} : vector<12x26x128xbf16> to vector<10x24x128xbf16>
    %14 = vector.extract_strided_slice %2 {offsets = [1, 1, 0], sizes = [10, 24, 128], strides = [1, 1, 1]} : vector<12x26x128xbf16> to vector<10x24x128xbf16>
    %15 = vector.extract_strided_slice %2 {offsets = [2, 1, 0], sizes = [10, 24, 128], strides = [1, 1, 1]} : vector<12x26x128xbf16> to vector<10x24x128xbf16>
    %16 = tpu.concatenate %13, %14, %15 in 2 : vector<10x24x128xbf16>, vector<10x24x128xbf16>, vector<10x24x128xbf16> -> vector<10x24x384xbf16>
    %17 = vector.shape_cast %16 : vector<10x24x384xbf16> to vector<240x384xbf16>
    %c1 = arith.constant 1 : index
    %c0_8 = arith.constant 0 : index
    %c0_9 = arith.constant 0 : index
    %18 = vector.load %arg3[%c1, %c0_8, %c0_9] : memref<3x384x128xbf16, #tpu.memory_space<vmem>>, vector<1x384x128xbf16>
    %19 = vector.shape_cast %18 : vector<1x384x128xbf16> to vector<384x128xbf16>
    %cst_10 = arith.constant dense<0.000000e+00> : vector<240x128xf32>
    %20 = tpu.matmul %17, %19, %cst_10 {dimension_numbers = #tpu.dot_dimension_numbers<[1], [0], [0], [1], [0, 0, 1, 1], [], []>} : vector<240x384xbf16>, vector<384x128xbf16>, vector<240x128xf32> -> vector<240x128xf32>
    %21 = arith.addf %12, %20 : vector<240x128xf32>
    %22 = vector.extract_strided_slice %2 {offsets = [0, 2, 0], sizes = [10, 24, 128], strides = [1, 1, 1]} : vector<12x26x128xbf16> to vector<10x24x128xbf16>
    %23 = vector.extract_strided_slice %2 {offsets = [1, 2, 0], sizes = [10, 24, 128], strides = [1, 1, 1]} : vector<12x26x128xbf16> to vector<10x24x128xbf16>
    %24 = vector.extract_strided_slice %2 {offsets = [2, 2, 0], sizes = [10, 24, 128], strides = [1, 1, 1]} : vector<12x26x128xbf16> to vector<10x24x128xbf16>
    %25 = tpu.concatenate %22, %23, %24 in 2 : vector<10x24x128xbf16>, vector<10x24x128xbf16>, vector<10x24x128xbf16> -> vector<10x24x384xbf16>
    %26 = vector.shape_cast %25 : vector<10x24x384xbf16> to vector<240x384xbf16>
    %c2 = arith.constant 2 : index
    %c0_11 = arith.constant 0 : index
    %c0_12 = arith.constant 0 : index
    %27 = vector.load %arg3[%c2, %c0_11, %c0_12] : memref<3x384x128xbf16, #tpu.memory_space<vmem>>, vector<1x384x128xbf16>
    %28 = vector.shape_cast %27 : vector<1x384x128xbf16> to vector<384x128xbf16>
    %cst_13 = arith.constant dense<0.000000e+00> : vector<240x128xf32>
    %29 = tpu.matmul %26, %28, %cst_13 {dimension_numbers = #tpu.dot_dimension_numbers<[1], [0], [0], [1], [0, 0, 1, 1], [], []>} : vector<240x384xbf16>, vector<384x128xbf16>, vector<240x128xf32> -> vector<240x128xf32>
    %30 = arith.addf %21, %29 : vector<240x128xf32>
    %c0_14 = arith.constant 0 : index
    %c0_15 = arith.constant 0 : index
    %31 = vector.load %arg4[%c0_14, %c0_15] : memref<1x128xf32, #tpu.memory_space<vmem>>, vector<1x128xf32>
    %32 = vector.broadcast %31 : vector<1x128xf32> to vector<240x128xf32>
    %33 = arith.addf %30, %32 : vector<240x128xf32>
    %cst_16 = arith.constant 0.000000e+00 : f32
    %34 = vector.broadcast %cst_16 : f32 to vector<240x128xf32>
    %35 = arith.maximumf %33, %34 : vector<240x128xf32>
    %36 = vector.shape_cast %35 : vector<240x128xf32> to vector<10x24x128xf32>
    %37 = tpu.iota {dimensions = array<i32: 0>} : vector<10x24x1xi32>
    %c1_i32 = arith.constant 1 : i32
    %38 = arith.subi %0, %c1_i32 : i32
    %39 = vector.broadcast %38 : i32 to vector<10x24x1xi32>
    %40 = arith.addi %37, %39 : vector<10x24x1xi32>
    %41 = tpu.iota {dimensions = array<i32: 1>} : vector<10x24x1xi32>
    %c0_i32 = arith.constant 0 : i32
    %42 = vector.broadcast %c0_i32 : i32 to vector<10x24x1xi32>
    %43 = arith.cmpi sge, %40, %42 : vector<10x24x1xi32>
    %c16_i32 = arith.constant 16 : i32
    %44 = vector.broadcast %c16_i32 : i32 to vector<10x24x1xi32>
    %45 = arith.cmpi slt, %40, %44 : vector<10x24x1xi32>
    %46 = arith.andi %43, %45 : vector<10x24x1xi1>
    %c1_i32_17 = arith.constant 1 : i32
    %47 = vector.broadcast %c1_i32_17 : i32 to vector<10x24x1xi32>
    %48 = arith.cmpi sge, %41, %47 : vector<10x24x1xi32>
    %49 = arith.andi %46, %48 : vector<10x24x1xi1>
    %c16_i32_18 = arith.constant 16 : i32
    %50 = vector.broadcast %c16_i32_18 : i32 to vector<10x24x1xi32>
    %51 = arith.cmpi sle, %41, %50 : vector<10x24x1xi32>
    %52 = arith.andi %49, %51 : vector<10x24x1xi1>
    %cst_19 = arith.constant 0.000000e+00 : f32
    %53 = vector.shape_cast %52 : vector<10x24x1xi1> to vector<10x24x1xi1>
    %54 = vector.broadcast %53 : vector<10x24x1xi1> to vector<10x24x128xi1>
    %55 = vector.broadcast %cst_19 : f32 to vector<10x24x128xf32>
    %56 = arith.select %54, %36, %55 : vector<10x24x128xi1>, vector<10x24x128xf32>
    %57 = arith.truncf %56 : vector<10x24x128xf32> to vector<10x24x128xbf16>
    %cst_20 = arith.constant 0.000000e+00 : f32
    %58 = vector.broadcast %cst_20 : f32 to vector<128x128xf32>
    %59 = vector.extract_strided_slice %57 {offsets = [0, 0, 0], sizes = [8, 16, 128], strides = [1, 1, 1]} : vector<10x24x128xbf16> to vector<8x16x128xbf16>
    %60 = vector.extract_strided_slice %57 {offsets = [1, 0, 0], sizes = [8, 16, 128], strides = [1, 1, 1]} : vector<10x24x128xbf16> to vector<8x16x128xbf16>
    %61 = vector.extract_strided_slice %57 {offsets = [2, 0, 0], sizes = [8, 16, 128], strides = [1, 1, 1]} : vector<10x24x128xbf16> to vector<8x16x128xbf16>
    %62 = tpu.concatenate %59, %60, %61 in 2 : vector<8x16x128xbf16>, vector<8x16x128xbf16>, vector<8x16x128xbf16> -> vector<8x16x384xbf16>
    %63 = vector.shape_cast %62 : vector<8x16x384xbf16> to vector<128x384xbf16>
    %c0_21 = arith.constant 0 : index
    %c0_22 = arith.constant 0 : index
    %c0_23 = arith.constant 0 : index
    %64 = vector.load %arg5[%c0_21, %c0_22, %c0_23] : memref<3x384x128xbf16, #tpu.memory_space<vmem>>, vector<1x384x128xbf16>
    %65 = vector.shape_cast %64 : vector<1x384x128xbf16> to vector<384x128xbf16>
    %cst_24 = arith.constant dense<0.000000e+00> : vector<128x128xf32>
    %66 = tpu.matmul %63, %65, %cst_24 {dimension_numbers = #tpu.dot_dimension_numbers<[1], [0], [0], [1], [0, 0, 1, 1], [], []>} : vector<128x384xbf16>, vector<384x128xbf16>, vector<128x128xf32> -> vector<128x128xf32>
    %67 = arith.addf %58, %66 : vector<128x128xf32>
    %68 = vector.extract_strided_slice %57 {offsets = [0, 1, 0], sizes = [8, 16, 128], strides = [1, 1, 1]} : vector<10x24x128xbf16> to vector<8x16x128xbf16>
    %69 = vector.extract_strided_slice %57 {offsets = [1, 1, 0], sizes = [8, 16, 128], strides = [1, 1, 1]} : vector<10x24x128xbf16> to vector<8x16x128xbf16>
    %70 = vector.extract_strided_slice %57 {offsets = [2, 1, 0], sizes = [8, 16, 128], strides = [1, 1, 1]} : vector<10x24x128xbf16> to vector<8x16x128xbf16>
    %71 = tpu.concatenate %68, %69, %70 in 2 : vector<8x16x128xbf16>, vector<8x16x128xbf16>, vector<8x16x128xbf16> -> vector<8x16x384xbf16>
    %72 = vector.shape_cast %71 : vector<8x16x384xbf16> to vector<128x384xbf16>
    %c1_25 = arith.constant 1 : index
    %c0_26 = arith.constant 0 : index
    %c0_27 = arith.constant 0 : index
    %73 = vector.load %arg5[%c1_25, %c0_26, %c0_27] : memref<3x384x128xbf16, #tpu.memory_space<vmem>>, vector<1x384x128xbf16>
    %74 = vector.shape_cast %73 : vector<1x384x128xbf16> to vector<384x128xbf16>
    %cst_28 = arith.constant dense<0.000000e+00> : vector<128x128xf32>
    %75 = tpu.matmul %72, %74, %cst_28 {dimension_numbers = #tpu.dot_dimension_numbers<[1], [0], [0], [1], [0, 0, 1, 1], [], []>} : vector<128x384xbf16>, vector<384x128xbf16>, vector<128x128xf32> -> vector<128x128xf32>
    %76 = arith.addf %67, %75 : vector<128x128xf32>
    %77 = vector.extract_strided_slice %57 {offsets = [0, 2, 0], sizes = [8, 16, 128], strides = [1, 1, 1]} : vector<10x24x128xbf16> to vector<8x16x128xbf16>
    %78 = vector.extract_strided_slice %57 {offsets = [1, 2, 0], sizes = [8, 16, 128], strides = [1, 1, 1]} : vector<10x24x128xbf16> to vector<8x16x128xbf16>
    %79 = vector.extract_strided_slice %57 {offsets = [2, 2, 0], sizes = [8, 16, 128], strides = [1, 1, 1]} : vector<10x24x128xbf16> to vector<8x16x128xbf16>
    %80 = tpu.concatenate %77, %78, %79 in 2 : vector<8x16x128xbf16>, vector<8x16x128xbf16>, vector<8x16x128xbf16> -> vector<8x16x384xbf16>
    %81 = vector.shape_cast %80 : vector<8x16x384xbf16> to vector<128x384xbf16>
    %c2_29 = arith.constant 2 : index
    %c0_30 = arith.constant 0 : index
    %c0_31 = arith.constant 0 : index
    %82 = vector.load %arg5[%c2_29, %c0_30, %c0_31] : memref<3x384x128xbf16, #tpu.memory_space<vmem>>, vector<1x384x128xbf16>
    %83 = vector.shape_cast %82 : vector<1x384x128xbf16> to vector<384x128xbf16>
    %cst_32 = arith.constant dense<0.000000e+00> : vector<128x128xf32>
    %84 = tpu.matmul %81, %83, %cst_32 {dimension_numbers = #tpu.dot_dimension_numbers<[1], [0], [0], [1], [0, 0, 1, 1], [], []>} : vector<128x384xbf16>, vector<384x128xbf16>, vector<128x128xf32> -> vector<128x128xf32>
    %85 = arith.addf %76, %84 : vector<128x128xf32>
    %c0_33 = arith.constant 0 : index
    %c0_34 = arith.constant 0 : index
    %86 = vector.load %arg6[%c0_33, %c0_34] : memref<1x128xf32, #tpu.memory_space<vmem>>, vector<1x128xf32>
    %87 = vector.broadcast %86 : vector<1x128xf32> to vector<128x128xf32>
    %88 = arith.addf %85, %87 : vector<128x128xf32>
    %cst_35 = arith.constant 0.000000e+00 : f32
    %89 = vector.broadcast %cst_35 : f32 to vector<128x128xf32>
    %90 = arith.maximumf %88, %89 : vector<128x128xf32>
    %91 = vector.shape_cast %90 : vector<128x128xf32> to vector<8x16x128xf32>
    %92 = arith.truncf %91 : vector<8x16x128xf32> to vector<8x16x128xbf16>
    %c0_36 = arith.constant 0 : index
    %c0_37 = arith.constant 0 : index
    %c0_38 = arith.constant 0 : index
    %c0_39 = arith.constant 0 : index
    %93 = vector.load %arg7[%c0_36, %c0_37, %c0_38, %c0_39] : memref<1x8x16x128xbf16, #tpu.memory_space<vmem>>, vector<1x8x16x128xbf16>
    %94 = vector.shape_cast %93 : vector<1x8x16x128xbf16> to vector<8x16x128xbf16>
    %95 = vector.shape_cast %92 : vector<8x16x128xbf16> to vector<1x8x16x128xbf16>
    tpu.vector_store %arg7[%c0_36, %c0_37, %c0_38, %c0_39], %95 {strides = array<i32>} : memref<1x8x16x128xbf16, #tpu.memory_space<vmem>>, vector<1x8x16x128xbf16>,
    return
  }
  func.func @transform_0(%arg0: i32, %arg1: i32) -> (i32, i32, i32, i32, i32) {
    %c0_i32 = arith.constant 0 : i32
    %c0_i32_0 = arith.constant 0 : i32
    %c0_i32_1 = arith.constant 0 : i32
    %c0_i32_2 = arith.constant 0 : i32
    return %arg0, %arg1, %c0_i32, %c0_i32_0, %c0_i32_1 : i32, i32, i32, i32, i32
  }
  func.func @transform_1(%arg0: i32, %arg1: i32) -> (i32, i32, i32) {
    %c0_i32 = arith.constant 0 : i32
    %c0_i32_0 = arith.constant 0 : i32
    %c0_i32_1 = arith.constant 0 : i32
    %c0_i32_2 = arith.constant 0 : i32
    return %c0_i32, %c0_i32_0, %c0_i32_1 : i32, i32, i32
  }
  func.func @transform_2(%arg0: i32, %arg1: i32) -> (i32, i32) {
    %c0_i32 = arith.constant 0 : i32
    %c0_i32_0 = arith.constant 0 : i32
    %c0_i32_1 = arith.constant 0 : i32
    return %c0_i32, %c0_i32_0 : i32, i32
  }
  func.func @transform_3(%arg0: i32, %arg1: i32) -> (i32, i32, i32) {
    %c0_i32 = arith.constant 0 : i32
    %c0_i32_0 = arith.constant 0 : i32
    %c0_i32_1 = arith.constant 0 : i32
    %c0_i32_2 = arith.constant 0 : i32
    return %c0_i32, %c0_i32_0, %c0_i32_1 : i32, i32, i32
  }
  func.func @transform_4(%arg0: i32, %arg1: i32) -> (i32, i32) {
    %c0_i32 = arith.constant 0 : i32
    %c0_i32_0 = arith.constant 0 : i32
    %c0_i32_1 = arith.constant 0 : i32
    return %c0_i32, %c0_i32_0 : i32, i32
  }
  func.func @transform_5(%arg0: i32, %arg1: i32) -> (i32, i32, i32, i32) {
    %c0_i32 = arith.constant 0 : i32
    %c0_i32_0 = arith.constant 0 : i32
    %c0_i32_1 = arith.constant 0 : i32
    return %arg0, %arg1, %c0_i32, %c0_i32_0 : i32, i32, i32, i32
  }
}

</mosaic_0001>

<llo_original>
// kernel: up_conv_forward.1
$region0: #{up_conv_forward.1}
  #allocation0 [shape = 'u32[]', space=smem, size = 0x4, offset = 0x4, fixed_abs, tag = 'smem constant byte address 0x4 - core index']
  #allocation1 [shape = 'u32[144,128]{1,0:T(1,128)}', space=vmem, size = 0x12000, scoped, tag = 'internal scratch']
  %s0 = inlined_call_operand.vmem [shape: bf16[2,2,12,26,128], index: 0, kind: input, shape index: {}]
  %s1 = inlined_call_operand.vmem [shape: bf16[3,384,128], index: 1, kind: input, shape index: {}]
  %s2 = inlined_call_operand.vmem [shape: f32[1,128], index: 2, kind: input, shape index: {}]
  %s3 = inlined_call_operand.vmem [shape: bf16[3,384,128], index: 3, kind: input, shape index: {}]
  %s4 = inlined_call_operand.vmem [shape: f32[1,128], index: 4, kind: input, shape index: {}]
  %s5 = inlined_call_operand.vmem [shape: bf16[2,16,16,128], index: 5, kind: output, shape index: {}]
  %s6 = sld [smem:[#allocation0]]
  $region53: #{up_conv_forward.1} parent=0
    _
  %s8 = ssub.s32 1, %s6
  %s9 = scalar_select 0, %s8, %s6
  loop: start=0, step=1, limit=6
  $region2: #{up_conv_forward.1} parent=0 // loop_pre_header
    _
  $region3: #{up_conv_forward.1} parent=0 // loop_header
    %s11 = sphi 0, %s15
    %p12 = scmp.ge.s32.totalorder %s11, 6
    %s18 = sphi 0, %s30
    %s19 = sphi 0, %s26
    %s20 = sphi 0, %s18
    %s21 = sphi 0, %s19
    %s22 = sphi 0, %s20
    %s23 = sphi 0, %s21
    %s35 = sphi 0, %s37
    %s38 = sphi 0, %s35
    %s39 = sphi 0, %s38
    %s55 = sphi 0, %s39
    %s59 = sphi 0, %s59
    %s61 = sphi 0, %s59
    %s62 = sphi 0, %s61
    %s76 = sphi 0, %s62
    %s80 = sphi 0, %s80
    %s82 = sphi 0, %s80
    %s83 = sphi 0, %s82
    %s97 = sphi 0, %s83
    %s101 = sphi 0, %s101
    %s103 = sphi 0, %s101
    %s104 = sphi 0, %s103
    %s118 = sphi 0, %s104
    %s122 = sphi 0, %s122
    %s124 = sphi 0, %s122
    %s125 = sphi 0, %s124
    %s139 = sphi 0, %s125
    %s147 = sphi 0, %s149
    %s150 = sphi 0, %s147
    %s151 = sphi 0, %s150
    %s167 = sphi 0, %s151
  $region4: #{up_conv_forward.1} parent=0 // loop_header_branch
    %14 = sbr.rel (%p12) target = $region8
  $region5: #{up_conv_forward.1} parent=0 // loop_body
    %s16 = ssub.s32 %s11, 1
    %s17 = ssub.s32 %s11, 2
    %s24 = sadd.s32 1, %s19
    %p25 = scmp.ge.s32.totalorder %s24, 2
    %s26 = scalar_select %p25, 0, %s24
    %s27 = sadd.s32 1, %s18
    %s28 = scalar_select %p25, %s27, %s18
    %p29 = scmp.ge.s32.totalorder %s28, 2
    %s30 = scalar_select %p29, 0, %s28
    %s31 = ssub.s32 %s18, %s30
    %s32 = ssub.s32 %s19, %s26
    %s33 = sor.u32 %s31, %s32
    %p34 = scmp.eq.s32.totalorder %s33, 0
    %s36 = sadd.s32 %s35, 1
    %s37 = scalar_select %p34, %s35, %s36
    %p40 = pneg %p34
    %p41 = scmp.eq.s32.totalorder %s11, 3
    %p42 = por %p40, %p41
    %p43 = scmp.ne.s32.totalorder %s35, %s38
    %p44 = scmp.eq.s32.totalorder %s11, 0
    %p45 = por %p43, %p44
    %p46 = scmp.ne.s32.totalorder %s35, %s38
    %p47 = scmp.eq.s32.totalorder %s16, 3
    %p48 = por %p46, %p47
    %p49 = scmp.ne.s32.totalorder %s38, %s39
    %p50 = scmp.eq.s32.totalorder %s16, 0
    %p51 = por %p49, %p50
    %p52 = scmp.ne.s32.totalorder %s38, %s39
    %p53 = scmp.eq.s32.totalorder %s17, 3
    %p54 = por %p52, %p53
    %p56 = scmp.ne.s32.totalorder %s39, %s55
    %p57 = scmp.eq.s32.totalorder %s17, 0
    %p58 = por %p56, %p57
    %s60 = sadd.s32 %s59, 1
    %p63 = scmp.eq.s32.totalorder %s11, 3
    %p64 = scmp.ne.s32.totalorder %s59, %s61
    %p65 = scmp.eq.s32.totalorder %s11, 0
    %p66 = por %p64, %p65
    %p67 = scmp.ne.s32.totalorder %s59, %s61
    %p68 = scmp.eq.s32.totalorder %s16, 3
    %p69 = por %p67, %p68
    %p70 = scmp.ne.s32.totalorder %s61, %s62
    %p71 = scmp.eq.s32.totalorder %s16, 0
    %p72 = por %p70, %p71
    %p73 = scmp.ne.s32.totalorder %s61, %s62
    %p74 = scmp.eq.s32.totalorder %s17, 3
    %p75 = por %p73, %p74
    %p77 = scmp.ne.s32.totalorder %s62, %s76
    %p78 = scmp.eq.s32.totalorder %s17, 0
    %p79 = por %p77, %p78
    %s81 = sadd.s32 %s80, 1
    %p84 = scmp.eq.s32.totalorder %s11, 3
    %p85 = scmp.ne.s32.totalorder %s80, %s82
    %p86 = scmp.eq.s32.totalorder %s11, 0
    %p87 = por %p85, %p86
    %p88 = scmp.ne.s32.totalorder %s80, %s82
    %p89 = scmp.eq.s32.totalorder %s16, 3
    %p90 = por %p88, %p89
    %p91 = scmp.ne.s32.totalorder %s82, %s83
    %p92 = scmp.eq.s32.totalorder %s16, 0
    %p93 = por %p91, %p92
    %p94 = scmp.ne.s32.totalorder %s82, %s83
    %p95 = scmp.eq.s32.totalorder %s17, 3
    %p96 = por %p94, %p95
    %p98 = scmp.ne.s32.totalorder %s83, %s97
    %p99 = scmp.eq.s32.totalorder %s17, 0
    %p100 = por %p98, %p99
    %s102 = sadd.s32 %s101, 1
    %p105 = scmp.eq.s32.totalorder %s11, 3
    %p106 = scmp.ne.s32.totalorder %s101, %s103
    %p107 = scmp.eq.s32.totalorder %s11, 0
    %p108 = por %p106, %p107
    %p109 = scmp.ne.s32.totalorder %s101, %s103
    %p110 = scmp.eq.s32.totalorder %s16, 3
    %p111 = por %p109, %p110
    %p112 = scmp.ne.s32.totalorder %s103, %s104
    %p113 = scmp.eq.s32.totalorder %s16, 0
    %p114 = por %p112, %p113
    %p115 = scmp.ne.s32.totalorder %s103, %s104
    %p116 = scmp.eq.s32.totalorder %s17, 3
    %p117 = por %p115, %p116
    %p119 = scmp.ne.s32.totalorder %s104, %s118
    %p120 = scmp.eq.s32.totalorder %s17, 0
    %p121 = por %p119, %p120
    %s123 = sadd.s32 %s122, 1
    %p126 = scmp.eq.s32.totalorder %s11, 3
    %p127 = scmp.ne.s32.totalorder %s122, %s124
    %p128 = scmp.eq.s32.totalorder %s11, 0
    %p129 = por %p127, %p128
    %p130 = scmp.ne.s32.totalorder %s122, %s124
    %p131 = scmp.eq.s32.totalorder %s16, 3
    %p132 = por %p130, %p131
    %p133 = scmp.ne.s32.totalorder %s124, %s125
    %p134 = scmp.eq.s32.totalorder %s16, 0
    %p135 = por %p133, %p134
    %p136 = scmp.ne.s32.totalorder %s124, %s125
    %p137 = scmp.eq.s32.totalorder %s17, 3
    %p138 = por %p136, %p137
    %p140 = scmp.ne.s32.totalorder %s125, %s139
    %p141 = scmp.eq.s32.totalorder %s17, 0
    %p142 = por %p140, %p141
    %s143 = ssub.s32 %s18, %s30
    %s144 = ssub.s32 %s19, %s26
    %s145 = sor.u32 %s143, %s144
    %p146 = scmp.eq.s32.totalorder %s145, 0
    %s148 = sadd.s32 %s147, 1
    %s149 = scalar_select %p146, %s147, %s148
    %p152 = pneg %p146
    %p153 = scmp.eq.s32.totalorder %s11, 3
    %p154 = por %p152, %p153
    %p155 = scmp.ne.s32.totalorder %s147, %s150
    %p156 = scmp.eq.s32.totalorder %s11, 0
    %p157 = por %p155, %p156
    %p158 = scmp.ne.s32.totalorder %s147, %s150
    %p159 = scmp.eq.s32.totalorder %s16, 3
    %p160 = por %p158, %p159
    %p161 = scmp.ne.s32.totalorder %s150, %s151
    %p162 = scmp.eq.s32.totalorder %s16, 0
    %p163 = por %p161, %p162
    %p164 = scmp.ne.s32.totalorder %s150, %s151
    %p165 = scmp.eq.s32.totalorder %s17, 3
    %p166 = por %p164, %p165
    %p168 = scmp.ne.s32.totalorder %s151, %s167
    %p169 = scmp.eq.s32.totalorder %s17, 0
    %p170 = por %p168, %p169
    %p171 = scmp.le.s32.totalorder 1, %s11
    %p172 = scmp.lt.s32.totalorder %s11, 5
    %p173 = pnand %p171, %p172
    %p174 = pneg %p173
    // Predicated region
    $region9: #{up_conv_forward.1} parent=5 // pred_check
      _
    $region10: #{up_conv_forward.1} parent=5 // pred_check_branch
      %176 = sbr.rel (%p173) target = $region12
    $region11: #{up_conv_forward.1} parent=5 // pred_region
      %s177 = ssub.s32 %s11, 1
      // Predicated region
      $region13: #{up_conv_forward.1} parent=11 // pred_check
        %p178 = pneg %p72
      $region14: #{up_conv_forward.1} parent=11 // pred_check_branch
        %180 = sbr.rel (%p178) target = $region16
      $region15: #{up_conv_forward.1} parent=11 // pred_region
        _
      $region16: #{up_conv_forward.1} parent=11 // pred_fallthru
        _
      // Predicated region
      $region17: #{up_conv_forward.1} parent=11 // pred_check
        %p181 = pneg %p93
      $region18: #{up_conv_forward.1} parent=11 // pred_check_branch
        %183 = sbr.rel (%p181) target = $region20
      $region19: #{up_conv_forward.1} parent=11 // pred_region
        _
      $region20: #{up_conv_forward.1} parent=11 // pred_fallthru
        _
      // Predicated region
      $region21: #{up_conv_forward.1} parent=11 // pred_check
        %p184 = pneg %p114
      $region22: #{up_conv_forward.1} parent=11 // pred_check_branch
        %186 = sbr.rel (%p184) target = $region24
      $region23: #{up_conv_forward.1} parent=11 // pred_region
        _
      $region24: #{up_conv_forward.1} parent=11 // pred_fallthru
        _
      // Predicated region
      $region25: #{up_conv_forward.1} parent=11 // pred_check
        %p187 = pneg %p135
      $region26: #{up_conv_forward.1} parent=11 // pred_check_branch
        %189 = sbr.rel (%p187) target = $region28
      $region27: #{up_conv_forward.1} parent=11 // pred_region
        _
      $region28: #{up_conv_forward.1} parent=11 // pred_fallthru
        _
    $region12: #{up_conv_forward.1} parent=5 // pred_fallthru
      _
    %p190 = scmp.lt.s32.totalorder %s11, 4
    // Predicated region
    $region29: #{up_conv_forward.1} parent=5 // pred_check
      %p191 = pneg %p190
    $region30: #{up_conv_forward.1} parent=5 // pred_check_branch
      %193 = sbr.rel (%p191) target = $region32
    $region31: #{up_conv_forward.1} parent=5 // pred_region
      // Predicated region
      $region33: #{up_conv_forward.1} parent=31 // pred_check
        %p194 = pneg %p45
      $region34: #{up_conv_forward.1} parent=31 // pred_check_branch
        %196 = sbr.rel (%p194) target = $region36
      $region35: #{up_conv_forward.1} parent=31 // pred_region
        %p197 = scmp.lt.s32.totalorder %s18, 1
        %s198 = scalar_select %p197, %s18, 1
        %p199 = scmp.lt.s32.totalorder %s19, 1
        %s200 = scalar_select %p199, %s19, 1
        %s201 = smul.addr %s200, 48
        %s202 = smul.addr %s198, 96
        %s203 = sadd.s32 %s201, %s202
        %s204 = smul.addr %s203, 4
        %s205 = scalar_lea.vmem %s0, %s204
      $region36: #{up_conv_forward.1} parent=31 // pred_fallthru
        _
    $region32: #{up_conv_forward.1} parent=5 // pred_fallthru
      _
    %p206 = scmp.le.s32.totalorder 1, %s11
    %p207 = scmp.lt.s32.totalorder %s11, 5
    %p208 = pnand %p206, %p207
    %p209 = pneg %p208
    // Predicated region
    $region37: #{up_conv_forward.1} parent=5 // pred_check
      _
    $region38: #{up_conv_forward.1} parent=5 // pred_check_branch
      %211 = sbr.rel (%p208) target = $region40
    $region39: #{up_conv_forward.1} parent=5 // pred_region
      %s212 = ssub.s32 %s11, 1
      %p213 = scmp.lt.s32.totalorder %s20, 1
      %s214 = scalar_select %p213, %s20, 1
      %p215 = scmp.lt.s32.totalorder %s21, 1
      %s216 = scalar_select %p215, %s21, 1
      %s217 = smul.addr %s216, 48
      %s218 = smul.addr %s214, 96
      %s219 = sadd.s32 %s217, %s218
      %s220 = smul.addr %s219, 4
      %s221 = scalar_lea.vmem %s0, %s220
      %p222 = pneg %p51
      %p223 = pneg %p48
      %p224 = pneg %p72
      %p225 = pneg %p69
      %p226 = pneg %p93
      %p227 = pneg %p90
      %p228 = pneg %p114
      %p229 = pneg %p111
      %p230 = pneg %p135
      %p231 = pneg %p132
      %p232 = pneg %p163
      %p233 = pneg %p160
      %s234 = smul.u32 8, %s21
      %p235 = scmp.lt.s32.totalorder %s20, 1
      %s236 = scalar_select %p235, %s20, 1
      %p237 = scmp.lt.s32.totalorder %s234, 15
      %s238 = scalar_select %p237, %s234, 15
      %s239 = smul.addr %s238, 2
      %s240 = smul.addr %s236, 32
      %s241 = sadd.s32 %s239, %s240
      %s242 = smul.addr %s241, 4
      %s243 = scalar_lea.vmem %s5, %s242
      %p244 = scmp.lt.s32.totalorder %s20, 1
      %s245 = scalar_select %p244, %s20, 1
      %p246 = scmp.lt.s32.totalorder %s21, 1
      %s247 = scalar_select %p246, %s21, 1
      %s248 = smul.addr %s247, 48
      %s249 = smul.addr %s245, 96
      %s250 = sadd.s32 %s248, %s249
      %s251 = smul.addr %s250, 4
      %s252 = scalar_lea.vmem %s0, %s251
      %s253 = smul.u32 8, %s21
      %p254 = scmp.lt.s32.totalorder %s20, 1
      %s255 = scalar_select %p254, %s20, 1
      %p256 = scmp.lt.s32.totalorder %s253, 15
      %s257 = scalar_select %p256, %s253, 15
      %s258 = smul.addr %s257, 2
      %s259 = smul.addr %s255, 32
      %s260 = sadd.s32 %s258, %s259
      %s261 = smul.addr %s260, 4
      %s262 = scalar_lea.vmem %s5, %s261
      %s263 = smul.u32 8, %s21
      %s265 = smul.u32 %s21, 8
      %v266 = vld [vmem:[%s252] sm:$0xf]
      %v267 = vld [vmem:[%s252 + $0x4] sm:$0xf]
      %v268 = vld [vmem:[%s252 + $0x8] sm:$0xf]
      %v269 = vld [vmem:[%s252 + $0xc] sm:$0x1]
      %v270 = vld [vmem:[%s252 + $0x10] sm:$0xf]
      %v271 = vld [vmem:[%s252 + $0x14] sm:$0xf]
      %v272 = vld [vmem:[%s252 + $0x18] sm:$0xf]
      %v273 = vld [vmem:[%s252 + $0x1c] sm:$0x1]
      %v274 = vld [vmem:[%s252 + $0x20] sm:$0xf]
      %v275 = vld [vmem:[%s252 + $0x24] sm:$0xf]
      %v276 = vld [vmem:[%s252 + $0x28] sm:$0xf]
      %v277 = vld [vmem:[%s252 + $0x2c] sm:$0x1]
      %v278 = vld [vmem:[%s252 + $0x30] sm:$0xf]
      %v279 = vld [vmem:[%s252 + $0x34] sm:$0xf]
      %v280 = vld [vmem:[%s252 + $0x38] sm:$0xf]
      %v281 = vld [vmem:[%s252 + $0x3c] sm:$0x1]
      %v282 = vld [vmem:[%s252 + $0x40] sm:$0xf]
      %v283 = vld [vmem:[%s252 + $0x44] sm:$0xf]
      %v284 = vld [vmem:[%s252 + $0x48] sm:$0xf]
      %v285 = vld [vmem:[%s252 + $0x4c] sm:$0x1]
      %v286 = vld [vmem:[%s252 + $0x50] sm:$0xf]
      %v287 = vld [vmem:[%s252 + $0x54] sm:$0xf]
      %v288 = vld [vmem:[%s252 + $0x58] sm:$0xf]
      %v289 = vld [vmem:[%s252 + $0x5c] sm:$0x1]
      %v290 = vld [vmem:[%s252 + $0x60] sm:$0xf]
      %v291 = vld [vmem:[%s252 + $0x64] sm:$0xf]
      %v292 = vld [vmem:[%s252 + $0x68] sm:$0xf]
      %v293 = vld [vmem:[%s252 + $0x6c] sm:$0x1]
      %v294 = vld [vmem:[%s252 + $0x70] sm:$0xf]
      %v295 = vld [vmem:[%s252 + $0x74] sm:$0xf]
      %v296 = vld [vmem:[%s252 + $0x78] sm:$0xf]
      %v297 = vld [vmem:[%s252 + $0x7c] sm:$0x1]
      %v298 = vld [vmem:[%s252 + $0x80] sm:$0xf]
      %v299 = vld [vmem:[%s252 + $0x84] sm:$0xf]
      %v300 = vld [vmem:[%s252 + $0x88] sm:$0xf]
      %v301 = vld [vmem:[%s252 + $0x8c] sm:$0x1]
      %v302 = vld [vmem:[%s252 + $0x90] sm:$0xf]
      %v303 = vld [vmem:[%s252 + $0x94] sm:$0xf]
      %v304 = vld [vmem:[%s252 + $0x98] sm:$0xf]
      %v305 = vld [vmem:[%s252 + $0x9c] sm:$0x1]
      %v306 = vld [vmem:[%s252 + $0xa0] sm:$0xf]
      %v307 = vld [vmem:[%s252 + $0xa4] sm:$0xf]
      %v308 = vld [vmem:[%s252 + $0xa8] sm:$0xf]
      %v309 = vld [vmem:[%s252 + $0xac] sm:$0x1]
      %v310 = vld [vmem:[%s252 + $0xb0] sm:$0xf]
      %v311 = vld [vmem:[%s252 + $0xb4] sm:$0xf]
      %v312 = vld [vmem:[%s252 + $0xb8] sm:$0xf]
      %v313 = vld [vmem:[%s252 + $0xbc] sm:$0x1]
      %v344 = vunpack.c.l.b16 %v266
      %v345 = vunpack.c.l.b16 %v267
      %v346 = vunpack.c.l.b16 %v268
      %v347 = vunpack.c.l.b16 %v270
      %v348 = vunpack.c.l.b16 %v271
      %v349 = vunpack.c.l.b16 %v272
      %v350 = vunpack.c.l.b16 %v274
      %v351 = vunpack.c.l.b16 %v275
      %v352 = vunpack.c.l.b16 %v276
      %v353 = vunpack.c.l.b16 %v278
      %v354 = vunpack.c.l.b16 %v279
      %v355 = vunpack.c.l.b16 %v280
      %v356 = vunpack.c.l.b16 %v282
      %v357 = vunpack.c.l.b16 %v283
      %v358 = vunpack.c.l.b16 %v284
      %v359 = vunpack.c.l.b16 %v286
      %v360 = vunpack.c.l.b16 %v287
      %v361 = vunpack.c.l.b16 %v288
      %v362 = vunpack.c.l.b16 %v290
      %v363 = vunpack.c.l.b16 %v291
      %v364 = vunpack.c.l.b16 %v292
      %v365 = vunpack.c.l.b16 %v294
      %v366 = vunpack.c.l.b16 %v295
      %v367 = vunpack.c.l.b16 %v296
      %v368 = vunpack.c.l.b16 %v298
      %v369 = vunpack.c.l.b16 %v299
      %v370 = vunpack.c.l.b16 %v300
      %v371 = vunpack.c.l.b16 %v302
      %v372 = vunpack.c.l.b16 %v303
      %v373 = vunpack.c.l.b16 %v304
      %v377 = vunpack.c.l.b16 %v306
      %v378 = vunpack.c.l.b16 %v307
      %v379 = vunpack.c.l.b16 %v308
      %v383 = vunpack.c.l.b16 %v310
      %v384 = vunpack.c.l.b16 %v311
      %v385 = vunpack.c.l.b16 %v312
      %v386 = vld [vmem:[%s1] sm:$0xf]
      %v387 = vld [vmem:[%s1 + $0x4] sm:$0xf]
      %v388 = vld [vmem:[%s1 + $0x8] sm:$0xf]
      %v389 = vld [vmem:[%s1 + $0xc] sm:$0xf]
      %v390 = vld [vmem:[%s1 + $0x10] sm:$0xf]
      %v391 = vld [vmem:[%s1 + $0x14] sm:$0xf]
      %v392 = vld [vmem:[%s1 + $0x18] sm:$0xf]
      %v393 = vld [vmem:[%s1 + $0x1c] sm:$0xf]
      %v394 = vld [vmem:[%s1 + $0x20] sm:$0xf]
      %v395 = vld [vmem:[%s1 + $0x24] sm:$0xf]
      %v396 = vld [vmem:[%s1 + $0x28] sm:$0xf]
      %v397 = vld [vmem:[%s1 + $0x2c] sm:$0xf]
      %v398 = vld [vmem:[%s1 + $0x30] sm:$0xf]
      %v399 = vld [vmem:[%s1 + $0x34] sm:$0xf]
      %v400 = vld [vmem:[%s1 + $0x38] sm:$0xf]
      %v401 = vld [vmem:[%s1 + $0x3c] sm:$0xf]
      %v402 = vld [vmem:[%s1 + $0x40] sm:$0xf]
      %v403 = vld [vmem:[%s1 + $0x44] sm:$0xf]
      %v404 = vld [vmem:[%s1 + $0x48] sm:$0xf]
      %v405 = vld [vmem:[%s1 + $0x4c] sm:$0xf]
      %v406 = vld [vmem:[%s1 + $0x50] sm:$0xf]
      %v407 = vld [vmem:[%s1 + $0x54] sm:$0xf]
      %v408 = vld [vmem:[%s1 + $0x58] sm:$0xf]
      %v409 = vld [vmem:[%s1 + $0x5c] sm:$0xf]
      %v410 = vld [vmem:[%s1 + $0x60] sm:$0xf]
      %v411 = vld [vmem:[%s1 + $0x64] sm:$0xf]
      %v412 = vld [vmem:[%s1 + $0x68] sm:$0xf]
      %v413 = vld [vmem:[%s1 + $0x6c] sm:$0xf]
      %v414 = vld [vmem:[%s1 + $0x70] sm:$0xf]
      %v415 = vld [vmem:[%s1 + $0x74] sm:$0xf]
      %v416 = vld [vmem:[%s1 + $0x78] sm:$0xf]
      %v417 = vld [vmem:[%s1 + $0x7c] sm:$0xf]
      %v418 = vld [vmem:[%s1 + $0x80] sm:$0xf]
      %v419 = vld [vmem:[%s1 + $0x84] sm:$0xf]
      %v420 = vld [vmem:[%s1 + $0x88] sm:$0xf]
      %v421 = vld [vmem:[%s1 + $0x8c] sm:$0xf]
      %v422 = vld [vmem:[%s1 + $0x90] sm:$0xf]
      %v423 = vld [vmem:[%s1 + $0x94] sm:$0xf]
      %v424 = vld [vmem:[%s1 + $0x98] sm:$0xf]
      %v425 = vld [vmem:[%s1 + $0x9c] sm:$0xf]
      %v426 = vld [vmem:[%s1 + $0xa0] sm:$0xf]
      %v427 = vld [vmem:[%s1 + $0xa4] sm:$0xf]
      %v428 = vld [vmem:[%s1 + $0xa8] sm:$0xf]
      %v429 = vld [vmem:[%s1 + $0xac] sm:$0xf]
      %v430 = vld [vmem:[%s1 + $0xb0] sm:$0xf]
      %v431 = vld [vmem:[%s1 + $0xb4] sm:$0xf]
      %v432 = vld [vmem:[%s1 + $0xb8] sm:$0xf]
      %v433 = vld [vmem:[%s1 + $0xbc] sm:$0xf]
      %v444 = vunpack.c.l.b16 %v269
      %v445 = vunpack.c.l.b16 %v273
      %v446 = vunpack.c.l.b16 %v277
      %v447 = vunpack.c.l.b16 %v281
      %v448 = vunpack.c.l.b16 %v285
      %v449 = vunpack.c.l.b16 %v289
      %v450 = vunpack.c.l.b16 %v293
      %v451 = vunpack.c.l.b16 %v297
      %v452 = vunpack.c.l.b16 %v301
      %v453 = vunpack.c.l.b16 %v305
      %v455 = vunpack.c.l.b16 %v309
      %v457 = vunpack.c.l.b16 %v313
      %v458 = vpack.c.b16 %v347, %v344
      %v459 = vpack.c.b16 %v350, %v350
      %v460 = vpack.c.b16 %v348, %v345
      %v461 = vpack.c.b16 %v351, %v351
      %v462 = vpack.c.b16 %v349, %v346
      %v463 = vpack.c.b16 %v352, %v352
      %v464 = vpack.c.b16 %v445, %v444
      %v465 = vpack.c.b16 %v446, %v446
      %v466 = vpack.c.b16 %v350, %v347
      %v467 = vpack.c.b16 %v353, %v353
      %v468 = vpack.c.b16 %v351, %v348
      %v469 = vpack.c.b16 %v354, %v354
      %v470 = vpack.c.b16 %v352, %v349
      %v471 = vpack.c.b16 %v355, %v355
      %v472 = vpack.c.b16 %v446, %v445
      %v473 = vpack.c.b16 %v447, %v447
      %v474 = vpack.c.b16 %v353, %v350
      %v475 = vpack.c.b16 %v356, %v356
      %v476 = vpack.c.b16 %v354, %v351
      %v477 = vpack.c.b16 %v357, %v357
      %v478 = vpack.c.b16 %v355, %v352
      %v479 = vpack.c.b16 %v358, %v358
      %v480 = vpack.c.b16 %v447, %v446
      %v481 = vpack.c.b16 %v448, %v448
      %v482 = vpack.c.b16 %v356, %v353
      %v483 = vpack.c.b16 %v359, %v359
      %v484 = vpack.c.b16 %v357, %v354
      %v485 = vpack.c.b16 %v360, %v360
      %v486 = vpack.c.b16 %v358, %v355
      %v487 = vpack.c.b16 %v361, %v361
      %v488 = vpack.c.b16 %v448, %v447
      %v489 = vpack.c.b16 %v449, %v449
      %v490 = vpack.c.b16 %v359, %v356
      %v491 = vpack.c.b16 %v362, %v362
      %v492 = vpack.c.b16 %v360, %v357
      %v493 = vpack.c.b16 %v363, %v363
      %v494 = vpack.c.b16 %v361, %v358
      %v495 = vpack.c.b16 %v364, %v364
      %v496 = vpack.c.b16 %v449, %v448
      %v497 = vpack.c.b16 %v450, %v450
      %v498 = vpack.c.b16 %v362, %v359
      %v499 = vpack.c.b16 %v365, %v365
      %v500 = vpack.c.b16 %v363, %v360
      %v501 = vpack.c.b16 %v366, %v366
      %v502 = vpack.c.b16 %v364, %v361
      %v503 = vpack.c.b16 %v367, %v367
      %v504 = vpack.c.b16 %v450, %v449
      %v505 = vpack.c.b16 %v451, %v451
      %v506 = vpack.c.b16 %v365, %v362
      %v507 = vpack.c.b16 %v368, %v368
      %v508 = vpack.c.b16 %v366, %v363
      %v509 = vpack.c.b16 %v369, %v369
      %v510 = vpack.c.b16 %v367, %v364
      %v511 = vpack.c.b16 %v370, %v370
      %v512 = vpack.c.b16 %v451, %v450
      %v513 = vpack.c.b16 %v452, %v452
      %v514 = vpack.c.b16 %v368, %v365
      %v515 = vpack.c.b16 %v371, %v371
      %v516 = vpack.c.b16 %v369, %v366
      %v517 = vpack.c.b16 %v372, %v372
      %v518 = vpack.c.b16 %v370, %v367
      %v519 = vpack.c.b16 %v373, %v373
      %v520 = vpack.c.b16 %v452, %v451
      %v521 = vpack.c.b16 %v453, %v453
      %v522 = vpack.c.b16 %v371, %v368
      %v523 = vpack.c.b16 %v377, %v377
      %v524 = vpack.c.b16 %v372, %v369
      %v525 = vpack.c.b16 %v378, %v378
      %v526 = vpack.c.b16 %v373, %v370
      %v527 = vpack.c.b16 %v379, %v379
      %v528 = vpack.c.b16 %v453, %v452
      %v529 = vpack.c.b16 %v455, %v455
      %v530 = vpack.c.b16 %v377, %v371
      %v531 = vpack.c.b16 %v383, %v383
      %v532 = vpack.c.b16 %v378, %v372
      %v533 = vpack.c.b16 %v384, %v384
      %v534 = vpack.c.b16 %v379, %v373
      %v535 = vpack.c.b16 %v385, %v385
      %v536 = vpack.c.b16 %v455, %v453
      %v537 = vpack.c.b16 %v457, %v457
      %vm538 = vsmask.f32 3328
      %vm539 = vsmask.f32 7440
      %vm540 = vmor %vm538, %vm539
      %v542 = vshrl.u32 %v458, 16
      %v544 = vrot.slane %v542, 4
      %v545 = vshll.u32 %v458, 16
      %v547 = vrot.slane %v545, 5
      %v548 = vor.u32 %v544, %v547
      %v549 = vrot.slane %v548, 4
      %v551 = vshll.u32 %v460, 16
      %v553 = vrot.slane %v551, 5
      %v554 = vsel %vm540, %v549, %v553
      %v556 = vshrl.u32 %v459, 16
      %v558 = vrot.slane %v556, 4
      %v559 = vshll.u32 %v459, 16
      %v561 = vrot.slane %v559, 5
      %v562 = vor.u32 %v558, %v561
      %v563 = vrot.slane %v562, 4
      %v565 = vshll.u32 %v461, 16
      %v567 = vrot.slane %v565, 5
      %v568 = vsel %vm540, %v563, %v567
      %v569 = vshrl.u32 %v460, 16
      %v571 = vrot.slane %v569, 4
      %v572 = vor.u32 %v571, %v553
      %v573 = vrot.slane %v572, 4
      %v575 = vshll.u32 %v462, 16
      %v577 = vrot.slane %v575, 5
      %v578 = vsel %vm540, %v573, %v577
      %v579 = vshrl.u32 %v461, 16
      %v581 = vrot.slane %v579, 4
      %v582 = vor.u32 %v581, %v567
      %v583 = vrot.slane %v582, 4
      %v585 = vshll.u32 %v463, 16
      %v587 = vrot.slane %v585, 5
      %v588 = vsel %vm540, %v583, %v587
      %v589 = vshrl.u32 %v462, 16
      %v591 = vrot.slane %v589, 4
      %v592 = vor.u32 %v591, %v577
      %v593 = vrot.slane %v592, 4
      %v595 = vshll.u32 %v464, 16
      %v597 = vrot.slane %v595, 5
      %v598 = vsel %vm540, %v593, %v597
      %v599 = vshrl.u32 %v463, 16
      %v601 = vrot.slane %v599, 4
      %v602 = vor.u32 %v601, %v587
      %v603 = vrot.slane %v602, 4
      %v605 = vshll.u32 %v465, 16
      %v607 = vrot.slane %v605, 5
      %v608 = vsel %vm540, %v603, %v607
      %v610 = vshrl.u32 %v466, 16
      %v612 = vrot.slane %v610, 4
      %v613 = vshll.u32 %v466, 16
      %v615 = vrot.slane %v613, 5
      %v616 = vor.u32 %v612, %v615
      %v617 = vrot.slane %v616, 4
      %v619 = vshll.u32 %v468, 16
      %v621 = vrot.slane %v619, 5
      %v622 = vsel %vm540, %v617, %v621
      %v624 = vshrl.u32 %v467, 16
      %v626 = vrot.slane %v624, 4
      %v627 = vshll.u32 %v467, 16
      %v629 = vrot.slane %v627, 5
      %v630 = vor.u32 %v626, %v629
      %v631 = vrot.slane %v630, 4
      %v633 = vshll.u32 %v469, 16
      %v635 = vrot.slane %v633, 5
      %v636 = vsel %vm540, %v631, %v635
      %v637 = vshrl.u32 %v468, 16
      %v639 = vrot.slane %v637, 4
      %v640 = vor.u32 %v639, %v621
      %v641 = vrot.slane %v640, 4
      %v643 = vshll.u32 %v470, 16
      %v645 = vrot.slane %v643, 5
      %v646 = vsel %vm540, %v641, %v645
      %v647 = vshrl.u32 %v469, 16
      %v649 = vrot.slane %v647, 4
      %v650 = vor.u32 %v649, %v635
      %v651 = vrot.slane %v650, 4
      %v653 = vshll.u32 %v471, 16
      %v655 = vrot.slane %v653, 5
      %v656 = vsel %vm540, %v651, %v655
      %v657 = vshrl.u32 %v470, 16
      %v659 = vrot.slane %v657, 4
      %v660 = vor.u32 %v659, %v645
      %v661 = vrot.slane %v660, 4
      %v663 = vshll.u32 %v472, 16
      %v665 = vrot.slane %v663, 5
      %v666 = vsel %vm540, %v661, %v665
      %v667 = vshrl.u32 %v471, 16
      %v669 = vrot.slane %v667, 4
      %v670 = vor.u32 %v669, %v655
      %v671 = vrot.slane %v670, 4
      %v673 = vshll.u32 %v473, 16
      %v675 = vrot.slane %v673, 5
      %v676 = vsel %vm540, %v671, %v675
      %v678 = vshrl.u32 %v474, 16
      %v680 = vrot.slane %v678, 4
      %v681 = vshll.u32 %v474, 16
      %v683 = vrot.slane %v681, 5
      %v684 = vor.u32 %v680, %v683
      %v685 = vrot.slane %v684, 4
      %v687 = vshll.u32 %v476, 16
      %v689 = vrot.slane %v687, 5
      %v690 = vsel %vm540, %v685, %v689
      %v692 = vshrl.u32 %v475, 16
      %v694 = vrot.slane %v692, 4
      %v695 = vshll.u32 %v475, 16
      %v697 = vrot.slane %v695, 5
      %v698 = vor.u32 %v694, %v697
      %v699 = vrot.slane %v698, 4
      %v701 = vshll.u32 %v477, 16
      %v703 = vrot.slane %v701, 5
      %v704 = vsel %vm540, %v699, %v703
      %v705 = vshrl.u32 %v476, 16
      %v707 = vrot.slane %v705, 4
      %v708 = vor.u32 %v707, %v689
      %v709 = vrot.slane %v708, 4
      %v711 = vshll.u32 %v478, 16
      %v713 = vrot.slane %v711, 5
      %v714 = vsel %vm540, %v709, %v713
      %v715 = vshrl.u32 %v477, 16
      %v717 = vrot.slane %v715, 4
      %v718 = vor.u32 %v717, %v703
      %v719 = vrot.slane %v718, 4
      %v721 = vshll.u32 %v479, 16
      %v723 = vrot.slane %v721, 5
      %v724 = vsel %vm540, %v719, %v723
      %v725 = vshrl.u32 %v478, 16
      %v727 = vrot.slane %v725, 4
      %v728 = vor.u32 %v727, %v713
      %v729 = vrot.slane %v728, 4
      %v731 = vshll.u32 %v480, 16
      %v733 = vrot.slane %v731, 5
      %v734 = vsel %vm540, %v729, %v733
      %v735 = vshrl.u32 %v479, 16
      %v737 = vrot.slane %v735, 4
      %v738 = vor.u32 %v737, %v723
      %v739 = vrot.slane %v738, 4
      %v741 = vshll.u32 %v481, 16
      %v743 = vrot.slane %v741, 5
      %v744 = vsel %vm540, %v739, %v743
      %v746 = vshrl.u32 %v482, 16
      %v748 = vrot.slane %v746, 4
      %v749 = vshll.u32 %v482, 16
      %v751 = vrot.slane %v749, 5
      %v752 = vor.u32 %v748, %v751
      %v753 = vrot.slane %v752, 4
      %v755 = vshll.u32 %v484, 16
      %v757 = vrot.slane %v755, 5
      %v758 = vsel %vm540, %v753, %v757
      %v760 = vshrl.u32 %v483, 16
      %v762 = vrot.slane %v760, 4
      %v763 = vshll.u32 %v483, 16
      %v765 = vrot.slane %v763, 5
      %v766 = vor.u32 %v762, %v765
      %v767 = vrot.slane %v766, 4
      %v769 = vshll.u32 %v485, 16
      %v771 = vrot.slane %v769, 5
      %v772 = vsel %vm540, %v767, %v771
      %v773 = vshrl.u32 %v484, 16
      %v775 = vrot.slane %v773, 4
      %v776 = vor.u32 %v775, %v757
      %v777 = vrot.slane %v776, 4
      %v779 = vshll.u32 %v486, 16
      %v781 = vrot.slane %v779, 5
      %v782 = vsel %vm540, %v777, %v781
      %v783 = vshrl.u32 %v485, 16
      %v785 = vrot.slane %v783, 4
      %v786 = vor.u32 %v785, %v771
      %v787 = vrot.slane %v786, 4
      %v789 = vshll.u32 %v487, 16
      %v791 = vrot.slane %v789, 5
      %v792 = vsel %vm540, %v787, %v791
      %v793 = vshrl.u32 %v486, 16
      %v795 = vrot.slane %v793, 4
      %v796 = vor.u32 %v795, %v781
      %v797 = vrot.slane %v796, 4
      %v799 = vshll.u32 %v488, 16
      %v801 = vrot.slane %v799, 5
      %v802 = vsel %vm540, %v797, %v801
      %v803 = vshrl.u32 %v487, 16
      %v805 = vrot.slane %v803, 4
      %v806 = vor.u32 %v805, %v791
      %v807 = vrot.slane %v806, 4
      %v809 = vshll.u32 %v489, 16
      %v811 = vrot.slane %v809, 5
      %v812 = vsel %vm540, %v807, %v811
      %v814 = vshrl.u32 %v490, 16
      %v816 = vrot.slane %v814, 4
      %v817 = vshll.u32 %v490, 16
      %v819 = vrot.slane %v817, 5
      %v820 = vor.u32 %v816, %v819
      %v821 = vrot.slane %v820, 4
      %v823 = vshll.u32 %v492, 16
      %v825 = vrot.slane %v823, 5
      %v826 = vsel %vm540, %v821, %v825
      %v828 = vshrl.u32 %v491, 16
      %v830 = vrot.slane %v828, 4
      %v831 = vshll.u32 %v491, 16
      %v833 = vrot.slane %v831, 5
      %v834 = vor.u32 %v830, %v833
      %v835 = vrot.slane %v834, 4
      %v837 = vshll.u32 %v493, 16
      %v839 = vrot.slane %v837, 5
      %v840 = vsel %vm540, %v835, %v839
      %v841 = vshrl.u32 %v492, 16
      %v843 = vrot.slane %v841, 4
      %v844 = vor.u32 %v843, %v825
      %v845 = vrot.slane %v844, 4
      %v847 = vshll.u32 %v494, 16
      %v849 = vrot.slane %v847, 5
      %v850 = vsel %vm540, %v845, %v849
      %v851 = vshrl.u32 %v493, 16
      %v853 = vrot.slane %v851, 4
      %v854 = vor.u32 %v853, %v839
      %v855 = vrot.slane %v854, 4
      %v857 = vshll.u32 %v495, 16
      %v859 = vrot.slane %v857, 5
      %v860 = vsel %vm540, %v855, %v859
      %v861 = vshrl.u32 %v494, 16
      %v863 = vrot.slane %v861, 4
      %v864 = vor.u32 %v863, %v849
      %v865 = vrot.slane %v864, 4
      %v867 = vshll.u32 %v496, 16
      %v869 = vrot.slane %v867, 5
      %v870 = vsel %vm540, %v865, %v869
      %v871 = vshrl.u32 %v495, 16
      %v873 = vrot.slane %v871, 4
      %v874 = vor.u32 %v873, %v859
      %v875 = vrot.slane %v874, 4
      %v877 = vshll.u32 %v497, 16
      %v879 = vrot.slane %v877, 5
      %v880 = vsel %vm540, %v875, %v879
      %v882 = vshrl.u32 %v498, 16
      %v884 = vrot.slane %v882, 4
      %v885 = vshll.u32 %v498, 16
      %v887 = vrot.slane %v885, 5
      %v888 = vor.u32 %v884, %v887
      %v889 = vrot.slane %v888, 4
      %v891 = vshll.u32 %v500, 16
      %v893 = vrot.slane %v891, 5
      %v894 = vsel %vm540, %v889, %v893
      %v896 = vshrl.u32 %v499, 16
      %v898 = vrot.slane %v896, 4
      %v899 = vshll.u32 %v499, 16
      %v901 = vrot.slane %v899, 5
      %v902 = vor.u32 %v898, %v901
      %v903 = vrot.slane %v902, 4
      %v905 = vshll.u32 %v501, 16
      %v907 = vrot.slane %v905, 5
      %v908 = vsel %vm540, %v903, %v907
      %v909 = vshrl.u32 %v500, 16
      %v911 = vrot.slane %v909, 4
      %v912 = vor.u32 %v911, %v893
      %v913 = vrot.slane %v912, 4
      %v915 = vshll.u32 %v502, 16
      %v917 = vrot.slane %v915, 5
      %v918 = vsel %vm540, %v913, %v917
      %v919 = vshrl.u32 %v501, 16
      %v921 = vrot.slane %v919, 4
      %v922 = vor.u32 %v921, %v907
      %v923 = vrot.slane %v922, 4
      %v925 = vshll.u32 %v503, 16
      %v927 = vrot.slane %v925, 5
      %v928 = vsel %vm540, %v923, %v927
      %v929 = vshrl.u32 %v502, 16
      %v931 = vrot.slane %v929, 4
      %v932 = vor.u32 %v931, %v917
      %v933 = vrot.slane %v932, 4
      %v935 = vshll.u32 %v504, 16
      %v937 = vrot.slane %v935, 5
      %v938 = vsel %vm540, %v933, %v937
      %v939 = vshrl.u32 %v503, 16
      %v941 = vrot.slane %v939, 4
      %v942 = vor.u32 %v941, %v927
      %v943 = vrot.slane %v942, 4
      %v945 = vshll.u32 %v505, 16
      %v947 = vrot.slane %v945, 5
      %v948 = vsel %vm540, %v943, %v947
      %v950 = vshrl.u32 %v506, 16
      %v952 = vrot.slane %v950, 4
      %v953 = vshll.u32 %v506, 16
      %v955 = vrot.slane %v953, 5
      %v956 = vor.u32 %v952, %v955
      %v957 = vrot.slane %v956, 4
      %v959 = vshll.u32 %v508, 16
      %v961 = vrot.slane %v959, 5
      %v962 = vsel %vm540, %v957, %v961
      %v964 = vshrl.u32 %v507, 16
      %v966 = vrot.slane %v964, 4
      %v967 = vshll.u32 %v507, 16
      %v969 = vrot.slane %v967, 5
      %v970 = vor.u32 %v966, %v969
      %v971 = vrot.slane %v970, 4
      %v973 = vshll.u32 %v509, 16
      %v975 = vrot.slane %v973, 5
      %v976 = vsel %vm540, %v971, %v975
      %v977 = vshrl.u32 %v508, 16
      %v979 = vrot.slane %v977, 4
      %v980 = vor.u32 %v979, %v961
      %v981 = vrot.slane %v980, 4
      %v983 = vshll.u32 %v510, 16
      %v985 = vrot.slane %v983, 5
      %v986 = vsel %vm540, %v981, %v985
      %v987 = vshrl.u32 %v509, 16
      %v989 = vrot.slane %v987, 4
      %v990 = vor.u32 %v989, %v975
      %v991 = vrot.slane %v990, 4
      %v993 = vshll.u32 %v511, 16
      %v995 = vrot.slane %v993, 5
      %v996 = vsel %vm540, %v991, %v995
      %v997 = vshrl.u32 %v510, 16
      %v999 = vrot.slane %v997, 4
      %v1000 = vor.u32 %v999, %v985
      %v1001 = vrot.slane %v1000, 4
      %v1003 = vshll.u32 %v512, 16
      %v1005 = vrot.slane %v1003, 5
      %v1006 = vsel %vm540, %v1001, %v1005
      %v1007 = vshrl.u32 %v511, 16
      %v1009 = vrot.slane %v1007, 4
      %v1010 = vor.u32 %v1009, %v995
      %v1011 = vrot.slane %v1010, 4
      %v1013 = vshll.u32 %v513, 16
      %v1015 = vrot.slane %v1013, 5
      %v1016 = vsel %vm540, %v1011, %v1015
      %v1018 = vshrl.u32 %v514, 16
      %v1020 = vrot.slane %v1018, 4
      %v1021 = vshll.u32 %v514, 16
      %v1023 = vrot.slane %v1021, 5
      %v1024 = vor.u32 %v1020, %v1023
      %v1025 = vrot.slane %v1024, 4
      %v1027 = vshll.u32 %v516, 16
      %v1029 = vrot.slane %v1027, 5
      %v1030 = vsel %vm540, %v1025, %v1029
      %v1032 = vshrl.u32 %v515, 16
      %v1034 = vrot.slane %v1032, 4
      %v1035 = vshll.u32 %v515, 16
      %v1037 = vrot.slane %v1035, 5
      %v1038 = vor.u32 %v1034, %v1037
      %v1039 = vrot.slane %v1038, 4
      %v1041 = vshll.u32 %v517, 16
      %v1043 = vrot.slane %v1041, 5
      %v1044 = vsel %vm540, %v1039, %v1043
      %v1045 = vshrl.u32 %v516, 16
      %v1047 = vrot.slane %v1045, 4
      %v1048 = vor.u32 %v1047, %v1029
      %v1049 = vrot.slane %v1048, 4
      %v1051 = vshll.u32 %v518, 16
      %v1053 = vrot.slane %v1051, 5
      %v1054 = vsel %vm540, %v1049, %v1053
      %v1055 = vshrl.u32 %v517, 16
      %v1057 = vrot.slane %v1055, 4
      %v1058 = vor.u32 %v1057, %v1043
      %v1059 = vrot.slane %v1058, 4
      %v1061 = vshll.u32 %v519, 16
      %v1063 = vrot.slane %v1061, 5
      %v1064 = vsel %vm540, %v1059, %v1063
      %v1065 = vshrl.u32 %v518, 16
      %v1067 = vrot.slane %v1065, 4
      %v1068 = vor.u32 %v1067, %v1053
      %v1069 = vrot.slane %v1068, 4
      %v1071 = vshll.u32 %v520, 16
      %v1073 = vrot.slane %v1071, 5
      %v1074 = vsel %vm540, %v1069, %v1073
      %v1075 = vshrl.u32 %v519, 16
      %v1077 = vrot.slane %v1075, 4
      %v1078 = vor.u32 %v1077, %v1063
      %v1079 = vrot.slane %v1078, 4
      %v1081 = vshll.u32 %v521, 16
      %v1083 = vrot.slane %v1081, 5
      %v1084 = vsel %vm540, %v1079, %v1083
      %v1086 = vshrl.u32 %v522, 16
      %v1088 = vrot.slane %v1086, 4
      %v1089 = vshll.u32 %v522, 16
      %v1091 = vrot.slane %v1089, 5
      %v1092 = vor.u32 %v1088, %v1091
      %v1093 = vrot.slane %v1092, 4
      %v1095 = vshll.u32 %v524, 16
      %v1097 = vrot.slane %v1095, 5
      %v1098 = vsel %vm540, %v1093, %v1097
      %v1100 = vshrl.u32 %v523, 16
      %v1102 = vrot.slane %v1100, 4
      %v1103 = vshll.u32 %v523, 16
      %v1105 = vrot.slane %v1103, 5
      %v1106 = vor.u32 %v1102, %v1105
      %v1107 = vrot.slane %v1106, 4
      %v1109 = vshll.u32 %v525, 16
      %v1111 = vrot.slane %v1109, 5
      %v1112 = vsel %vm540, %v1107, %v1111
      %v1113 = vshrl.u32 %v524, 16
      %v1115 = vrot.slane %v1113, 4
      %v1116 = vor.u32 %v1115, %v1097
      %v1117 = vrot.slane %v1116, 4
      %v1119 = vshll.u32 %v526, 16
      %v1121 = vrot.slane %v1119, 5
      %v1122 = vsel %vm540, %v1117, %v1121
      %v1123 = vshrl.u32 %v525, 16
      %v1125 = vrot.slane %v1123, 4
      %v1126 = vor.u32 %v1125, %v1111
      %v1127 = vrot.slane %v1126, 4
      %v1129 = vshll.u32 %v527, 16
      %v1131 = vrot.slane %v1129, 5
      %v1132 = vsel %vm540, %v1127, %v1131
      %v1133 = vshrl.u32 %v526, 16
      %v1135 = vrot.slane %v1133, 4
      %v1136 = vor.u32 %v1135, %v1121
      %v1137 = vrot.slane %v1136, 4
      %v1139 = vshll.u32 %v528, 16
      %v1141 = vrot.slane %v1139, 5
      %v1142 = vsel %vm540, %v1137, %v1141
      %v1143 = vshrl.u32 %v527, 16
      %v1145 = vrot.slane %v1143, 4
      %v1146 = vor.u32 %v1145, %v1131
      %v1147 = vrot.slane %v1146, 4
      %v1149 = vshll.u32 %v529, 16
      %v1151 = vrot.slane %v1149, 5
      %v1152 = vsel %vm540, %v1147, %v1151
      %v1154 = vshrl.u32 %v530, 16
      %v1156 = vrot.slane %v1154, 4
      %v1157 = vshll.u32 %v530, 16
      %v1159 = vrot.slane %v1157, 5
      %v1160 = vor.u32 %v1156, %v1159
      %v1161 = vrot.slane %v1160, 4
      %v1163 = vshll.u32 %v532, 16
      %v1165 = vrot.slane %v1163, 5
      %v1166 = vsel %vm540, %v1161, %v1165
      %v1168 = vshrl.u32 %v531, 16
      %v1170 = vrot.slane %v1168, 4
      %v1171 = vshll.u32 %v531, 16
      %v1173 = vrot.slane %v1171, 5
      %v1174 = vor.u32 %v1170, %v1173
      %v1175 = vrot.slane %v1174, 4
      %v1177 = vshll.u32 %v533, 16
      %v1179 = vrot.slane %v1177, 5
      %v1180 = vsel %vm540, %v1175, %v1179
      %v1181 = vshrl.u32 %v532, 16
      %v1183 = vrot.slane %v1181, 4
      %v1184 = vor.u32 %v1183, %v1165
      %v1185 = vrot.slane %v1184, 4
      %v1187 = vshll.u32 %v534, 16
      %v1189 = vrot.slane %v1187, 5
      %v1190 = vsel %vm540, %v1185, %v1189
      %v1191 = vshrl.u32 %v533, 16
      %v1193 = vrot.slane %v1191, 4
      %v1194 = vor.u32 %v1193, %v1179
      %v1195 = vrot.slane %v1194, 4
      %v1197 = vshll.u32 %v535, 16
      %v1199 = vrot.slane %v1197, 5
      %v1200 = vsel %vm540, %v1195, %v1199
      %v1201 = vshrl.u32 %v534, 16
      %v1203 = vrot.slane %v1201, 4
      %v1204 = vor.u32 %v1203, %v1189
      %v1205 = vrot.slane %v1204, 4
      %v1207 = vshll.u32 %v536, 16
      %v1209 = vrot.slane %v1207, 5
      %v1210 = vsel %vm540, %v1205, %v1209
      %v1211 = vshrl.u32 %v535, 16
      %v1213 = vrot.slane %v1211, 4
      %v1214 = vor.u32 %v1213, %v1199
      %v1215 = vrot.slane %v1214, 4
      %v1217 = vshll.u32 %v537, 16
      %v1219 = vrot.slane %v1217, 5
      %v1220 = vsel %vm540, %v1215, %v1219
      %s1221 = scalar_lea.vmem %s1, 192
      %v1222 = vld [vmem:[%s1221] sm:$0xf]
      %v1223 = vld [vmem:[%s1221 + $0x4] sm:$0xf]
      %v1224 = vld [vmem:[%s1221 + $0x8] sm:$0xf]
      %v1225 = vld [vmem:[%s1221 + $0xc] sm:$0xf]
      %v1226 = vld [vmem:[%s1221 + $0x10] sm:$0xf]
      %v1227 = vld [vmem:[%s1221 + $0x14] sm:$0xf]
      %v1228 = vld [vmem:[%s1221 + $0x18] sm:$0xf]
      %v1229 = vld [vmem:[%s1221 + $0x1c] sm:$0xf]
      %v1230 = vld [vmem:[%s1221 + $0x20] sm:$0xf]
      %v1231 = vld [vmem:[%s1221 + $0x24] sm:$0xf]
      %v1232 = vld [vmem:[%s1221 + $0x28] sm:$0xf]
      %v1233 = vld [vmem:[%s1221 + $0x2c] sm:$0xf]
      %v1234 = vld [vmem:[%s1221 + $0x30] sm:$0xf]
      %v1235 = vld [vmem:[%s1221 + $0x34] sm:$0xf]
      %v1236 = vld [vmem:[%s1221 + $0x38] sm:$0xf]
      %v1237 = vld [vmem:[%s1221 + $0x3c] sm:$0xf]
      %v1238 = vld [vmem:[%s1221 + $0x40] sm:$0xf]
      %v1239 = vld [vmem:[%s1221 + $0x44] sm:$0xf]
      %v1240 = vld [vmem:[%s1221 + $0x48] sm:$0xf]
      %v1241 = vld [vmem:[%s1221 + $0x4c] sm:$0xf]
      %v1242 = vld [vmem:[%s1221 + $0x50] sm:$0xf]
      %v1243 = vld [vmem:[%s1221 + $0x54] sm:$0xf]
      %v1244 = vld [vmem:[%s1221 + $0x58] sm:$0xf]
      %v1245 = vld [vmem:[%s1221 + $0x5c] sm:$0xf]
      %v1246 = vld [vmem:[%s1221 + $0x60] sm:$0xf]
      %v1247 = vld [vmem:[%s1221 + $0x64] sm:$0xf]
      %v1248 = vld [vmem:[%s1221 + $0x68] sm:$0xf]
      %v1249 = vld [vmem:[%s1221 + $0x6c] sm:$0xf]
      %v1250 = vld [vmem:[%s1221 + $0x70] sm:$0xf]
      %v1251 = vld [vmem:[%s1221 + $0x74] sm:$0xf]
      %v1252 = vld [vmem:[%s1221 + $0x78] sm:$0xf]
      %v1253 = vld [vmem:[%s1221 + $0x7c] sm:$0xf]
      %v1254 = vld [vmem:[%s1221 + $0x80] sm:$0xf]
      %v1255 = vld [vmem:[%s1221 + $0x84] sm:$0xf]
      %v1256 = vld [vmem:[%s1221 + $0x88] sm:$0xf]
      %v1257 = vld [vmem:[%s1221 + $0x8c] sm:$0xf]
      %v1258 = vld [vmem:[%s1221 + $0x90] sm:$0xf]
      %v1259 = vld [vmem:[%s1221 + $0x94] sm:$0xf]
      %v1260 = vld [vmem:[%s1221 + $0x98] sm:$0xf]
      %v1261 = vld [vmem:[%s1221 + $0x9c] sm:$0xf]
      %v1262 = vld [vmem:[%s1221 + $0xa0] sm:$0xf]
      %v1263 = vld [vmem:[%s1221 + $0xa4] sm:$0xf]
      %v1264 = vld [vmem:[%s1221 + $0xa8] sm:$0xf]
      %v1265 = vld [vmem:[%s1221 + $0xac] sm:$0xf]
      %v1266 = vld [vmem:[%s1221 + $0xb0] sm:$0xf]
      %v1267 = vld [vmem:[%s1221 + $0xb4] sm:$0xf]
      %v1268 = vld [vmem:[%s1221 + $0xb8] sm:$0xf]
      %v1269 = vld [vmem:[%s1221 + $0xbc] sm:$0xf]
      %v1270 = vunpack.c.l.b16 %v554
      %v1271 = vunpack.c.h.b16 %v554
      %v1272 = vunpack.c.l.b16 %v568
      %v1273 = vunpack.c.l.b16 %v578
      %v1274 = vunpack.c.h.b16 %v578
      %v1275 = vunpack.c.l.b16 %v588
      %v1276 = vunpack.c.l.b16 %v598
      %v1277 = vunpack.c.h.b16 %v598
      %v1278 = vunpack.c.l.b16 %v608
      %v1279 = vunpack.c.l.b16 %v622
      %v1280 = vunpack.c.h.b16 %v622
      %v1281 = vunpack.c.l.b16 %v636
      %v1282 = vunpack.c.l.b16 %v646
      %v1283 = vunpack.c.h.b16 %v646
      %v1284 = vunpack.c.l.b16 %v656
      %v1285 = vunpack.c.l.b16 %v666
      %v1286 = vunpack.c.h.b16 %v666
      %v1287 = vunpack.c.l.b16 %v676
      %v1288 = vunpack.c.l.b16 %v690
      %v1289 = vunpack.c.h.b16 %v690
      %v1290 = vunpack.c.l.b16 %v704
      %v1291 = vunpack.c.l.b16 %v714
      %v1292 = vunpack.c.h.b16 %v714
      %v1293 = vunpack.c.l.b16 %v724
      %v1294 = vunpack.c.l.b16 %v734
      %v1295 = vunpack.c.h.b16 %v734
      %v1296 = vunpack.c.l.b16 %v744
      %v1297 = vunpack.c.l.b16 %v758
      %v1298 = vunpack.c.h.b16 %v758
      %v1299 = vunpack.c.l.b16 %v772
      %v1300 = vunpack.c.l.b16 %v782
      %v1301 = vunpack.c.h.b16 %v782
      %v1302 = vunpack.c.l.b16 %v792
      %v1303 = vunpack.c.l.b16 %v802
      %v1304 = vunpack.c.h.b16 %v802
      %v1305 = vunpack.c.l.b16 %v812
      %v1306 = vunpack.c.l.b16 %v826
      %v1307 = vunpack.c.h.b16 %v826
      %v1308 = vunpack.c.l.b16 %v840
      %v1309 = vunpack.c.l.b16 %v850
      %v1310 = vunpack.c.h.b16 %v850
      %v1311 = vunpack.c.l.b16 %v860
      %v1312 = vunpack.c.l.b16 %v870
      %v1313 = vunpack.c.h.b16 %v870
      %v1314 = vunpack.c.l.b16 %v880
      %v1315 = vunpack.c.l.b16 %v894
      %v1316 = vunpack.c.h.b16 %v894
      %v1317 = vunpack.c.l.b16 %v908
      %v1318 = vunpack.c.l.b16 %v918
      %v1319 = vunpack.c.h.b16 %v918
      %v1320 = vunpack.c.l.b16 %v928
      %v1321 = vunpack.c.l.b16 %v938
      %v1322 = vunpack.c.h.b16 %v938
      %v1323 = vunpack.c.l.b16 %v948
      %v1324 = vunpack.c.l.b16 %v962
      %v1325 = vunpack.c.h.b16 %v962
      %v1326 = vunpack.c.l.b16 %v976
      %v1327 = vunpack.c.l.b16 %v986
      %v1328 = vunpack.c.h.b16 %v986
      %v1329 = vunpack.c.l.b16 %v996
      %v1330 = vunpack.c.l.b16 %v1006
      %v1331 = vunpack.c.h.b16 %v1006
      %v1332 = vunpack.c.l.b16 %v1016
      %v1333 = vunpack.c.l.b16 %v1030
      %v1334 = vunpack.c.h.b16 %v1030
      %v1335 = vunpack.c.l.b16 %v1044
      %v1336 = vunpack.c.l.b16 %v1054
      %v1337 = vunpack.c.h.b16 %v1054
      %v1338 = vunpack.c.l.b16 %v1064
      %v1339 = vunpack.c.l.b16 %v1074
      %v1340 = vunpack.c.h.b16 %v1074
      %v1341 = vunpack.c.l.b16 %v1084
      %v1342 = vunpack.c.l.b16 %v1098
      %v1343 = vunpack.c.h.b16 %v1098
      %v1344 = vunpack.c.l.b16 %v1112
      %v1345 = vunpack.c.l.b16 %v1122
      %v1346 = vunpack.c.h.b16 %v1122
      %v1347 = vunpack.c.l.b16 %v1132
      %v1348 = vunpack.c.l.b16 %v1142
      %v1349 = vunpack.c.h.b16 %v1142
      %v1350 = vunpack.c.l.b16 %v1152
      %v1351 = vunpack.c.l.b16 %v1166
      %v1352 = vunpack.c.h.b16 %v1166
      %v1353 = vunpack.c.l.b16 %v1180
      %v1354 = vunpack.c.l.b16 %v1190
      %v1355 = vunpack.c.h.b16 %v1190
      %v1356 = vunpack.c.l.b16 %v1200
      %v1357 = vunpack.c.l.b16 %v1210
      %v1358 = vunpack.c.h.b16 %v1210
      %v1359 = vunpack.c.l.b16 %v1220
      %v1360 = vpack.c.b16 %v1273, %v1270
      %v1361 = vpack.c.b16 %v1274, %v1271
      %v1362 = vpack.c.b16 %v1275, %v1272
      %v1363 = vpack.c.b16 %v1279, %v1276
      %v1364 = vpack.c.b16 %v1280, %v1277
      %v1365 = vpack.c.b16 %v1281, %v1278
      %v1366 = vpack.c.b16 %v1285, %v1282
      %v1367 = vpack.c.b16 %v1286, %v1283
      %v1368 = vpack.c.b16 %v1287, %v1284
      %v1369 = vpack.c.b16 %v1291, %v1288
      %v1370 = vpack.c.b16 %v1292, %v1289
      %v1371 = vpack.c.b16 %v1293, %v1290
      %v1372 = vpack.c.b16 %v1297, %v1294
      %v1373 = vpack.c.b16 %v1298, %v1295
      %v1374 = vpack.c.b16 %v1299, %v1296
      %v1375 = vpack.c.b16 %v1303, %v1300
      %v1376 = vpack.c.b16 %v1304, %v1301
      %v1377 = vpack.c.b16 %v1305, %v1302
      %v1378 = vpack.c.b16 %v1309, %v1306
      %v1379 = vpack.c.b16 %v1310, %v1307
      %v1380 = vpack.c.b16 %v1311, %v1308
      %v1381 = vpack.c.b16 %v1315, %v1312
      %v1382 = vpack.c.b16 %v1316, %v1313
      %v1383 = vpack.c.b16 %v1317, %v1314
      %v1384 = vpack.c.b16 %v1321, %v1318
      %v1385 = vpack.c.b16 %v1322, %v1319
      %v1386 = vpack.c.b16 %v1323, %v1320
      %v1387 = vpack.c.b16 %v1327, %v1324
      %v1388 = vpack.c.b16 %v1328, %v1325
      %v1389 = vpack.c.b16 %v1329, %v1326
      %v1390 = vpack.c.b16 %v1333, %v1330
      %v1391 = vpack.c.b16 %v1334, %v1331
      %v1392 = vpack.c.b16 %v1335, %v1332
      %v1393 = vpack.c.b16 %v1339, %v1336
      %v1394 = vpack.c.b16 %v1340, %v1337
      %v1395 = vpack.c.b16 %v1341, %v1338
      %v1396 = vpack.c.b16 %v1345, %v1342
      %v1397 = vpack.c.b16 %v1346, %v1343
      %v1398 = vpack.c.b16 %v1347, %v1344
      %v1399 = vpack.c.b16 %v1351, %v1348
      %v1400 = vpack.c.b16 %v1352, %v1349
      %v1401 = vpack.c.b16 %v1353, %v1350
      %v1402 = vpack.c.b16 %v1357, %v1354
      %v1403 = vpack.c.b16 %v1358, %v1355
      %v1404 = vpack.c.b16 %v1359, %v1356
      %v1498 = vunpack.c.l.b16 %v1222
      %v1499 = vunpack.c.l.b16 %v1223
      %v1500 = vunpack.c.l.b16 %v1224
      %v1501 = vunpack.c.l.b16 %v1225
      %v1502 = vunpack.c.l.b16 %v1226
      %v1503 = vunpack.c.l.b16 %v1227
      %v1504 = vunpack.c.l.b16 %v1228
      %v1505 = vunpack.c.l.b16 %v1229
      %v1506 = vunpack.c.l.b16 %v1230
      %v1507 = vunpack.c.l.b16 %v1231
      %v1508 = vunpack.c.l.b16 %v1232
      %v1509 = vunpack.c.l.b16 %v1233
      %v1510 = vunpack.c.l.b16 %v1234
      %v1511 = vunpack.c.l.b16 %v1235
      %v1512 = vunpack.c.l.b16 %v1236
      %v1513 = vunpack.c.l.b16 %v1237
      %v1514 = vunpack.c.l.b16 %v1238
      %v1515 = vunpack.c.l.b16 %v1239
      %v1516 = vunpack.c.l.b16 %v1240
      %v1517 = vunpack.c.l.b16 %v1241
      %v1518 = vunpack.c.l.b16 %v1242
      %v1519 = vunpack.c.l.b16 %v1243
      %v1520 = vunpack.c.l.b16 %v1244
      %v1521 = vunpack.c.l.b16 %v1245
      %v1522 = vunpack.c.l.b16 %v1246
      %v1523 = vunpack.c.l.b16 %v1247
      %v1524 = vunpack.c.l.b16 %v1248
      %v1525 = vunpack.c.l.b16 %v1249
      %v1526 = vunpack.c.l.b16 %v1250
      %v1527 = vunpack.c.l.b16 %v1251
      %v1528 = vunpack.c.l.b16 %v1252
      %v1529 = vunpack.c.l.b16 %v1253
      %v1530 = vunpack.c.l.b16 %v1254
      %v1531 = vunpack.c.l.b16 %v1255
      %v1532 = vunpack.c.l.b16 %v1256
      %v1533 = vunpack.c.l.b16 %v1257
      %v1534 = vunpack.c.l.b16 %v1258
      %v1535 = vunpack.c.l.b16 %v1259
      %v1536 = vunpack.c.l.b16 %v1260
      %v1537 = vunpack.c.l.b16 %v1261
      %v1538 = vunpack.c.l.b16 %v1262
      %v1539 = vunpack.c.l.b16 %v1263
      %v1540 = vunpack.c.l.b16 %v1264
      %v1541 = vunpack.c.l.b16 %v1265
      %v1542 = vunpack.c.l.b16 %v1266
      %v1543 = vunpack.c.l.b16 %v1267
      %v1544 = vunpack.c.l.b16 %v1268
      %v1545 = vunpack.c.l.b16 %v1269
      %v1546 = vpack.c.b16 %v1499, %v1498
      %v1547 = vpack.c.b16 %v1501, %v1500
      %v1548 = vpack.c.b16 %v1503, %v1502
      %v1549 = vpack.c.b16 %v1505, %v1504
      %v1550 = vpack.c.b16 %v1507, %v1506
      %v1551 = vpack.c.b16 %v1509, %v1508
      %v1552 = vpack.c.b16 %v1511, %v1510
      %v1553 = vpack.c.b16 %v1513, %v1512
      %v1554 = vpack.c.b16 %v1515, %v1514
      %v1555 = vpack.c.b16 %v1517, %v1516
      %v1556 = vpack.c.b16 %v1519, %v1518
      %v1557 = vpack.c.b16 %v1521, %v1520
      %v1558 = vpack.c.b16 %v1523, %v1522
      %v1559 = vpack.c.b16 %v1525, %v1524
      %v1560 = vpack.c.b16 %v1527, %v1526
      %v1561 = vpack.c.b16 %v1529, %v1528
      %v1562 = vpack.c.b16 %v1531, %v1530
      %v1563 = vpack.c.b16 %v1533, %v1532
      %v1564 = vpack.c.b16 %v1535, %v1534
      %v1565 = vpack.c.b16 %v1537, %v1536
      %v1566 = vpack.c.b16 %v1539, %v1538
      %v1567 = vpack.c.b16 %v1541, %v1540
      %v1568 = vpack.c.b16 %v1543, %v1542
      %v1569 = vpack.c.b16 %v1545, %v1544
      %1594 = vmatprep.subr.bf16.mxu0 0
      %1595 = vmatpush1.bf16.msra.mxu0 %v1546
      %1596 = vmatprep.subr.bf16.mxu0 0
      %1597 = vmatpush1.bf16.msra.mxu0 %v1547
      %1598 = vmatprep.subr.bf16.mxu0 0
      %1599 = vmatpush1.bf16.msra.mxu0 %v1548
      %1600 = vmatprep.subr.bf16.mxu0 0
      %1601 = vmatpush1.bf16.msra.mxu0 %v1549
      %1602 = vmatprep.subr.bf16.mxu0 0
      %1603 = vmatpush1.bf16.msra.mxu0 %v1550
      %1604 = vmatprep.subr.bf16.mxu0 0
      %1605 = vmatpush1.bf16.msra.mxu0 %v1551
      %1606 = vmatprep.subr.bf16.mxu0 0
      %1607 = vmatpush1.bf16.msra.mxu0 %v1552
      %1608 = vmatprep.subr.bf16.mxu0 0
      %1609 = vmatpush1.bf16.msra.mxu0 %v1553
      %1610 = vmatprep.subr.bf16.mxu0 0
      %1611 = vmatpush1.bf16.msra.mxu0 %v1554
      %1612 = vmatprep.subr.bf16.mxu0 0
      %1613 = vmatpush1.bf16.msra.mxu0 %v1555
      %1614 = vmatprep.subr.bf16.mxu0 0
      %1615 = vmatpush1.bf16.msra.mxu0 %v1556
      %1616 = vmatprep.subr.bf16.mxu0 0
      %1617 = vmatpush1.bf16.msra.mxu0 %v1557
      %1618 = vmatprep.subr.bf16.mxu0 0
      %1619 = vmatpush1.bf16.msra.mxu0 %v1558
      %1620 = vmatprep.subr.bf16.mxu0 0
      %1621 = vmatpush1.bf16.msra.mxu0 %v1559
      %1622 = vmatprep.subr.bf16.mxu0 0
      %1623 = vmatpush1.bf16.msra.mxu0 %v1560
      %1624 = vmatprep.subr.bf16.mxu0 0
      %1625 = vmatpush1.bf16.msra.mxu0 %v1561
      %1626 = vmatprep.mubr.bf16.mxu0 %v1361
      %1627 = vmatmul.mubr.bf16.gmra.mrb[0].mxu0 %v1360
      %v1628 = vpop.f32.mrb[0].mxu0
      %v1629 = vadd.f32 0.0, %v1628
      %v1630 = vpop.f32.mrb[0].mxu0
      %v1631 = vpop.f32.mrb[0].mxu0
      %v1632 = vadd.f32 0.0, %v1631
      %v1633 = vpop.f32.mrb[0].mxu0
      %1634 = vmatprep.mubr.bf16.mxu0 %v1364
      %1635 = vmatmul.mubr.bf16.gmra.mrb[0].mxu0 %v1363
      %v1636 = vpop.f32.mrb[0].mxu0
      %v1637 = vadd.f32 0.0, %v1636
      %v1638 = vpop.f32.mrb[0].mxu0
      %v1639 = vpop.f32.mrb[0].mxu0
      %v1640 = vadd.f32 0.0, %v1639
      %v1641 = vpop.f32.mrb[0].mxu0
      %1642 = vmatprep.mubr.bf16.mxu0 %v1367
      %1643 = vmatmul.mubr.bf16.gmra.mrb[0].mxu0 %v1366
      %v1644 = vpop.f32.mrb[0].mxu0
      %v1645 = vadd.f32 0.0, %v1644
      %v1646 = vpop.f32.mrb[0].mxu0
      %v1647 = vpop.f32.mrb[0].mxu0
      %v1648 = vadd.f32 0.0, %v1647
      %v1649 = vpop.f32.mrb[0].mxu0
      %1650 = vmatprep.mubr.bf16.mxu0 %v1370
      %1651 = vmatmul.mubr.bf16.gmra.mrb[0].mxu0 %v1369
      %v1652 = vpop.f32.mrb[0].mxu0
      %v1653 = vadd.f32 0.0, %v1652
      %v1654 = vpop.f32.mrb[0].mxu0
      %v1655 = vpop.f32.mrb[0].mxu0
      %v1656 = vadd.f32 0.0, %v1655
      %v1657 = vpop.f32.mrb[0].mxu0
      %1658 = vmatprep.mubr.bf16.mxu0 %v1373
      %1659 = vmatmul.mubr.bf16.gmra.mrb[0].mxu0 %v1372
      %v1660 = vpop.f32.mrb[0].mxu0
      %v1661 = vadd.f32 0.0, %v1660
      %v1662 = vpop.f32.mrb[0].mxu0
      %v1663 = vpop.f32.mrb[0].mxu0
      %v1664 = vadd.f32 0.0, %v1663
      %v1665 = vpop.f32.mrb[0].mxu0
      %1666 = vmatprep.mubr.bf16.mxu0 %v1376
      %1667 = vmatmul.mubr.bf16.gmra.mrb[0].mxu0 %v1375
      %v1668 = vpop.f32.mrb[0].mxu0
      %v1669 = vadd.f32 0.0, %v1668
      %v1670 = vpop.f32.mrb[0].mxu0
      %v1671 = vpop.f32.mrb[0].mxu0
      %v1672 = vadd.f32 0.0, %v1671
      %v1673 = vpop.f32.mrb[0].mxu0
      %1674 = vmatprep.mubr.bf16.mxu0 %v1379
      %1675 = vmatmul.mubr.bf16.gmra.mrb[0].mxu0 %v1378
      %v1676 = vpop.f32.mrb[0].mxu0
      %v1677 = vadd.f32 0.0, %v1676
      %v1678 = vpop.f32.mrb[0].mxu0
      %v1679 = vpop.f32.mrb[0].mxu0
      %v1680 = vadd.f32 0.0, %v1679
      %v1681 = vpop.f32.mrb[0].mxu0
      %1682 = vmatprep.mubr.bf16.mxu0 %v1382
      %1683 = vmatmul.mubr.bf16.gmra.mrb[0].mxu0 %v1381
      %v1684 = vpop.f32.mrb[0].mxu0
      %v1685 = vadd.f32 0.0, %v1684
      %v1686 = vpop.f32.mrb[0].mxu0
      %v1687 = vpop.f32.mrb[0].mxu0
      %v1688 = vadd.f32 0.0, %v1687
      %v1689 = vpop.f32.mrb[0].mxu0
      %1690 = vmatprep.mubr.bf16.mxu0 %v1385
      %1691 = vmatmul.mubr.bf16.gmra.mrb[0].mxu0 %v1384
      %v1692 = vpop.f32.mrb[0].mxu0
      %v1693 = vadd.f32 0.0, %v1692
      %v1694 = vpop.f32.mrb[0].mxu0
      %v1695 = vpop.f32.mrb[0].mxu0
      %v1696 = vadd.f32 0.0, %v1695
      %v1697 = vpop.f32.mrb[0].mxu0
      %1698 = vmatprep.mubr.bf16.mxu0 %v1388
      %1699 = vmatmul.mubr.bf16.gmra.mrb[0].mxu0 %v1387
      %v1700 = vpop.f32.mrb[0].mxu0
      %v1701 = vadd.f32 0.0, %v1700
      %v1702 = vpop.f32.mrb[0].mxu0
      %v1703 = vpop.f32.mrb[0].mxu0
      %v1704 = vadd.f32 0.0, %v1703
      %v1705 = vpop.f32.mrb[0].mxu0
      %1706 = vmatprep.mubr.bf16.mxu0 %v1391
      %1707 = vmatmul.mubr.bf16.gmra.mrb[0].mxu0 %v1390
      %v1708 = vpop.f32.mrb[0].mxu0
      %v1709 = vadd.f32 0.0, %v1708
      %v1710 = vpop.f32.mrb[0].mxu0
      %v1711 = vpop.f32.mrb[0].mxu0
      %v1712 = vadd.f32 0.0, %v1711
      %v1713 = vpop.f32.mrb[0].mxu0
      %1714 = vmatprep.mubr.bf16.mxu0 %v1394
      %1715 = vmatmul.mubr.bf16.gmra.mrb[0].mxu0 %v1393
      %v1716 = vpop.f32.mrb[0].mxu0
      %v1717 = vadd.f32 0.0, %v1716
      %v1718 = vpop.f32.mrb[0].mxu0
      %v1719 = vpop.f32.mrb[0].mxu0
      %v1720 = vadd.f32 0.0, %v1719
      %v1721 = vpop.f32.mrb[0].mxu0
      %1722 = vmatprep.mubr.bf16.mxu0 %v1397
      %1723 = vmatmul.mubr.bf16.gmra.mrb[0].mxu0 %v1396
      %v1724 = vpop.f32.mrb[0].mxu0
      %v1725 = vadd.f32 0.0, %v1724
      %v1726 = vpop.f32.mrb[0].mxu0
      %v1727 = vpop.f32.mrb[0].mxu0
      %v1728 = vadd.f32 0.0, %v1727
      %v1729 = vpop.f32.mrb[0].mxu0
      %1730 = vmatprep.mubr.bf16.mxu0 %v1400
      %1731 = vmatmul.mubr.bf16.gmra.mrb[0].mxu0 %v1399
      %v1732 = vpop.f32.mrb[0].mxu0
      %v1733 = vadd.f32 0.0, %v1732
      %v1734 = vpop.f32.mrb[0].mxu0
      %v1735 = vpop.f32.mrb[0].mxu0
      %v1736 = vadd.f32 0.0, %v1735
      %v1737 = vpop.f32.mrb[0].mxu0
      %1738 = vmatprep.mubr.bf16.mxu0 %v1403
      %1739 = vmatmul.mubr.bf16.gmra.mrb[0].mxu0 %v1402
      %v1740 = vpop.f32.mrb[0].mxu0
      %v1741 = vadd.f32 0.0, %v1740
      %v1742 = vpop.f32.mrb[0].mxu0
      %v1743 = vpop.f32.mrb[0].mxu0
      %v1744 = vadd.f32 0.0, %v1743
      %v1745 = vpop.f32.mrb[0].mxu0
      %1746 = vdwg.mxu0
      %1747 = vmatprep.subr.bf16.mxu0 0
      %1748 = vmatpush1.bf16.msra.mxu0 %v1562
      %1749 = vmatprep.subr.bf16.mxu0 0
      %1750 = vmatpush1.bf16.msra.mxu0 %v1563
      %1751 = vmatprep.subr.bf16.mxu0 0
      %1752 = vmatpush1.bf16.msra.mxu0 %v1564
      %1753 = vmatprep.subr.bf16.mxu0 0
      %1754 = vmatpush1.bf16.msra.mxu0 %v1565
      %1755 = vmatprep.subr.bf16.mxu0 0
      %1756 = vmatpush1.bf16.msra.mxu0 %v1566
      %1757 = vmatprep.subr.bf16.mxu0 0
      %1758 = vmatpush1.bf16.msra.mxu0 %v1567
      %1759 = vmatprep.subr.bf16.mxu0 0
      %1760 = vmatpush1.bf16.msra.mxu0 %v1568
      %1761 = vmatprep.subr.bf16.mxu0 0
      %1762 = vmatpush1.bf16.msra.mxu0 %v1569
      %1763 = vmatprep.subr.bf16.mxu0 0
      %1764 = vmatpush1.bf16.msra.mxu0 0
      %1765 = vmatprep.subr.bf16.mxu0 0
      %1766 = vmatpush1.bf16.msra.mxu0 0
      %1767 = vmatprep.subr.bf16.mxu0 0
      %1768 = vmatpush1.bf16.msra.mxu0 0
      %1769 = vmatprep.subr.bf16.mxu0 0
      %1770 = vmatpush1.bf16.msra.mxu0 0
      %1771 = vmatprep.subr.bf16.mxu0 0
      %1772 = vmatpush1.bf16.msra.mxu0 0
      %1773 = vmatprep.subr.bf16.mxu0 0
      %1774 = vmatpush1.bf16.msra.mxu0 0
      %1775 = vmatprep.subr.bf16.mxu0 0
      %1776 = vmatpush1.bf16.msra.mxu0 0
      %1777 = vmatprep.subr.bf16.mxu0 0
      %1778 = vmatpush1.bf16.msra.mxu0 0
      %1779 = vmatprep.mubr.bf16.mxu0 0
      %1780 = vmatmul.mubr.bf16.gmra.mrb[0].mxu0 %v1362
      %v1781 = vpop.f32.mrb[0].mxu0
      %v1782 = vadd.f32 %v1629, %v1781
      %v1783 = vpop.f32.mrb[0].mxu0
      %v1784 = vpop.f32.mrb[0].mxu0
      %v1785 = vadd.f32 %v1632, %v1784
      %v1786 = vpop.f32.mrb[0].mxu0
      %1787 = vmatprep.mubr.bf16.mxu0 0
      %1788 = vmatmul.mubr.bf16.gmra.mrb[0].mxu0 %v1365
      %v1789 = vpop.f32.mrb[0].mxu0
      %v1790 = vadd.f32 %v1637, %v1789
      %v1791 = vpop.f32.mrb[0].mxu0
      %v1792 = vpop.f32.mrb[0].mxu0
      %v1793 = vadd.f32 %v1640, %v1792
      %v1794 = vpop.f32.mrb[0].mxu0
      %1795 = vmatprep.mubr.bf16.mxu0 0
      %1796 = vmatmul.mubr.bf16.gmra.mrb[0].mxu0 %v1368
      %v1797 = vpop.f32.mrb[0].mxu0
      %v1798 = vadd.f32 %v1645, %v1797
      %v1799 = vpop.f32.mrb[0].mxu0
      %v1800 = vpop.f32.mrb[0].mxu0
      %v1801 = vadd.f32 %v1648, %v1800
      %v1802 = vpop.f32.mrb[0].mxu0
      %1803 = vmatprep.mubr.bf16.mxu0 0
      %1804 = vmatmul.mubr.bf16.gmra.mrb[0].mxu0 %v1371
      %v1805 = vpop.f32.mrb[0].mxu0
      %v1806 = vadd.f32 %v1653, %v1805
      %v1807 = vpop.f32.mrb[0].mxu0
      %v1808 = vpop.f32.mrb[0].mxu0
      %v1809 = vadd.f32 %v1656, %v1808
      %v1810 = vpop.f32.mrb[0].mxu0
      %1811 = vmatprep.mubr.bf16.mxu0 0
      %1812 = vmatmul.mubr.bf16.gmra.mrb[0].mxu0 %v1374
      %v1813 = vpop.f32.mrb[0].mxu0
      %v1814 = vadd.f32 %v1661, %v1813
      %v1815 = vpop.f32.mrb[0].mxu0
      %v1816 = vpop.f32.mrb[0].mxu0
      %v1817 = vadd.f32 %v1664, %v1816
      %v1818 = vpop.f32.mrb[0].mxu0
      %1819 = vmatprep.mubr.bf16.mxu0 0
      %1820 = vmatmul.mubr.bf16.gmra.mrb[0].mxu0 %v1377
      %v1821 = vpop.f32.mrb[0].mxu0
      %v1822 = vadd.f32 %v1669, %v1821
      %v1823 = vpop.f32.mrb[0].mxu0
      %v1824 = vpop.f32.mrb[0].mxu0
      %v1825 = vadd.f32 %v1672, %v1824
      %v1826 = vpop.f32.mrb[0].mxu0
      %1827 = vmatprep.mubr.bf16.mxu0 0
      %1828 = vmatmul.mubr.bf16.gmra.mrb[0].mxu0 %v1380
      %v1829 = vpop.f32.mrb[0].mxu0
      %v1830 = vadd.f32 %v1677, %v1829
      %v1831 = vpop.f32.mrb[0].mxu0
      %v1832 = vpop.f32.mrb[0].mxu0
      %v1833 = vadd.f32 %v1680, %v1832
      %v1834 = vpop.f32.mrb[0].mxu0
      %1835 = vmatprep.mubr.bf16.mxu0 0
      %1836 = vmatmul.mubr.bf16.gmra.mrb[0].mxu0 %v1383
      %v1837 = vpop.f32.mrb[0].mxu0
      %v1838 = vadd.f32 %v1685, %v1837
      %v1839 = vpop.f32.mrb[0].mxu0
      %v1840 = vpop.f32.mrb[0].mxu0
      %v1841 = vadd.f32 %v1688, %v1840
      %v1842 = vpop.f32.mrb[0].mxu0
      %1843 = vmatprep.mubr.bf16.mxu0 0
      %1844 = vmatmul.mubr.bf16.gmra.mrb[0].mxu0 %v1386
      %v1845 = vpop.f32.mrb[0].mxu0
      %v1846 = vadd.f32 %v1693, %v1845
      %v1847 = vpop.f32.mrb[0].mxu0
      %v1848 = vpop.f32.mrb[0].mxu0
      %v1849 = vadd.f32 %v1696, %v1848
      %v1850 = vpop.f32.mrb[0].mxu0
      %1851 = vmatprep.mubr.bf16.mxu0 0
      %1852 = vmatmul.mubr.bf16.gmra.mrb[0].mxu0 %v1389
      %v1853 = vpop.f32.mrb[0].mxu0
      %v1854 = vadd.f32 %v1701, %v1853
      %v1855 = vpop.f32.mrb[0].mxu0
      %v1856 = vpop.f32.mrb[0].mxu0
      %v1857 = vadd.f32 %v1704, %v1856
      %v1858 = vpop.f32.mrb[0].mxu0
      %1859 = vmatprep.mubr.bf16.mxu0 0
      %1860 = vmatmul.mubr.bf16.gmra.mrb[0].mxu0 %v1392
      %v1861 = vpop.f32.mrb[0].mxu0
      %v1862 = vadd.f32 %v1709, %v1861
      %v1863 = vpop.f32.mrb[0].mxu0
      %v1864 = vpop.f32.mrb[0].mxu0
      %v1865 = vadd.f32 %v1712, %v1864
      %v1866 = vpop.f32.mrb[0].mxu0
      %1867 = vmatprep.mubr.bf16.mxu0 0
      %1868 = vmatmul.mubr.bf16.gmra.mrb[0].mxu0 %v1395
      %v1869 = vpop.f32.mrb[0].mxu0
      %v1870 = vadd.f32 %v1717, %v1869
      %v1871 = vpop.f32.mrb[0].mxu0
      %v1872 = vpop.f32.mrb[0].mxu0
      %v1873 = vadd.f32 %v1720, %v1872
      %v1874 = vpop.f32.mrb[0].mxu0
      %1875 = vmatprep.mubr.bf16.mxu0 0
      %1876 = vmatmul.mubr.bf16.gmra.mrb[0].mxu0 %v1398
      %v1877 = vpop.f32.mrb[0].mxu0
      %v1878 = vadd.f32 %v1725, %v1877
      %v1879 = vpop.f32.mrb[0].mxu0
      %v1880 = vpop.f32.mrb[0].mxu0
      %v1881 = vadd.f32 %v1728, %v1880
      %v1882 = vpop.f32.mrb[0].mxu0
      %1883 = vmatprep.mubr.bf16.mxu0 0
      %1884 = vmatmul.mubr.bf16.gmra.mrb[0].mxu0 %v1401
      %v1885 = vpop.f32.mrb[0].mxu0
      %v1886 = vadd.f32 %v1733, %v1885
      %v1887 = vpop.f32.mrb[0].mxu0
      %v1888 = vpop.f32.mrb[0].mxu0
      %v1889 = vadd.f32 %v1736, %v1888
      %v1890 = vpop.f32.mrb[0].mxu0
      %1891 = vmatprep.mubr.bf16.mxu0 0
      %1892 = vmatmul.mubr.bf16.gmra.mrb[0].mxu0 %v1404
      %v1893 = vpop.f32.mrb[0].mxu0
      %v1894 = vadd.f32 %v1741, %v1893
      %v1895 = vpop.f32.mrb[0].mxu0
      %v1896 = vpop.f32.mrb[0].mxu0
      %v1897 = vadd.f32 %v1744, %v1896
      %v1898 = vpop.f32.mrb[0].mxu0
      %1899 = vdwg.mxu0
      %v1900 = vpack.c.b16 %v345, %v344
      %v1901 = vpack.c.b16 %v348, %v347
      %v1902 = vpack.c.b16 %v351, %v350
      %v1903 = vpack.c.b16 %v347, %v346
      %v1904 = vpack.c.b16 %v350, %v349
      %v1905 = vpack.c.b16 %v353, %v352
      %v1906 = vpack.c.b16 %v349, %v348
      %v1907 = vpack.c.b16 %v352, %v351
      %v1908 = vpack.c.b16 %v355, %v354
      %v1909 = vpack.c.b16 %v354, %v353
      %v1910 = vpack.c.b16 %v357, %v356
      %v1911 = vpack.c.b16 %v356, %v355
      %v1912 = vpack.c.b16 %v359, %v358
      %v1913 = vpack.c.b16 %v358, %v357
      %v1914 = vpack.c.b16 %v361, %v360
      %v1915 = vpack.c.b16 %v360, %v359
      %v1916 = vpack.c.b16 %v363, %v362
      %v1917 = vpack.c.b16 %v362, %v361
      %v1918 = vpack.c.b16 %v365, %v364
      %v1919 = vpack.c.b16 %v364, %v363
      %v1920 = vpack.c.b16 %v367, %v366
      %v1921 = vpack.c.b16 %v366, %v365
      %v1922 = vpack.c.b16 %v369, %v368
      %v1923 = vpack.c.b16 %v368, %v367
      %v1924 = vpack.c.b16 %v371, %v370
      %v1925 = vpack.c.b16 %v370, %v369
      %v1926 = vpack.c.b16 %v373, %v372
      %v1927 = vpack.c.b16 %v372, %v371
      %v1928 = vpack.c.b16 %v378, %v377
      %v1929 = vpack.c.b16 %v377, %v373
      %v1930 = vpack.c.b16 %v383, %v379
      %v1931 = vpack.c.b16 %v379, %v378
      %v1932 = vpack.c.b16 %v385, %v384
      %v2014 = vunpack.c.l.b16 %v386
      %v2015 = vunpack.c.l.b16 %v387
      %v2016 = vunpack.c.l.b16 %v388
      %v2017 = vunpack.c.l.b16 %v389
      %v2018 = vunpack.c.l.b16 %v390
      %v2019 = vunpack.c.l.b16 %v391
      %v2020 = vunpack.c.l.b16 %v392
      %v2021 = vunpack.c.l.b16 %v393
      %v2022 = vunpack.c.l.b16 %v394
      %v2023 = vunpack.c.l.b16 %v395
      %v2024 = vunpack.c.l.b16 %v396
      %v2025 = vunpack.c.l.b16 %v397
      %v2026 = vunpack.c.l.b16 %v398
      %v2027 = vunpack.c.l.b16 %v399
      %v2028 = vunpack.c.l.b16 %v400
      %v2029 = vunpack.c.l.b16 %v401
      %v2030 = vunpack.c.l.b16 %v402
      %v2031 = vunpack.c.l.b16 %v403
      %v2032 = vunpack.c.l.b16 %v404
      %v2033 = vunpack.c.l.b16 %v405
      %v2034 = vunpack.c.l.b16 %v406
      %v2035 = vunpack.c.l.b16 %v407
      %v2036 = vunpack.c.l.b16 %v408
      %v2037 = vunpack.c.l.b16 %v409
      %v2038 = vunpack.c.l.b16 %v410
      %v2039 = vunpack.c.l.b16 %v411
      %v2040 = vunpack.c.l.b16 %v412
      %v2041 = vunpack.c.l.b16 %v413
      %v2042 = vunpack.c.l.b16 %v414
      %v2043 = vunpack.c.l.b16 %v415
      %v2044 = vunpack.c.l.b16 %v416
      %v2045 = vunpack.c.l.b16 %v417
      %v2046 = vunpack.c.l.b16 %v418
      %v2047 = vunpack.c.l.b16 %v419
      %v2048 = vunpack.c.l.b16 %v420
      %v2049 = vunpack.c.l.b16 %v421
      %v2050 = vunpack.c.l.b16 %v422
      %v2051 = vunpack.c.l.b16 %v423
      %v2052 = vunpack.c.l.b16 %v424
      %v2053 = vunpack.c.l.b16 %v425
      %v2054 = vunpack.c.l.b16 %v426
      %v2055 = vunpack.c.l.b16 %v427
      %v2056 = vunpack.c.l.b16 %v428
      %v2057 = vunpack.c.l.b16 %v429
      %v2058 = vunpack.c.l.b16 %v430
      %v2059 = vunpack.c.l.b16 %v431
      %v2060 = vunpack.c.l.b16 %v432
      %v2061 = vunpack.c.l.b16 %v433
      %v2062 = vpack.c.b16 %v2015, %v2014
      %v2063 = vpack.c.b16 %v2017, %v2016
      %v2064 = vpack.c.b16 %v2019, %v2018
      %v2065 = vpack.c.b16 %v2021, %v2020
      %v2066 = vpack.c.b16 %v2023, %v2022
      %v2067 = vpack.c.b16 %v2025, %v2024
      %v2068 = vpack.c.b16 %v2027, %v2026
      %v2069 = vpack.c.b16 %v2029, %v2028
      %v2070 = vpack.c.b16 %v2031, %v2030
      %v2071 = vpack.c.b16 %v2033, %v2032
      %v2072 = vpack.c.b16 %v2035, %v2034
      %v2073 = vpack.c.b16 %v2037, %v2036
      %v2074 = vpack.c.b16 %v2039, %v2038
      %v2075 = vpack.c.b16 %v2041, %v2040
      %v2076 = vpack.c.b16 %v2043, %v2042
      %v2077 = vpack.c.b16 %v2045, %v2044
      %v2078 = vpack.c.b16 %v2047, %v2046
      %v2079 = vpack.c.b16 %v2049, %v2048
      %v2080 = vpack.c.b16 %v2051, %v2050
      %v2081 = vpack.c.b16 %v2053, %v2052
      %v2082 = vpack.c.b16 %v2055, %v2054
      %v2083 = vpack.c.b16 %v2057, %v2056
      %v2084 = vpack.c.b16 %v2059, %v2058
      %v2085 = vpack.c.b16 %v2061, %v2060
      %2110 = vmatprep.subr.bf16.mxu0 0
      %2111 = vmatpush1.bf16.msra.mxu0 %v2062
      %2112 = vmatprep.subr.bf16.mxu0 0
      %2113 = vmatpush1.bf16.msra.mxu0 %v2063
      %2114 = vmatprep.subr.bf16.mxu0 0
      %2115 = vmatpush1.bf16.msra.mxu0 %v2064
      %2116 = vmatprep.subr.bf16.mxu0 0
      %2117 = vmatpush1.bf16.msra.mxu0 %v2065
      %2118 = vmatprep.subr.bf16.mxu0 0
      %2119 = vmatpush1.bf16.msra.mxu0 %v2066
      %2120 = vmatprep.subr.bf16.mxu0 0
      %2121 = vmatpush1.bf16.msra.mxu0 %v2067
      %2122 = vmatprep.subr.bf16.mxu0 0
      %2123 = vmatpush1.bf16.msra.mxu0 %v2068
      %2124 = vmatprep.subr.bf16.mxu0 0
      %2125 = vmatpush1.bf16.msra.mxu0 %v2069
      %2126 = vmatprep.subr.bf16.mxu0 0
      %2127 = vmatpush1.bf16.msra.mxu0 %v2070
      %2128 = vmatprep.subr.bf16.mxu0 0
      %2129 = vmatpush1.bf16.msra.mxu0 %v2071
      %2130 = vmatprep.subr.bf16.mxu0 0
      %2131 = vmatpush1.bf16.msra.mxu0 %v2072
      %2132 = vmatprep.subr.bf16.mxu0 0
      %2133 = vmatpush1.bf16.msra.mxu0 %v2073
      %2134 = vmatprep.subr.bf16.mxu0 0
      %2135 = vmatpush1.bf16.msra.mxu0 %v2074
      %2136 = vmatprep.subr.bf16.mxu0 0
      %2137 = vmatpush1.bf16.msra.mxu0 %v2075
      %2138 = vmatprep.subr.bf16.mxu0 0
      %2139 = vmatpush1.bf16.msra.mxu0 %v2076
      %2140 = vmatprep.subr.bf16.mxu0 0
      %2141 = vmatpush1.bf16.msra.mxu0 %v2077
      %2142 = vmatprep.mubr.bf16.mxu0 %v1901
      %2143 = vmatmul.mubr.bf16.gmra.mrb[0].mxu0 %v1900
      %v2144 = vpop.f32.mrb[0].mxu0
      %v2145 = vadd.f32 %v1782, %v2144
      %v2146 = vpop.f32.mrb[0].mxu0
      %v2147 = vpop.f32.mrb[0].mxu0
      %v2148 = vadd.f32 %v1785, %v2147
      %v2149 = vpop.f32.mrb[0].mxu0
      %2150 = vmatprep.mubr.bf16.mxu0 %v1904
      %2151 = vmatmul.mubr.bf16.gmra.mrb[0].mxu0 %v1903
      %v2152 = vpop.f32.mrb[0].mxu0
      %v2153 = vadd.f32 %v1790, %v2152
      %v2154 = vpop.f32.mrb[0].mxu0
      %v2155 = vpop.f32.mrb[0].mxu0
      %v2156 = vadd.f32 %v1793, %v2155
      %v2157 = vpop.f32.mrb[0].mxu0
      %2158 = vmatprep.mubr.bf16.mxu0 %v1907
      %2159 = vmatmul.mubr.bf16.gmra.mrb[0].mxu0 %v1906
      %v2160 = vpop.f32.mrb[0].mxu0
      %v2161 = vadd.f32 %v1798, %v2160
      %v2162 = vpop.f32.mrb[0].mxu0
      %v2163 = vpop.f32.mrb[0].mxu0
      %v2164 = vadd.f32 %v1801, %v2163
      %v2165 = vpop.f32.mrb[0].mxu0
      %2166 = vmatprep.mubr.bf16.mxu0 %v1909
      %2167 = vmatmul.mubr.bf16.gmra.mrb[0].mxu0 %v1902
      %v2168 = vpop.f32.mrb[0].mxu0
      %v2169 = vadd.f32 %v1806, %v2168
      %v2170 = vpop.f32.mrb[0].mxu0
      %v2171 = vpop.f32.mrb[0].mxu0
      %v2172 = vadd.f32 %v1809, %v2171
      %v2173 = vpop.f32.mrb[0].mxu0
      %2174 = vmatprep.mubr.bf16.mxu0 %v1911
      %2175 = vmatmul.mubr.bf16.gmra.mrb[0].mxu0 %v1905
      %v2176 = vpop.f32.mrb[0].mxu0
      %v2177 = vadd.f32 %v1814, %v2176
      %v2178 = vpop.f32.mrb[0].mxu0
      %v2179 = vpop.f32.mrb[0].mxu0
      %v2180 = vadd.f32 %v1817, %v2179
      %v2181 = vpop.f32.mrb[0].mxu0
      %2182 = vmatprep.mubr.bf16.mxu0 %v1913
      %2183 = vmatmul.mubr.bf16.gmra.mrb[0].mxu0 %v1908
      %v2184 = vpop.f32.mrb[0].mxu0
      %v2185 = vadd.f32 %v1822, %v2184
      %v2186 = vpop.f32.mrb[0].mxu0
      %v2187 = vpop.f32.mrb[0].mxu0
      %v2188 = vadd.f32 %v1825, %v2187
      %v2189 = vpop.f32.mrb[0].mxu0
      %2190 = vmatprep.mubr.bf16.mxu0 %v1915
      %2191 = vmatmul.mubr.bf16.gmra.mrb[0].mxu0 %v1910
      %v2192 = vpop.f32.mrb[0].mxu0
      %v2193 = vadd.f32 %v1830, %v2192
      %v2194 = vpop.f32.mrb[0].mxu0
      %v2195 = vpop.f32.mrb[0].mxu0
      %v2196 = vadd.f32 %v1833, %v2195
      %v2197 = vpop.f32.mrb[0].mxu0
      %2198 = vmatprep.mubr.bf16.mxu0 %v1917
      %2199 = vmatmul.mubr.bf16.gmra.mrb[0].mxu0 %v1912
      %v2200 = vpop.f32.mrb[0].mxu0
      %v2201 = vadd.f32 %v1838, %v2200
      %v2202 = vpop.f32.mrb[0].mxu0
      %v2203 = vpop.f32.mrb[0].mxu0
      %v2204 = vadd.f32 %v1841, %v2203
      %v2205 = vpop.f32.mrb[0].mxu0
      %2206 = vmatprep.mubr.bf16.mxu0 %v1919
      %2207 = vmatmul.mubr.bf16.gmra.mrb[0].mxu0 %v1914
      %v2208 = vpop.f32.mrb[0].mxu0
      %v2209 = vadd.f32 %v1846, %v2208
      %v2210 = vpop.f32.mrb[0].mxu0
      %v2211 = vpop.f32.mrb[0].mxu0
      %v2212 = vadd.f32 %v1849, %v2211
      %v2213 = vpop.f32.mrb[0].mxu0
      %2214 = vmatprep.mubr.bf16.mxu0 %v1921
      %2215 = vmatmul.mubr.bf16.gmra.mrb[0].mxu0 %v1916
      %v2216 = vpop.f32.mrb[0].mxu0
      %v2217 = vadd.f32 %v1854, %v2216
      %v2218 = vpop.f32.mrb[0].mxu0
      %v2219 = vpop.f32.mrb[0].mxu0
      %v2220 = vadd.f32 %v1857, %v2219
      %v2221 = vpop.f32.mrb[0].mxu0
      %2222 = vmatprep.mubr.bf16.mxu0 %v1923
      %2223 = vmatmul.mubr.bf16.gmra.mrb[0].mxu0 %v1918
      %v2224 = vpop.f32.mrb[0].mxu0
      %v2225 = vadd.f32 %v1862, %v2224
      %v2226 = vpop.f32.mrb[0].mxu0
      %v2227 = vpop.f32.mrb[0].mxu0
      %v2228 = vadd.f32 %v1865, %v2227
      %v2229 = vpop.f32.mrb[0].mxu0
      %2230 = vmatprep.mubr.bf16.mxu0 %v1925
      %2231 = vmatmul.mubr.bf16.gmra.mrb[0].mxu0 %v1920
      %v2232 = vpop.f32.mrb[0].mxu0
      %v2233 = vadd.f32 %v1870, %v2232
      %v2234 = vpop.f32.mrb[0].mxu0
      %v2235 = vpop.f32.mrb[0].mxu0
      %v2236 = vadd.f32 %v1873, %v2235
      %v2237 = vpop.f32.mrb[0].mxu0
      %2238 = vmatprep.mubr.bf16.mxu0 %v1927
      %2239 = vmatmul.mubr.bf16.gmra.mrb[0].mxu0 %v1922
      %v2240 = vpop.f32.mrb[0].mxu0
      %v2241 = vadd.f32 %v1878, %v2240
      %v2242 = vpop.f32.mrb[0].mxu0
      %v2243 = vpop.f32.mrb[0].mxu0
      %v2244 = vadd.f32 %v1881, %v2243
      %v2245 = vpop.f32.mrb[0].mxu0
      %2246 = vmatprep.mubr.bf16.mxu0 %v1929
      %2247 = vmatmul.mubr.bf16.gmra.mrb[0].mxu0 %v1924
      %v2248 = vpop.f32.mrb[0].mxu0
      %v2249 = vadd.f32 %v1886, %v2248
      %v2250 = vpop.f32.mrb[0].mxu0
      %v2251 = vpop.f32.mrb[0].mxu0
      %v2252 = vadd.f32 %v1889, %v2251
      %v2253 = vpop.f32.mrb[0].mxu0
      %2254 = vmatprep.mubr.bf16.mxu0 %v1931
      %2255 = vmatmul.mubr.bf16.gmra.mrb[0].mxu0 %v1926
      %v2256 = vpop.f32.mrb[0].mxu0
      %v2257 = vadd.f32 %v1894, %v2256
      %v2258 = vpop.f32.mrb[0].mxu0
      %v2259 = vpop.f32.mrb[0].mxu0
      %v2260 = vadd.f32 %v1897, %v2259
      %v2261 = vpop.f32.mrb[0].mxu0
      %2262 = vdwg.mxu0
      %2263 = vmatprep.subr.bf16.mxu0 0
      %2264 = vmatpush1.bf16.msra.mxu0 %v2078
      %2265 = vmatprep.subr.bf16.mxu0 0
      %2266 = vmatpush1.bf16.msra.mxu0 %v2079
      %2267 = vmatprep.subr.bf16.mxu0 0
      %2268 = vmatpush1.bf16.msra.mxu0 %v2080
      %2269 = vmatprep.subr.bf16.mxu0 0
      %2270 = vmatpush1.bf16.msra.mxu0 %v2081
      %2271 = vmatprep.subr.bf16.mxu0 0
      %2272 = vmatpush1.bf16.msra.mxu0 %v2082
      %2273 = vmatprep.subr.bf16.mxu0 0
      %2274 = vmatpush1.bf16.msra.mxu0 %v2083
      %2275 = vmatprep.subr.bf16.mxu0 0
      %2276 = vmatpush1.bf16.msra.mxu0 %v2084
      %2277 = vmatprep.subr.bf16.mxu0 0
      %2278 = vmatpush1.bf16.msra.mxu0 %v2085
      %2279 = vmatprep.subr.bf16.mxu0 0
      %2280 = vmatpush1.bf16.msra.mxu0 0
      %2281 = vmatprep.subr.bf16.mxu0 0
      %2282 = vmatpush1.bf16.msra.mxu0 0
      %2283 = vmatprep.subr.bf16.mxu0 0
      %2284 = vmatpush1.bf16.msra.mxu0 0
      %2285 = vmatprep.subr.bf16.mxu0 0
      %2286 = vmatpush1.bf16.msra.mxu0 0
      %2287 = vmatprep.subr.bf16.mxu0 0
      %2288 = vmatpush1.bf16.msra.mxu0 0
      %2289 = vmatprep.subr.bf16.mxu0 0
      %2290 = vmatpush1.bf16.msra.mxu0 0
      %2291 = vmatprep.subr.bf16.mxu0 0
      %2292 = vmatpush1.bf16.msra.mxu0 0
      %2293 = vmatprep.subr.bf16.mxu0 0
      %2294 = vmatpush1.bf16.msra.mxu0 0
      %2295 = vmatprep.mubr.bf16.mxu0 0
      %2296 = vmatmul.mubr.bf16.gmra.mrb[0].mxu0 %v1902
      %v2297 = vpop.f32.mrb[0].mxu0
      %v2298 = vadd.f32 %v2145, %v2297
      %v2299 = vpop.f32.mrb[0].mxu0
      %v2300 = vpop.f32.mrb[0].mxu0
      %v2301 = vadd.f32 %v2148, %v2300
      %v2302 = vpop.f32.mrb[0].mxu0
      %2303 = vmatprep.mubr.bf16.mxu0 0
      %2304 = vmatmul.mubr.bf16.gmra.mrb[0].mxu0 %v1905
      %v2305 = vpop.f32.mrb[0].mxu0
      %v2306 = vadd.f32 %v2153, %v2305
      %v2307 = vpop.f32.mrb[0].mxu0
      %v2308 = vpop.f32.mrb[0].mxu0
      %v2309 = vadd.f32 %v2156, %v2308
      %v2310 = vpop.f32.mrb[0].mxu0
      %2311 = vmatprep.mubr.bf16.mxu0 0
      %2312 = vmatmul.mubr.bf16.gmra.mrb[0].mxu0 %v1908
      %v2313 = vpop.f32.mrb[0].mxu0
      %v2314 = vadd.f32 %v2161, %v2313
      %v2315 = vpop.f32.mrb[0].mxu0
      %v2316 = vpop.f32.mrb[0].mxu0
      %v2317 = vadd.f32 %v2164, %v2316
      %v2318 = vpop.f32.mrb[0].mxu0
      %2319 = vmatprep.mubr.bf16.mxu0 0
      %2320 = vmatmul.mubr.bf16.gmra.mrb[0].mxu0 %v1910
      %v2321 = vpop.f32.mrb[0].mxu0
      %v2322 = vadd.f32 %v2169, %v2321
      %v2323 = vpop.f32.mrb[0].mxu0
      %v2324 = vpop.f32.mrb[0].mxu0
      %v2325 = vadd.f32 %v2172, %v2324
      %v2326 = vpop.f32.mrb[0].mxu0
      %2327 = vmatprep.mubr.bf16.mxu0 0
      %2328 = vmatmul.mubr.bf16.gmra.mrb[0].mxu0 %v1912
      %v2329 = vpop.f32.mrb[0].mxu0
      %v2330 = vadd.f32 %v2177, %v2329
      %v2331 = vpop.f32.mrb[0].mxu0
      %v2332 = vpop.f32.mrb[0].mxu0
      %v2333 = vadd.f32 %v2180, %v2332
      %v2334 = vpop.f32.mrb[0].mxu0
      %2335 = vmatprep.mubr.bf16.mxu0 0
      %2336 = vmatmul.mubr.bf16.gmra.mrb[0].mxu0 %v1914
      %v2337 = vpop.f32.mrb[0].mxu0
      %v2338 = vadd.f32 %v2185, %v2337
      %v2339 = vpop.f32.mrb[0].mxu0
      %v2340 = vpop.f32.mrb[0].mxu0
      %v2341 = vadd.f32 %v2188, %v2340
      %v2342 = vpop.f32.mrb[0].mxu0
      %2343 = vmatprep.mubr.bf16.mxu0 0
      %2344 = vmatmul.mubr.bf16.gmra.mrb[0].mxu0 %v1916
      %v2345 = vpop.f32.mrb[0].mxu0
      %v2346 = vadd.f32 %v2193, %v2345
      %v2347 = vpop.f32.mrb[0].mxu0
      %v2348 = vpop.f32.mrb[0].mxu0
      %v2349 = vadd.f32 %v2196, %v2348
      %v2350 = vpop.f32.mrb[0].mxu0
      %2351 = vmatprep.mubr.bf16.mxu0 0
      %2352 = vmatmul.mubr.bf16.gmra.mrb[0].mxu0 %v1918
      %v2353 = vpop.f32.mrb[0].mxu0
      %v2354 = vadd.f32 %v2201, %v2353
      %v2355 = vpop.f32.mrb[0].mxu0
      %v2356 = vpop.f32.mrb[0].mxu0
      %v2357 = vadd.f32 %v2204, %v2356
      %v2358 = vpop.f32.mrb[0].mxu0
      %2359 = vmatprep.mubr.bf16.mxu0 0
      %2360 = vmatmul.mubr.bf16.gmra.mrb[0].mxu0 %v1920
      %v2361 = vpop.f32.mrb[0].mxu0
      %v2362 = vadd.f32 %v2209, %v2361
      %v2363 = vpop.f32.mrb[0].mxu0
      %v2364 = vpop.f32.mrb[0].mxu0
      %v2365 = vadd.f32 %v2212, %v2364
      %v2366 = vpop.f32.mrb[0].mxu0
      %2367 = vmatprep.mubr.bf16.mxu0 0
      %2368 = vmatmul.mubr.bf16.gmra.mrb[0].mxu0 %v1922
      %v2369 = vpop.f32.mrb[0].mxu0
      %v2370 = vadd.f32 %v2217, %v2369
      %v2371 = vpop.f32.mrb[0].mxu0
      %v2372 = vpop.f32.mrb[0].mxu0
      %v2373 = vadd.f32 %v2220, %v2372
      %v2374 = vpop.f32.mrb[0].mxu0
      %2375 = vmatprep.mubr.bf16.mxu0 0
      %2376 = vmatmul.mubr.bf16.gmra.mrb[0].mxu0 %v1924
      %v2377 = vpop.f32.mrb[0].mxu0
      %v2378 = vadd.f32 %v2225, %v2377
      %v2379 = vpop.f32.mrb[0].mxu0
      %v2380 = vpop.f32.mrb[0].mxu0
      %v2381 = vadd.f32 %v2228, %v2380
      %v2382 = vpop.f32.mrb[0].mxu0
      %2383 = vmatprep.mubr.bf16.mxu0 0
      %2384 = vmatmul.mubr.bf16.gmra.mrb[0].mxu0 %v1926
      %v2385 = vpop.f32.mrb[0].mxu0
      %v2386 = vadd.f32 %v2233, %v2385
      %v2387 = vpop.f32.mrb[0].mxu0
      %v2388 = vpop.f32.mrb[0].mxu0
      %v2389 = vadd.f32 %v2236, %v2388
      %v2390 = vpop.f32.mrb[0].mxu0
      %2391 = vmatprep.mubr.bf16.mxu0 0
      %2392 = vmatmul.mubr.bf16.gmra.mrb[0].mxu0 %v1928
      %v2393 = vpop.f32.mrb[0].mxu0
      %v2394 = vadd.f32 %v2241, %v2393
      %v2395 = vpop.f32.mrb[0].mxu0
      %v2396 = vpop.f32.mrb[0].mxu0
      %v2397 = vadd.f32 %v2244, %v2396
      %v2398 = vpop.f32.mrb[0].mxu0
      %2399 = vmatprep.mubr.bf16.mxu0 0
      %2400 = vmatmul.mubr.bf16.gmra.mrb[0].mxu0 %v1930
      %v2401 = vpop.f32.mrb[0].mxu0
      %v2402 = vadd.f32 %v2249, %v2401
      %v2403 = vpop.f32.mrb[0].mxu0
      %v2404 = vpop.f32.mrb[0].mxu0
      %v2405 = vadd.f32 %v2252, %v2404
      %v2406 = vpop.f32.mrb[0].mxu0
      %2407 = vmatprep.mubr.bf16.mxu0 0
      %2408 = vmatmul.mubr.bf16.gmra.mrb[0].mxu0 %v1932
      %v2409 = vpop.f32.mrb[0].mxu0
      %v2410 = vadd.f32 %v2257, %v2409
      %v2411 = vpop.f32.mrb[0].mxu0
      %v2412 = vpop.f32.mrb[0].mxu0
      %v2413 = vadd.f32 %v2260, %v2412
      %v2414 = vpop.f32.mrb[0].mxu0
      %2415 = vdwg.mxu0
      %vm2416 = vcmask 1042432
      %vm2417 = vcmask 1046532
      %vm2418 = vmor %vm2416, %vm2417
      %v2419 = vrot.slane %v458, 5
      %v2420 = vrot.slane %v2419, 4
      %v2421 = vrot.slane %v460, 5
      %v2422 = vsel %vm2418, %v2420, %v2421
      %v2423 = vrot.slane %v459, 5
      %v2424 = vrot.slane %v2423, 4
      %v2425 = vrot.slane %v461, 5
      %v2426 = vsel %vm2418, %v2424, %v2425
      %v2427 = vrot.slane %v2421, 4
      %v2428 = vrot.slane %v462, 5
      %v2429 = vsel %vm2418, %v2427, %v2428
      %v2430 = vrot.slane %v2425, 4
      %v2431 = vrot.slane %v463, 5
      %v2432 = vsel %vm2418, %v2430, %v2431
      %v2433 = vrot.slane %v2428, 4
      %v2434 = vrot.slane %v464, 5
      %v2435 = vsel %vm2418, %v2433, %v2434
      %v2436 = vrot.slane %v2431, 4
      %v2437 = vrot.slane %v465, 5
      %v2438 = vsel %vm2418, %v2436, %v2437
      %v2439 = vrot.slane %v466, 5
      %v2440 = vrot.slane %v2439, 4
      %v2441 = vrot.slane %v468, 5
      %v2442 = vsel %vm2418, %v2440, %v2441
      %v2443 = vrot.slane %v467, 5
      %v2444 = vrot.slane %v2443, 4
      %v2445 = vrot.slane %v469, 5
      %v2446 = vsel %vm2418, %v2444, %v2445
      %v2447 = vrot.slane %v2441, 4
      %v2448 = vrot.slane %v470, 5
      %v2449 = vsel %vm2418, %v2447, %v2448
      %v2450 = vrot.slane %v2445, 4
      %v2451 = vrot.slane %v471, 5
      %v2452 = vsel %vm2418, %v2450, %v2451
      %v2453 = vrot.slane %v2448, 4
      %v2454 = vrot.slane %v472, 5
      %v2455 = vsel %vm2418, %v2453, %v2454
      %v2456 = vrot.slane %v2451, 4
      %v2457 = vrot.slane %v473, 5
      %v2458 = vsel %vm2418, %v2456, %v2457
      %v2459 = vrot.slane %v474, 5
      %v2460 = vrot.slane %v2459, 4
      %v2461 = vrot.slane %v476, 5
      %v2462 = vsel %vm2418, %v2460, %v2461
      %v2463 = vrot.slane %v475, 5
      %v2464 = vrot.slane %v2463, 4
      %v2465 = vrot.slane %v477, 5
      %v2466 = vsel %vm2418, %v2464, %v2465
      %v2467 = vrot.slane %v2461, 4
      %v2468 = vrot.slane %v478, 5
      %v2469 = vsel %vm2418, %v2467, %v2468
      %v2470 = vrot.slane %v2465, 4
      %v2471 = vrot.slane %v479, 5
      %v2472 = vsel %vm2418, %v2470, %v2471
      %v2473 = vrot.slane %v2468, 4
      %v2474 = vrot.slane %v480, 5
      %v2475 = vsel %vm2418, %v2473, %v2474
      %v2476 = vrot.slane %v2471, 4
      %v2477 = vrot.slane %v481, 5
      %v2478 = vsel %vm2418, %v2476, %v2477
      %v2479 = vrot.slane %v482, 5
      %v2480 = vrot.slane %v2479, 4
      %v2481 = vrot.slane %v484, 5
      %v2482 = vsel %vm2418, %v2480, %v2481
      %v2483 = vrot.slane %v483, 5
      %v2484 = vrot.slane %v2483, 4
      %v2485 = vrot.slane %v485, 5
      %v2486 = vsel %vm2418, %v2484, %v2485
      %v2487 = vrot.slane %v2481, 4
      %v2488 = vrot.slane %v486, 5
      %v2489 = vsel %vm2418, %v2487, %v2488
      %v2490 = vrot.slane %v2485, 4
      %v2491 = vrot.slane %v487, 5
      %v2492 = vsel %vm2418, %v2490, %v2491
      %v2493 = vrot.slane %v2488, 4
      %v2494 = vrot.slane %v488, 5
      %v2495 = vsel %vm2418, %v2493, %v2494
      %v2496 = vrot.slane %v2491, 4
      %v2497 = vrot.slane %v489, 5
      %v2498 = vsel %vm2418, %v2496, %v2497
      %v2499 = vrot.slane %v490, 5
      %v2500 = vrot.slane %v2499, 4
      %v2501 = vrot.slane %v492, 5
      %v2502 = vsel %vm2418, %v2500, %v2501
      %v2503 = vrot.slane %v491, 5
      %v2504 = vrot.slane %v2503, 4
      %v2505 = vrot.slane %v493, 5
      %v2506 = vsel %vm2418, %v2504, %v2505
      %v2507 = vrot.slane %v2501, 4
      %v2508 = vrot.slane %v494, 5
      %v2509 = vsel %vm2418, %v2507, %v2508
      %v2510 = vrot.slane %v2505, 4
      %v2511 = vrot.slane %v495, 5
      %v2512 = vsel %vm2418, %v2510, %v2511
      %v2513 = vrot.slane %v2508, 4
      %v2514 = vrot.slane %v496, 5
      %v2515 = vsel %vm2418, %v2513, %v2514
      %v2516 = vrot.slane %v2511, 4
      %v2517 = vrot.slane %v497, 5
      %v2518 = vsel %vm2418, %v2516, %v2517
      %v2519 = vrot.slane %v498, 5
      %v2520 = vrot.slane %v2519, 4
      %v2521 = vrot.slane %v500, 5
      %v2522 = vsel %vm2418, %v2520, %v2521
      %v2523 = vrot.slane %v499, 5
      %v2524 = vrot.slane %v2523, 4
      %v2525 = vrot.slane %v501, 5
      %v2526 = vsel %vm2418, %v2524, %v2525
      %v2527 = vrot.slane %v2521, 4
      %v2528 = vrot.slane %v502, 5
      %v2529 = vsel %vm2418, %v2527, %v2528
      %v2530 = vrot.slane %v2525, 4
      %v2531 = vrot.slane %v503, 5
      %v2532 = vsel %vm2418, %v2530, %v2531
      %v2533 = vrot.slane %v2528, 4
      %v2534 = vrot.slane %v504, 5
      %v2535 = vsel %vm2418, %v2533, %v2534
      %v2536 = vrot.slane %v2531, 4
      %v2537 = vrot.slane %v505, 5
      %v2538 = vsel %vm2418, %v2536, %v2537
      %v2539 = vrot.slane %v506, 5
      %v2540 = vrot.slane %v2539, 4
      %v2541 = vrot.slane %v508, 5
      %v2542 = vsel %vm2418, %v2540, %v2541
      %v2543 = vrot.slane %v507, 5
      %v2544 = vrot.slane %v2543, 4
      %v2545 = vrot.slane %v509, 5
      %v2546 = vsel %vm2418, %v2544, %v2545
      %v2547 = vrot.slane %v2541, 4
      %v2548 = vrot.slane %v510, 5
      %v2549 = vsel %vm2418, %v2547, %v2548
      %v2550 = vrot.slane %v2545, 4
      %v2551 = vrot.slane %v511, 5
      %v2552 = vsel %vm2418, %v2550, %v2551
      %v2553 = vrot.slane %v2548, 4
      %v2554 = vrot.slane %v512, 5
      %v2555 = vsel %vm2418, %v2553, %v2554
      %v2556 = vrot.slane %v2551, 4
      %v2557 = vrot.slane %v513, 5
      %v2558 = vsel %vm2418, %v2556, %v2557
      %v2559 = vrot.slane %v514, 5
      %v2560 = vrot.slane %v2559, 4
      %v2561 = vrot.slane %v516, 5
      %v2562 = vsel %vm2418, %v2560, %v2561
      %v2563 = vrot.slane %v515, 5
      %v2564 = vrot.slane %v2563, 4
      %v2565 = vrot.slane %v517, 5
      %v2566 = vsel %vm2418, %v2564, %v2565
      %v2567 = vrot.slane %v2561, 4
      %v2568 = vrot.slane %v518, 5
      %v2569 = vsel %vm2418, %v2567, %v2568
      %v2570 = vrot.slane %v2565, 4
      %v2571 = vrot.slane %v519, 5
      %v2572 = vsel %vm2418, %v2570, %v2571
      %v2573 = vrot.slane %v2568, 4
      %v2574 = vrot.slane %v520, 5
      %v2575 = vsel %vm2418, %v2573, %v2574
      %v2576 = vrot.slane %v2571, 4
      %v2577 = vrot.slane %v521, 5
      %v2578 = vsel %vm2418, %v2576, %v2577
      %v2579 = vrot.slane %v522, 5
      %v2580 = vrot.slane %v2579, 4
      %v2581 = vrot.slane %v524, 5
      %v2582 = vsel %vm2418, %v2580, %v2581
      %v2583 = vrot.slane %v523, 5
      %v2584 = vrot.slane %v2583, 4
      %v2585 = vrot.slane %v525, 5
      %v2586 = vsel %vm2418, %v2584, %v2585
      %v2587 = vrot.slane %v2581, 4
      %v2588 = vrot.slane %v526, 5
      %v2589 = vsel %vm2418, %v2587, %v2588
      %v2590 = vrot.slane %v2585, 4
      %v2591 = vrot.slane %v527, 5
      %v2592 = vsel %vm2418, %v2590, %v2591
      %v2593 = vrot.slane %v2588, 4
      %v2594 = vrot.slane %v528, 5
      %v2595 = vsel %vm2418, %v2593, %v2594
      %v2596 = vrot.slane %v2591, 4
      %v2597 = vrot.slane %v529, 5
      %v2598 = vsel %vm2418, %v2596, %v2597
      %v2599 = vrot.slane %v530, 5
      %v2600 = vrot.slane %v2599, 4
      %v2601 = vrot.slane %v532, 5
      %v2602 = vsel %vm2418, %v2600, %v2601
      %v2603 = vrot.slane %v531, 5
      %v2604 = vrot.slane %v2603, 4
      %v2605 = vrot.slane %v533, 5
      %v2606 = vsel %vm2418, %v2604, %v2605
      %v2607 = vrot.slane %v2601, 4
      %v2608 = vrot.slane %v534, 5
      %v2609 = vsel %vm2418, %v2607, %v2608
      %v2610 = vrot.slane %v2605, 4
      %v2611 = vrot.slane %v535, 5
      %v2612 = vsel %vm2418, %v2610, %v2611
      %v2613 = vrot.slane %v2608, 4
      %v2614 = vrot.slane %v536, 5
      %v2615 = vsel %vm2418, %v2613, %v2614
      %v2616 = vrot.slane %v2611, 4
      %v2617 = vrot.slane %v537, 5
      %v2618 = vsel %vm2418, %v2616, %v2617
      %s2619 = scalar_lea.vmem %s1, 384
      %v2620 = vld [vmem:[%s2619] sm:$0xf]
      %v2621 = vld [vmem:[%s2619 + $0x4] sm:$0xf]
      %v2622 = vld [vmem:[%s2619 + $0x8] sm:$0xf]
      %v2623 = vld [vmem:[%s2619 + $0xc] sm:$0xf]
      %v2624 = vld [vmem:[%s2619 + $0x10] sm:$0xf]
      %v2625 = vld [vmem:[%s2619 + $0x14] sm:$0xf]
      %v2626 = vld [vmem:[%s2619 + $0x18] sm:$0xf]
      %v2627 = vld [vmem:[%s2619 + $0x1c] sm:$0xf]
      %v2628 = vld [vmem:[%s2619 + $0x20] sm:$0xf]
      %v2629 = vld [vmem:[%s2619 + $0x24] sm:$0xf]
      %v2630 = vld [vmem:[%s2619 + $0x28] sm:$0xf]
      %v2631 = vld [vmem:[%s2619 + $0x2c] sm:$0xf]
      %v2632 = vld [vmem:[%s2619 + $0x30] sm:$0xf]
      %v2633 = vld [vmem:[%s2619 + $0x34] sm:$0xf]
      %v2634 = vld [vmem:[%s2619 + $0x38] sm:$0xf]
      %v2635 = vld [vmem:[%s2619 + $0x3c] sm:$0xf]
      %v2636 = vld [vmem:[%s2619 + $0x40] sm:$0xf]
      %v2637 = vld [vmem:[%s2619 + $0x44] sm:$0xf]
      %v2638 = vld [vmem:[%s2619 + $0x48] sm:$0xf]
      %v2639 = vld [vmem:[%s2619 + $0x4c] sm:$0xf]
      %v2640 = vld [vmem:[%s2619 + $0x50] sm:$0xf]
      %v2641 = vld [vmem:[%s2619 + $0x54] sm:$0xf]
      %v2642 = vld [vmem:[%s2619 + $0x58] sm:$0xf]
      %v2643 = vld [vmem:[%s2619 + $0x5c] sm:$0xf]
      %v2644 = vld [vmem:[%s2619 + $0x60] sm:$0xf]
      %v2645 = vld [vmem:[%s2619 + $0x64] sm:$0xf]
      %v2646 = vld [vmem:[%s2619 + $0x68] sm:$0xf]
      %v2647 = vld [vmem:[%s2619 + $0x6c] sm:$0xf]
      %v2648 = vld [vmem:[%s2619 + $0x70] sm:$0xf]
      %v2649 = vld [vmem:[%s2619 + $0x74] sm:$0xf]
      %v2650 = vld [vmem:[%s2619 + $0x78] sm:$0xf]
      %v2651 = vld [vmem:[%s2619 + $0x7c] sm:$0xf]
      %v2652 = vld [vmem:[%s2619 + $0x80] sm:$0xf]
      %v2653 = vld [vmem:[%s2619 + $0x84] sm:$0xf]
      %v2654 = vld [vmem:[%s2619 + $0x88] sm:$0xf]
      %v2655 = vld [vmem:[%s2619 + $0x8c] sm:$0xf]
      %v2656 = vld [vmem:[%s2619 + $0x90] sm:$0xf]
      %v2657 = vld [vmem:[%s2619 + $0x94] sm:$0xf]
      %v2658 = vld [vmem:[%s2619 + $0x98] sm:$0xf]
      %v2659 = vld [vmem:[%s2619 + $0x9c] sm:$0xf]
      %v2660 = vld [vmem:[%s2619 + $0xa0] sm:$0xf]
      %v2661 = vld [vmem:[%s2619 + $0xa4] sm:$0xf]
      %v2662 = vld [vmem:[%s2619 + $0xa8] sm:$0xf]
      %v2663 = vld [vmem:[%s2619 + $0xac] sm:$0xf]
      %v2664 = vld [vmem:[%s2619 + $0xb0] sm:$0xf]
      %v2665 = vld [vmem:[%s2619 + $0xb4] sm:$0xf]
      %v2666 = vld [vmem:[%s2619 + $0xb8] sm:$0xf]
      %v2667 = vld [vmem:[%s2619 + $0xbc] sm:$0xf]
      %v2668 = vunpack.c.l.b16 %v2422
      %v2669 = vunpack.c.h.b16 %v2422
      %v2670 = vunpack.c.l.b16 %v2426
      %v2671 = vunpack.c.l.b16 %v2429
      %v2672 = vunpack.c.h.b16 %v2429
      %v2673 = vunpack.c.l.b16 %v2432
      %v2674 = vunpack.c.l.b16 %v2435
      %v2675 = vunpack.c.h.b16 %v2435
      %v2676 = vunpack.c.l.b16 %v2438
      %v2677 = vunpack.c.l.b16 %v2442
      %v2678 = vunpack.c.h.b16 %v2442
      %v2679 = vunpack.c.l.b16 %v2446
      %v2680 = vunpack.c.l.b16 %v2449
      %v2681 = vunpack.c.h.b16 %v2449
      %v2682 = vunpack.c.l.b16 %v2452
      %v2683 = vunpack.c.l.b16 %v2455
      %v2684 = vunpack.c.h.b16 %v2455
      %v2685 = vunpack.c.l.b16 %v2458
      %v2686 = vunpack.c.l.b16 %v2462
      %v2687 = vunpack.c.h.b16 %v2462
      %v2688 = vunpack.c.l.b16 %v2466
      %v2689 = vunpack.c.l.b16 %v2469
      %v2690 = vunpack.c.h.b16 %v2469
      %v2691 = vunpack.c.l.b16 %v2472
      %v2692 = vunpack.c.l.b16 %v2475
      %v2693 = vunpack.c.h.b16 %v2475
      %v2694 = vunpack.c.l.b16 %v2478
      %v2695 = vunpack.c.l.b16 %v2482
      %v2696 = vunpack.c.h.b16 %v2482
      %v2697 = vunpack.c.l.b16 %v2486
      %v2698 = vunpack.c.l.b16 %v2489
      %v2699 = vunpack.c.h.b16 %v2489
      %v2700 = vunpack.c.l.b16 %v2492
      %v2701 = vunpack.c.l.b16 %v2495
      %v2702 = vunpack.c.h.b16 %v2495
      %v2703 = vunpack.c.l.b16 %v2498
      %v2704 = vunpack.c.l.b16 %v2502
      %v2705 = vunpack.c.h.b16 %v2502
      %v2706 = vunpack.c.l.b16 %v2506
      %v2707 = vunpack.c.l.b16 %v2509
      %v2708 = vunpack.c.h.b16 %v2509
      %v2709 = vunpack.c.l.b16 %v2512
      %v2710 = vunpack.c.l.b16 %v2515
      %v2711 = vunpack.c.h.b16 %v2515
      %v2712 = vunpack.c.l.b16 %v2518
      %v2713 = vunpack.c.l.b16 %v2522
      %v2714 = vunpack.c.h.b16 %v2522
      %v2715 = vunpack.c.l.b16 %v2526
      %v2716 = vunpack.c.l.b16 %v2529
      %v2717 = vunpack.c.h.b16 %v2529
      %v2718 = vunpack.c.l.b16 %v2532
      %v2719 = vunpack.c.l.b16 %v2535
      %v2720 = vunpack.c.h.b16 %v2535
      %v2721 = vunpack.c.l.b16 %v2538
      %v2722 = vunpack.c.l.b16 %v2542
      %v2723 = vunpack.c.h.b16 %v2542
      %v2724 = vunpack.c.l.b16 %v2546
      %v2725 = vunpack.c.l.b16 %v2549
      %v2726 = vunpack.c.h.b16 %v2549
      %v2727 = vunpack.c.l.b16 %v2552
      %v2728 = vunpack.c.l.b16 %v2555
      %v2729 = vunpack.c.h.b16 %v2555
      %v2730 = vunpack.c.l.b16 %v2558
      %v2731 = vunpack.c.l.b16 %v2562
      %v2732 = vunpack.c.h.b16 %v2562
      %v2733 = vunpack.c.l.b16 %v2566
      %v2734 = vunpack.c.l.b16 %v2569
      %v2735 = vunpack.c.h.b16 %v2569
      %v2736 = vunpack.c.l.b16 %v2572
      %v2737 = vunpack.c.l.b16 %v2575
      %v2738 = vunpack.c.h.b16 %v2575
      %v2739 = vunpack.c.l.b16 %v2578
      %v2740 = vunpack.c.l.b16 %v2582
      %v2741 = vunpack.c.h.b16 %v2582
      %v2742 = vunpack.c.l.b16 %v2586
      %v2743 = vunpack.c.l.b16 %v2589
      %v2744 = vunpack.c.h.b16 %v2589
      %v2745 = vunpack.c.l.b16 %v2592
      %v2746 = vunpack.c.l.b16 %v2595
      %v2747 = vunpack.c.h.b16 %v2595
      %v2748 = vunpack.c.l.b16 %v2598
      %v2749 = vunpack.c.l.b16 %v2602
      %v2750 = vunpack.c.h.b16 %v2602
      %v2751 = vunpack.c.l.b16 %v2606
      %v2752 = vunpack.c.l.b16 %v2609
      %v2753 = vunpack.c.h.b16 %v2609
      %v2754 = vunpack.c.l.b16 %v2612
      %v2755 = vunpack.c.l.b16 %v2615
      %v2756 = vunpack.c.h.b16 %v2615
      %v2757 = vunpack.c.l.b16 %v2618
      %v2758 = vpack.c.b16 %v2671, %v2668
      %v2759 = vpack.c.b16 %v2672, %v2669
      %v2760 = vpack.c.b16 %v2673, %v2670
      %v2761 = vpack.c.b16 %v2677, %v2674
      %v2762 = vpack.c.b16 %v2678, %v2675
      %v2763 = vpack.c.b16 %v2679, %v2676
      %v2764 = vpack.c.b16 %v2683, %v2680
      %v2765 = vpack.c.b16 %v2684, %v2681
      %v2766 = vpack.c.b16 %v2685, %v2682
      %v2767 = vpack.c.b16 %v2689, %v2686
      %v2768 = vpack.c.b16 %v2690, %v2687
      %v2769 = vpack.c.b16 %v2691, %v2688
      %v2770 = vpack.c.b16 %v2695, %v2692
      %v2771 = vpack.c.b16 %v2696, %v2693
      %v2772 = vpack.c.b16 %v2697, %v2694
      %v2773 = vpack.c.b16 %v2701, %v2698
      %v2774 = vpack.c.b16 %v2702, %v2699
      %v2775 = vpack.c.b16 %v2703, %v2700
      %v2776 = vpack.c.b16 %v2707, %v2704
      %v2777 = vpack.c.b16 %v2708, %v2705
      %v2778 = vpack.c.b16 %v2709, %v2706
      %v2779 = vpack.c.b16 %v2713, %v2710
      %v2780 = vpack.c.b16 %v2714, %v2711
      %v2781 = vpack.c.b16 %v2715, %v2712
      %v2782 = vpack.c.b16 %v2719, %v2716
      %v2783 = vpack.c.b16 %v2720, %v2717
      %v2784 = vpack.c.b16 %v2721, %v2718
      %v2785 = vpack.c.b16 %v2725, %v2722
      %v2786 = vpack.c.b16 %v2726, %v2723
      %v2787 = vpack.c.b16 %v2727, %v2724
      %v2788 = vpack.c.b16 %v2731, %v2728
      %v2789 = vpack.c.b16 %v2732, %v2729
      %v2790 = vpack.c.b16 %v2733, %v2730
      %v2791 = vpack.c.b16 %v2737, %v2734
      %v2792 = vpack.c.b16 %v2738, %v2735
      %v2793 = vpack.c.b16 %v2739, %v2736
      %v2794 = vpack.c.b16 %v2743, %v2740
      %v2795 = vpack.c.b16 %v2744, %v2741
      %v2796 = vpack.c.b16 %v2745, %v2742
      %v2797 = vpack.c.b16 %v2749, %v2746
      %v2798 = vpack.c.b16 %v2750, %v2747
      %v2799 = vpack.c.b16 %v2751, %v2748
      %v2800 = vpack.c.b16 %v2755, %v2752
      %v2801 = vpack.c.b16 %v2756, %v2753
      %v2802 = vpack.c.b16 %v2757, %v2754
      %v2896 = vunpack.c.l.b16 %v2620
      %v2897 = vunpack.c.l.b16 %v2621
      %v2898 = vunpack.c.l.b16 %v2622
      %v2899 = vunpack.c.l.b16 %v2623
      %v2900 = vunpack.c.l.b16 %v2624
      %v2901 = vunpack.c.l.b16 %v2625
      %v2902 = vunpack.c.l.b16 %v2626
      %v2903 = vunpack.c.l.b16 %v2627
      %v2904 = vunpack.c.l.b16 %v2628
      %v2905 = vunpack.c.l.b16 %v2629
      %v2906 = vunpack.c.l.b16 %v2630
      %v2907 = vunpack.c.l.b16 %v2631
      %v2908 = vunpack.c.l.b16 %v2632
      %v2909 = vunpack.c.l.b16 %v2633
      %v2910 = vunpack.c.l.b16 %v2634
      %v2911 = vunpack.c.l.b16 %v2635
      %v2912 = vunpack.c.l.b16 %v2636
      %v2913 = vunpack.c.l.b16 %v2637
      %v2914 = vunpack.c.l.b16 %v2638
      %v2915 = vunpack.c.l.b16 %v2639
      %v2916 = vunpack.c.l.b16 %v2640
      %v2917 = vunpack.c.l.b16 %v2641
      %v2918 = vunpack.c.l.b16 %v2642
      %v2919 = vunpack.c.l.b16 %v2643
      %v2920 = vunpack.c.l.b16 %v2644
      %v2921 = vunpack.c.l.b16 %v2645
      %v2922 = vunpack.c.l.b16 %v2646
      %v2923 = vunpack.c.l.b16 %v2647
      %v2924 = vunpack.c.l.b16 %v2648
      %v2925 = vunpack.c.l.b16 %v2649
      %v2926 = vunpack.c.l.b16 %v2650
      %v2927 = vunpack.c.l.b16 %v2651
      %v2928 = vunpack.c.l.b16 %v2652
      %v2929 = vunpack.c.l.b16 %v2653
      %v2930 = vunpack.c.l.b16 %v2654
      %v2931 = vunpack.c.l.b16 %v2655
      %v2932 = vunpack.c.l.b16 %v2656
      %v2933 = vunpack.c.l.b16 %v2657
      %v2934 = vunpack.c.l.b16 %v2658
      %v2935 = vunpack.c.l.b16 %v2659
      %v2936 = vunpack.c.l.b16 %v2660
      %v2937 = vunpack.c.l.b16 %v2661
      %v2938 = vunpack.c.l.b16 %v2662
      %v2939 = vunpack.c.l.b16 %v2663
      %v2940 = vunpack.c.l.b16 %v2664
      %v2941 = vunpack.c.l.b16 %v2665
      %v2942 = vunpack.c.l.b16 %v2666
      %v2943 = vunpack.c.l.b16 %v2667
      %v2944 = vpack.c.b16 %v2897, %v2896
      %v2945 = vpack.c.b16 %v2899, %v2898
      %v2946 = vpack.c.b16 %v2901, %v2900
      %v2947 = vpack.c.b16 %v2903, %v2902
      %v2948 = vpack.c.b16 %v2905, %v2904
      %v2949 = vpack.c.b16 %v2907, %v2906
      %v2950 = vpack.c.b16 %v2909, %v2908
      %v2951 = vpack.c.b16 %v2911, %v2910
      %v2952 = vpack.c.b16 %v2913, %v2912
      %v2953 = vpack.c.b16 %v2915, %v2914
      %v2954 = vpack.c.b16 %v2917, %v2916
      %v2955 = vpack.c.b16 %v2919, %v2918
      %v2956 = vpack.c.b16 %v2921, %v2920
      %v2957 = vpack.c.b16 %v2923, %v2922
      %v2958 = vpack.c.b16 %v2925, %v2924
      %v2959 = vpack.c.b16 %v2927, %v2926
      %v2960 = vpack.c.b16 %v2929, %v2928
      %v2961 = vpack.c.b16 %v2931, %v2930
      %v2962 = vpack.c.b16 %v2933, %v2932
      %v2963 = vpack.c.b16 %v2935, %v2934
      %v2964 = vpack.c.b16 %v2937, %v2936
      %v2965 = vpack.c.b16 %v2939, %v2938
      %v2966 = vpack.c.b16 %v2941, %v2940
      %v2967 = vpack.c.b16 %v2943, %v2942
      %2992 = vmatprep.subr.bf16.mxu0 0
      %2993 = vmatpush1.bf16.msra.mxu0 %v2944
      %2994 = vmatprep.subr.bf16.mxu0 0
      %2995 = vmatpush1.bf16.msra.mxu0 %v2945
      %2996 = vmatprep.subr.bf16.mxu0 0
      %2997 = vmatpush1.bf16.msra.mxu0 %v2946
      %2998 = vmatprep.subr.bf16.mxu0 0
      %2999 = vmatpush1.bf16.msra.mxu0 %v2947
      %3000 = vmatprep.subr.bf16.mxu0 0
      %3001 = vmatpush1.bf16.msra.mxu0 %v2948
      %3002 = vmatprep.subr.bf16.mxu0 0
      %3003 = vmatpush1.bf16.msra.mxu0 %v2949
      %3004 = vmatprep.subr.bf16.mxu0 0
      %3005 = vmatpush1.bf16.msra.mxu0 %v2950
      %3006 = vmatprep.subr.bf16.mxu0 0
      %3007 = vmatpush1.bf16.msra.mxu0 %v2951
      %3008 = vmatprep.subr.bf16.mxu0 0
      %3009 = vmatpush1.bf16.msra.mxu0 %v2952
      %3010 = vmatprep.subr.bf16.mxu0 0
      %3011 = vmatpush1.bf16.msra.mxu0 %v2953
      %3012 = vmatprep.subr.bf16.mxu0 0
      %3013 = vmatpush1.bf16.msra.mxu0 %v2954
      %3014 = vmatprep.subr.bf16.mxu0 0
      %3015 = vmatpush1.bf16.msra.mxu0 %v2955
      %3016 = vmatprep.subr.bf16.mxu0 0
      %3017 = vmatpush1.bf16.msra.mxu0 %v2956
      %3018 = vmatprep.subr.bf16.mxu0 0
      %3019 = vmatpush1.bf16.msra.mxu0 %v2957
      %3020 = vmatprep.subr.bf16.mxu0 0
      %3021 = vmatpush1.bf16.msra.mxu0 %v2958
      %3022 = vmatprep.subr.bf16.mxu0 0
      %3023 = vmatpush1.bf16.msra.mxu0 %v2959
      %3024 = vmatprep.mubr.bf16.mxu0 %v2759
      %3025 = vmatmul.mubr.bf16.gmra.mrb[0].mxu0 %v2758
      %v3026 = vpop.f32.mrb[0].mxu0
      %v3027 = vadd.f32 0.0, %v3026
      %v3028 = vpop.f32.mrb[0].mxu0
      %v3029 = vpop.f32.mrb[0].mxu0
      %v3030 = vadd.f32 0.0, %v3029
      %v3031 = vpop.f32.mrb[0].mxu0
      %3032 = vmatprep.mubr.bf16.mxu0 %v2762
      %3033 = vmatmul.mubr.bf16.gmra.mrb[0].mxu0 %v2761
      %v3034 = vpop.f32.mrb[0].mxu0
      %v3035 = vadd.f32 0.0, %v3034
      %v3036 = vpop.f32.mrb[0].mxu0
      %v3037 = vpop.f32.mrb[0].mxu0
      %v3038 = vadd.f32 0.0, %v3037
      %v3039 = vpop.f32.mrb[0].mxu0
      %3040 = vmatprep.mubr.bf16.mxu0 %v2765
      %3041 = vmatmul.mubr.bf16.gmra.mrb[0].mxu0 %v2764
      %v3042 = vpop.f32.mrb[0].mxu0
      %v3043 = vadd.f32 0.0, %v3042
      %v3044 = vpop.f32.mrb[0].mxu0
      %v3045 = vpop.f32.mrb[0].mxu0
      %v3046 = vadd.f32 0.0, %v3045
      %v3047 = vpop.f32.mrb[0].mxu0
      %3048 = vmatprep.mubr.bf16.mxu0 %v2768
      %3049 = vmatmul.mubr.bf16.gmra.mrb[0].mxu0 %v2767
      %v3050 = vpop.f32.mrb[0].mxu0
      %v3051 = vadd.f32 0.0, %v3050
      %v3052 = vpop.f32.mrb[0].mxu0
      %v3053 = vpop.f32.mrb[0].mxu0
      %v3054 = vadd.f32 0.0, %v3053
      %v3055 = vpop.f32.mrb[0].mxu0
      %3056 = vmatprep.mubr.bf16.mxu0 %v2771
      %3057 = vmatmul.mubr.bf16.gmra.mrb[0].mxu0 %v2770
      %v3058 = vpop.f32.mrb[0].mxu0
      %v3059 = vadd.f32 0.0, %v3058
      %v3060 = vpop.f32.mrb[0].mxu0
      %v3061 = vpop.f32.mrb[0].mxu0
      %v3062 = vadd.f32 0.0, %v3061
      %v3063 = vpop.f32.mrb[0].mxu0
      %3064 = vmatprep.mubr.bf16.mxu0 %v2774
      %3065 = vmatmul.mubr.bf16.gmra.mrb[0].mxu0 %v2773
      %v3066 = vpop.f32.mrb[0].mxu0
      %v3067 = vadd.f32 0.0, %v3066
      %v3068 = vpop.f32.mrb[0].mxu0
      %v3069 = vpop.f32.mrb[0].mxu0
      %v3070 = vadd.f32 0.0, %v3069
      %v3071 = vpop.f32.mrb[0].mxu0
      %3072 = vmatprep.mubr.bf16.mxu0 %v2777
      %3073 = vmatmul.mubr.bf16.gmra.mrb[0].mxu0 %v2776
      %v3074 = vpop.f32.mrb[0].mxu0
      %v3075 = vadd.f32 0.0, %v3074
      %v3076 = vpop.f32.mrb[0].mxu0
      %v3077 = vpop.f32.mrb[0].mxu0
      %v3078 = vadd.f32 0.0, %v3077
      %v3079 = vpop.f32.mrb[0].mxu0
      %3080 = vmatprep.mubr.bf16.mxu0 %v2780
      %3081 = vmatmul.mubr.bf16.gmra.mrb[0].mxu0 %v2779
      %v3082 = vpop.f32.mrb[0].mxu0
      %v3083 = vadd.f32 0.0, %v3082
      %v3084 = vpop.f32.mrb[0].mxu0
      %v3085 = vpop.f32.mrb[0].mxu0
      %v3086 = vadd.f32 0.0, %v3085
      %v3087 = vpop.f32.mrb[0].mxu0
      %3088 = vmatprep.mubr.bf16.mxu0 %v2783
      %3089 = vmatmul.mubr.bf16.gmra.mrb[0].mxu0 %v2782
      %v3090 = vpop.f32.mrb[0].mxu0
      %v3091 = vadd.f32 0.0, %v3090
      %v3092 = vpop.f32.mrb[0].mxu0
      %v3093 = vpop.f32.mrb[0].mxu0
      %v3094 = vadd.f32 0.0, %v3093
      %v3095 = vpop.f32.mrb[0].mxu0
      %3096 = vmatprep.mubr.bf16.mxu0 %v2786
      %3097 = vmatmul.mubr.bf16.gmra.mrb[0].mxu0 %v2785
      %v3098 = vpop.f32.mrb[0].mxu0
      %v3099 = vadd.f32 0.0, %v3098
      %v3100 = vpop.f32.mrb[0].mxu0
      %v3101 = vpop.f32.mrb[0].mxu0
      %v3102 = vadd.f32 0.0, %v3101
      %v3103 = vpop.f32.mrb[0].mxu0
      %3104 = vmatprep.mubr.bf16.mxu0 %v2789
      %3105 = vmatmul.mubr.bf16.gmra.mrb[0].mxu0 %v2788
      %v3106 = vpop.f32.mrb[0].mxu0
      %v3107 = vadd.f32 0.0, %v3106
      %v3108 = vpop.f32.mrb[0].mxu0
      %v3109 = vpop.f32.mrb[0].mxu0
      %v3110 = vadd.f32 0.0, %v3109
      %v3111 = vpop.f32.mrb[0].mxu0
      %3112 = vmatprep.mubr.bf16.mxu0 %v2792
      %3113 = vmatmul.mubr.bf16.gmra.mrb[0].mxu0 %v2791
      %v3114 = vpop.f32.mrb[0].mxu0
      %v3115 = vadd.f32 0.0, %v3114
      %v3116 = vpop.f32.mrb[0].mxu0
      %v3117 = vpop.f32.mrb[0].mxu0
      %v3118 = vadd.f32 0.0, %v3117
      %v3119 = vpop.f32.mrb[0].mxu0
      %3120 = vmatprep.mubr.bf16.mxu0 %v2795
      %3121 = vmatmul.mubr.bf16.gmra.mrb[0].mxu0 %v2794
      %v3122 = vpop.f32.mrb[0].mxu0
      %v3123 = vadd.f32 0.0, %v3122
      %v3124 = vpop.f32.mrb[0].mxu0
      %v3125 = vpop.f32.mrb[0].mxu0
      %v3126 = vadd.f32 0.0, %v3125
      %v3127 = vpop.f32.mrb[0].mxu0
      %3128 = vmatprep.mubr.bf16.mxu0 %v2798
      %3129 = vmatmul.mubr.bf16.gmra.mrb[0].mxu0 %v2797
      %v3130 = vpop.f32.mrb[0].mxu0
      %v3131 = vadd.f32 0.0, %v3130
      %v3132 = vpop.f32.mrb[0].mxu0
      %v3133 = vpop.f32.mrb[0].mxu0
      %v3134 = vadd.f32 0.0, %v3133
      %v3135 = vpop.f32.mrb[0].mxu0
      %3136 = vmatprep.mubr.bf16.mxu0 %v2801
      %3137 = vmatmul.mubr.bf16.gmra.mrb[0].mxu0 %v2800
      %v3138 = vpop.f32.mrb[0].mxu0
      %v3139 = vadd.f32 0.0, %v3138
      %v3140 = vpop.f32.mrb[0].mxu0
      %v3141 = vpop.f32.mrb[0].mxu0
      %v3142 = vadd.f32 0.0, %v3141
      %v3143 = vpop.f32.mrb[0].mxu0
      %3144 = vdwg.mxu0
      %3145 = vmatprep.subr.bf16.mxu0 0
      %3146 = vmatpush1.bf16.msra.mxu0 %v2960
      %3147 = vmatprep.subr.bf16.mxu0 0
      %3148 = vmatpush1.bf16.msra.mxu0 %v2961
      %3149 = vmatprep.subr.bf16.mxu0 0
      %3150 = vmatpush1.bf16.msra.mxu0 %v2962
      %3151 = vmatprep.subr.bf16.mxu0 0
      %3152 = vmatpush1.bf16.msra.mxu0 %v2963
      %3153 = vmatprep.subr.bf16.mxu0 0
      %3154 = vmatpush1.bf16.msra.mxu0 %v2964
      %3155 = vmatprep.subr.bf16.mxu0 0
      %3156 = vmatpush1.bf16.msra.mxu0 %v2965
      %3157 = vmatprep.subr.bf16.mxu0 0
      %3158 = vmatpush1.bf16.msra.mxu0 %v2966
      %3159 = vmatprep.subr.bf16.mxu0 0
      %3160 = vmatpush1.bf16.msra.mxu0 %v2967
      %3161 = vmatprep.subr.bf16.mxu0 0
      %3162 = vmatpush1.bf16.msra.mxu0 0
      %3163 = vmatprep.subr.bf16.mxu0 0
      %3164 = vmatpush1.bf16.msra.mxu0 0
      %3165 = vmatprep.subr.bf16.mxu0 0
      %3166 = vmatpush1.bf16.msra.mxu0 0
      %3167 = vmatprep.subr.bf16.mxu0 0
      %3168 = vmatpush1.bf16.msra.mxu0 0
      %3169 = vmatprep.subr.bf16.mxu0 0
      %3170 = vmatpush1.bf16.msra.mxu0 0
      %3171 = vmatprep.subr.bf16.mxu0 0
      %3172 = vmatpush1.bf16.msra.mxu0 0
      %3173 = vmatprep.subr.bf16.mxu0 0
      %3174 = vmatpush1.bf16.msra.mxu0 0
      %3175 = vmatprep.subr.bf16.mxu0 0
      %3176 = vmatpush1.bf16.msra.mxu0 0
      %3177 = vmatprep.mubr.bf16.mxu0 0
      %3178 = vmatmul.mubr.bf16.gmra.mrb[0].mxu0 %v2760
      %v3179 = vpop.f32.mrb[0].mxu0
      %v3180 = vadd.f32 %v3027, %v3179
      %v3181 = vpop.f32.mrb[0].mxu0
      %v3182 = vpop.f32.mrb[0].mxu0
      %v3183 = vadd.f32 %v3030, %v3182
      %v3184 = vpop.f32.mrb[0].mxu0
      %3185 = vmatprep.mubr.bf16.mxu0 0
      %3186 = vmatmul.mubr.bf16.gmra.mrb[0].mxu0 %v2763
      %v3187 = vpop.f32.mrb[0].mxu0
      %v3188 = vadd.f32 %v3035, %v3187
      %v3189 = vpop.f32.mrb[0].mxu0
      %v3190 = vpop.f32.mrb[0].mxu0
      %v3191 = vadd.f32 %v3038, %v3190
      %v3192 = vpop.f32.mrb[0].mxu0
      %3193 = vmatprep.mubr.bf16.mxu0 0
      %3194 = vmatmul.mubr.bf16.gmra.mrb[0].mxu0 %v2766
      %v3195 = vpop.f32.mrb[0].mxu0
      %v3196 = vadd.f32 %v3043, %v3195
      %v3197 = vpop.f32.mrb[0].mxu0
      %v3198 = vpop.f32.mrb[0].mxu0
      %v3199 = vadd.f32 %v3046, %v3198
      %v3200 = vpop.f32.mrb[0].mxu0
      %3201 = vmatprep.mubr.bf16.mxu0 0
      %3202 = vmatmul.mubr.bf16.gmra.mrb[0].mxu0 %v2769
      %v3203 = vpop.f32.mrb[0].mxu0
      %v3204 = vadd.f32 %v3051, %v3203
      %v3205 = vpop.f32.mrb[0].mxu0
      %v3206 = vpop.f32.mrb[0].mxu0
      %v3207 = vadd.f32 %v3054, %v3206
      %v3208 = vpop.f32.mrb[0].mxu0
      %3209 = vmatprep.mubr.bf16.mxu0 0
      %3210 = vmatmul.mubr.bf16.gmra.mrb[0].mxu0 %v2772
      %v3211 = vpop.f32.mrb[0].mxu0
      %v3212 = vadd.f32 %v3059, %v3211
      %v3213 = vpop.f32.mrb[0].mxu0
      %v3214 = vpop.f32.mrb[0].mxu0
      %v3215 = vadd.f32 %v3062, %v3214
      %v3216 = vpop.f32.mrb[0].mxu0
      %3217 = vmatprep.mubr.bf16.mxu0 0
      %3218 = vmatmul.mubr.bf16.gmra.mrb[0].mxu0 %v2775
      %v3219 = vpop.f32.mrb[0].mxu0
      %v3220 = vadd.f32 %v3067, %v3219
      %v3221 = vpop.f32.mrb[0].mxu0
      %v3222 = vpop.f32.mrb[0].mxu0
      %v3223 = vadd.f32 %v3070, %v3222
      %v3224 = vpop.f32.mrb[0].mxu0
      %3225 = vmatprep.mubr.bf16.mxu0 0
      %3226 = vmatmul.mubr.bf16.gmra.mrb[0].mxu0 %v2778
      %v3227 = vpop.f32.mrb[0].mxu0
      %v3228 = vadd.f32 %v3075, %v3227
      %v3229 = vpop.f32.mrb[0].mxu0
      %v3230 = vpop.f32.mrb[0].mxu0
      %v3231 = vadd.f32 %v3078, %v3230
      %v3232 = vpop.f32.mrb[0].mxu0
      %3233 = vmatprep.mubr.bf16.mxu0 0
      %3234 = vmatmul.mubr.bf16.gmra.mrb[0].mxu0 %v2781
      %v3235 = vpop.f32.mrb[0].mxu0
      %v3236 = vadd.f32 %v3083, %v3235
      %v3237 = vpop.f32.mrb[0].mxu0
      %v3238 = vpop.f32.mrb[0].mxu0
      %v3239 = vadd.f32 %v3086, %v3238
      %v3240 = vpop.f32.mrb[0].mxu0
      %3241 = vmatprep.mubr.bf16.mxu0 0
      %3242 = vmatmul.mubr.bf16.gmra.mrb[0].mxu0 %v2784
      %v3243 = vpop.f32.mrb[0].mxu0
      %v3244 = vadd.f32 %v3091, %v3243
      %v3245 = vpop.f32.mrb[0].mxu0
      %v3246 = vpop.f32.mrb[0].mxu0
      %v3247 = vadd.f32 %v3094, %v3246
      %v3248 = vpop.f32.mrb[0].mxu0
      %3249 = vmatprep.mubr.bf16.mxu0 0
      %3250 = vmatmul.mubr.bf16.gmra.mrb[0].mxu0 %v2787
      %v3251 = vpop.f32.mrb[0].mxu0
      %v3252 = vadd.f32 %v3099, %v3251
      %v3253 = vpop.f32.mrb[0].mxu0
      %v3254 = vpop.f32.mrb[0].mxu0
      %v3255 = vadd.f32 %v3102, %v3254
      %v3256 = vpop.f32.mrb[0].mxu0
      %3257 = vmatprep.mubr.bf16.mxu0 0
      %3258 = vmatmul.mubr.bf16.gmra.mrb[0].mxu0 %v2790
      %v3259 = vpop.f32.mrb[0].mxu0
      %v3260 = vadd.f32 %v3107, %v3259
      %v3261 = vpop.f32.mrb[0].mxu0
      %v3262 = vpop.f32.mrb[0].mxu0
      %v3263 = vadd.f32 %v3110, %v3262
      %v3264 = vpop.f32.mrb[0].mxu0
      %3265 = vmatprep.mubr.bf16.mxu0 0
      %3266 = vmatmul.mubr.bf16.gmra.mrb[0].mxu0 %v2793
      %v3267 = vpop.f32.mrb[0].mxu0
      %v3268 = vadd.f32 %v3115, %v3267
      %v3269 = vpop.f32.mrb[0].mxu0
      %v3270 = vpop.f32.mrb[0].mxu0
      %v3271 = vadd.f32 %v3118, %v3270
      %v3272 = vpop.f32.mrb[0].mxu0
      %3273 = vmatprep.mubr.bf16.mxu0 0
      %3274 = vmatmul.mubr.bf16.gmra.mrb[0].mxu0 %v2796
      %v3275 = vpop.f32.mrb[0].mxu0
      %v3276 = vadd.f32 %v3123, %v3275
      %v3277 = vpop.f32.mrb[0].mxu0
      %v3278 = vpop.f32.mrb[0].mxu0
      %v3279 = vadd.f32 %v3126, %v3278
      %v3280 = vpop.f32.mrb[0].mxu0
      %3281 = vmatprep.mubr.bf16.mxu0 0
      %3282 = vmatmul.mubr.bf16.gmra.mrb[0].mxu0 %v2799
      %v3283 = vpop.f32.mrb[0].mxu0
      %v3284 = vadd.f32 %v3131, %v3283
      %v3285 = vpop.f32.mrb[0].mxu0
      %v3286 = vpop.f32.mrb[0].mxu0
      %v3287 = vadd.f32 %v3134, %v3286
      %v3288 = vpop.f32.mrb[0].mxu0
      %3289 = vmatprep.mubr.bf16.mxu0 0
      %3290 = vmatmul.mubr.bf16.gmra.mrb[0].mxu0 %v2802
      %v3291 = vpop.f32.mrb[0].mxu0
      %v3292 = vadd.f32 %v3139, %v3291
      %v3293 = vpop.f32.mrb[0].mxu0
      %v3294 = vpop.f32.mrb[0].mxu0
      %v3295 = vadd.f32 %v3142, %v3294
      %v3296 = vpop.f32.mrb[0].mxu0
      %3297 = vdwg.mxu0
      %v3298 = vadd.f32 %v2298, %v3180
      %v3299 = vadd.f32 %v2301, %v3183
      %v3300 = vadd.f32 %v2306, %v3188
      %v3301 = vadd.f32 %v2309, %v3191
      %v3302 = vadd.f32 %v2314, %v3196
      %v3303 = vadd.f32 %v2317, %v3199
      %v3304 = vadd.f32 %v2322, %v3204
      %v3305 = vadd.f32 %v2325, %v3207
      %v3306 = vadd.f32 %v2330, %v3212
      %v3307 = vadd.f32 %v2333, %v3215
      %v3308 = vadd.f32 %v2338, %v3220
      %v3309 = vadd.f32 %v2341, %v3223
      %v3310 = vadd.f32 %v2346, %v3228
      %v3311 = vadd.f32 %v2349, %v3231
      %v3312 = vadd.f32 %v2354, %v3236
      %v3313 = vadd.f32 %v2357, %v3239
      %v3314 = vadd.f32 %v2362, %v3244
      %v3315 = vadd.f32 %v2365, %v3247
      %v3316 = vadd.f32 %v2370, %v3252
      %v3317 = vadd.f32 %v2373, %v3255
      %v3318 = vadd.f32 %v2378, %v3260
      %v3319 = vadd.f32 %v2381, %v3263
      %v3320 = vadd.f32 %v2386, %v3268
      %v3321 = vadd.f32 %v2389, %v3271
      %v3322 = vadd.f32 %v2394, %v3276
      %v3323 = vadd.f32 %v2397, %v3279
      %v3324 = vadd.f32 %v2402, %v3284
      %v3325 = vadd.f32 %v2405, %v3287
      %v3326 = vadd.f32 %v2410, %v3292
      %v3327 = vadd.f32 %v2413, %v3295
      %v3328 = vld [vmem:[%s2] sm:$0x1]
      %v3330 = vlaneseq
      %v3331 = vshrl.u32 %v3330, 7
      %v3332 = vsub.s32 0, %v3331
      %v3333 = vrot.slane %v3328, %v3332
      %v3335 = vadd.f32 %v3298, %v3333
      %v3336 = vadd.f32 %v3299, %v3333
      %v3337 = vadd.f32 %v3300, %v3333
      %v3338 = vadd.f32 %v3301, %v3333
      %v3339 = vadd.f32 %v3302, %v3333
      %v3340 = vadd.f32 %v3303, %v3333
      %v3341 = vadd.f32 %v3304, %v3333
      %v3342 = vadd.f32 %v3305, %v3333
      %v3343 = vadd.f32 %v3306, %v3333
      %v3344 = vadd.f32 %v3307, %v3333
      %v3345 = vadd.f32 %v3308, %v3333
      %v3346 = vadd.f32 %v3309, %v3333
      %v3347 = vadd.f32 %v3310, %v3333
      %v3348 = vadd.f32 %v3311, %v3333
      %v3349 = vadd.f32 %v3312, %v3333
      %v3350 = vadd.f32 %v3313, %v3333
      %v3351 = vadd.f32 %v3314, %v3333
      %v3352 = vadd.f32 %v3315, %v3333
      %v3353 = vadd.f32 %v3316, %v3333
      %v3354 = vadd.f32 %v3317, %v3333
      %v3355 = vadd.f32 %v3318, %v3333
      %v3356 = vadd.f32 %v3319, %v3333
      %v3357 = vadd.f32 %v3320, %v3333
      %v3358 = vadd.f32 %v3321, %v3333
      %v3359 = vadd.f32 %v3322, %v3333
      %v3360 = vadd.f32 %v3323, %v3333
      %v3361 = vadd.f32 %v3324, %v3333
      %v3362 = vadd.f32 %v3325, %v3333
      %v3363 = vadd.f32 %v3326, %v3333
      %v3364 = vadd.f32 %v3327, %v3333
      %v3365 = vmax.f32 %v3335, 0.0
      %v3366 = vmax.f32 %v3336, 0.0
      %v3367 = vmax.f32 %v3337, 0.0
      %v3368 = vmax.f32 %v3338, 0.0
      %v3369 = vmax.f32 %v3339, 0.0
      %v3370 = vmax.f32 %v3340, 0.0
      %v3371 = vmax.f32 %v3341, 0.0
      %v3372 = vmax.f32 %v3342, 0.0
      %v3373 = vmax.f32 %v3343, 0.0
      %v3374 = vmax.f32 %v3344, 0.0
      %v3375 = vmax.f32 %v3345, 0.0
      %v3376 = vmax.f32 %v3346, 0.0
      %v3377 = vmax.f32 %v3347, 0.0
      %v3378 = vmax.f32 %v3348, 0.0
      %v3379 = vmax.f32 %v3349, 0.0
      %v3380 = vmax.f32 %v3350, 0.0
      %v3381 = vmax.f32 %v3351, 0.0
      %v3382 = vmax.f32 %v3352, 0.0
      %v3383 = vmax.f32 %v3353, 0.0
      %v3384 = vmax.f32 %v3354, 0.0
      %v3385 = vmax.f32 %v3355, 0.0
      %v3386 = vmax.f32 %v3356, 0.0
      %v3387 = vmax.f32 %v3357, 0.0
      %v3388 = vmax.f32 %v3358, 0.0
      %v3389 = vmax.f32 %v3359, 0.0
      %v3390 = vmax.f32 %v3360, 0.0
      %v3391 = vmax.f32 %v3361, 0.0
      %v3392 = vmax.f32 %v3362, 0.0
      %v3393 = vmax.f32 %v3363, 0.0
      %v3394 = vmax.f32 %v3364, 0.0
      %s3395 = ssub.s32 %s265, 1
      %v3396 = vstv %s3395
      %v3397 = vadd.s32 %v3396, 1
      %v3398 = vadd.s32 %v3396, 2
      %v3399 = vadd.s32 %v3396, 3
      %v3400 = vadd.s32 %v3396, 4
      %v3401 = vadd.s32 %v3396, 5
      %v3402 = vadd.s32 %v3396, 6
      %v3403 = vadd.s32 %v3396, 7
      %v3404 = vadd.s32 %v3396, 8
      %v3405 = vadd.s32 %v3396, 9
      %v3406 = vlaneseq
      %v3407 = vshrl.u32 %v3406, 7
      %v3408 = vadd.s32 %v3407, 8
      %v3409 = vadd.s32 %v3407, 16
      %vm3410 = vcmp.ge.s32.totalorder %v3396, 0
      %vm3411 = vcmp.ge.s32.totalorder %v3397, 0
      %vm3412 = vcmp.ge.s32.totalorder %v3398, 0
      %vm3413 = vcmp.ge.s32.totalorder %v3399, 0
      %vm3414 = vcmp.ge.s32.totalorder %v3400, 0
      %vm3415 = vcmp.ge.s32.totalorder %v3401, 0
      %vm3416 = vcmp.ge.s32.totalorder %v3402, 0
      %vm3417 = vcmp.ge.s32.totalorder %v3403, 0
      %vm3418 = vcmp.ge.s32.totalorder %v3404, 0
      %vm3419 = vcmp.ge.s32.totalorder %v3405, 0
      %vm3420 = vcmp.lt.s32.totalorder %v3396, 16
      %vm3421 = vcmp.lt.s32.totalorder %v3397, 16
      %vm3422 = vcmp.lt.s32.totalorder %v3398, 16
      %vm3423 = vcmp.lt.s32.totalorder %v3399, 16
      %vm3424 = vcmp.lt.s32.totalorder %v3400, 16
      %vm3425 = vcmp.lt.s32.totalorder %v3401, 16
      %vm3426 = vcmp.lt.s32.totalorder %v3402, 16
      %vm3427 = vcmp.lt.s32.totalorder %v3403, 16
      %vm3428 = vcmp.lt.s32.totalorder %v3404, 16
      %vm3429 = vcmp.lt.s32.totalorder %v3405, 16
      %vm3430 = vmand %vm3410, %vm3420
      %vm3431 = vmand %vm3411, %vm3421
      %vm3432 = vmand %vm3412, %vm3422
      %vm3433 = vmand %vm3413, %vm3423
      %vm3434 = vmand %vm3414, %vm3424
      %vm3435 = vmand %vm3415, %vm3425
      %vm3436 = vmand %vm3416, %vm3426
      %vm3437 = vmand %vm3417, %vm3427
      %vm3438 = vmand %vm3418, %vm3428
      %vm3439 = vmand %vm3419, %vm3429
      %vm3440 = vcmp.ge.s32.totalorder %v3407, 1
      %vm3441 = vcmp.ge.s32.totalorder %v3408, 1
      %vm3442 = vcmp.ge.s32.totalorder %v3409, 1
      %vm3443 = vmand %vm3430, %vm3440
      %vm3444 = vmand %vm3430, %vm3441
      %vm3445 = vmand %vm3430, %vm3442
      %vm3446 = vmand %vm3431, %vm3440
      %vm3447 = vmand %vm3431, %vm3441
      %vm3448 = vmand %vm3431, %vm3442
      %vm3449 = vmand %vm3432, %vm3440
      %vm3450 = vmand %vm3432, %vm3441
      %vm3451 = vmand %vm3432, %vm3442
      %vm3452 = vmand %vm3433, %vm3440
      %vm3453 = vmand %vm3433, %vm3441
      %vm3454 = vmand %vm3433, %vm3442
      %vm3455 = vmand %vm3434, %vm3440
      %vm3456 = vmand %vm3434, %vm3441
      %vm3457 = vmand %vm3434, %vm3442
      %vm3458 = vmand %vm3435, %vm3440
      %vm3459 = vmand %vm3435, %vm3441
      %vm3460 = vmand %vm3435, %vm3442
      %vm3461 = vmand %vm3436, %vm3440
      %vm3462 = vmand %vm3436, %vm3441
      %vm3463 = vmand %vm3436, %vm3442
      %vm3464 = vmand %vm3437, %vm3440
      %vm3465 = vmand %vm3437, %vm3441
      %vm3466 = vmand %vm3437, %vm3442
      %vm3467 = vmand %vm3438, %vm3440
      %vm3468 = vmand %vm3438, %vm3441
      %vm3469 = vmand %vm3438, %vm3442
      %vm3470 = vmand %vm3439, %vm3440
      %vm3471 = vmand %vm3439, %vm3441
      %vm3472 = vmand %vm3439, %vm3442
      %vm3473 = vcmp.le.s32.totalorder %v3407, 16
      %vm3474 = vcmp.le.s32.totalorder %v3408, 16
      %vm3475 = vcmp.le.s32.totalorder %v3409, 16
      %vm3476 = vmand %vm3443, %vm3473
      %vm3477 = vmand %vm3444, %vm3474
      %vm3478 = vmand %vm3445, %vm3475
      %vm3479 = vmand %vm3446, %vm3473
      %vm3480 = vmand %vm3447, %vm3474
      %vm3481 = vmand %vm3448, %vm3475
      %vm3482 = vmand %vm3449, %vm3473
      %vm3483 = vmand %vm3450, %vm3474
      %vm3484 = vmand %vm3451, %vm3475
      %vm3485 = vmand %vm3452, %vm3473
      %vm3486 = vmand %vm3453, %vm3474
      %vm3487 = vmand %vm3454, %vm3475
      %vm3488 = vmand %vm3455, %vm3473
      %vm3489 = vmand %vm3456, %vm3474
      %vm3490 = vmand %vm3457, %vm3475
      %vm3491 = vmand %vm3458, %vm3473
      %vm3492 = vmand %vm3459, %vm3474
      %vm3493 = vmand %vm3460, %vm3475
      %vm3494 = vmand %vm3461, %vm3473
      %vm3495 = vmand %vm3462, %vm3474
      %vm3496 = vmand %vm3463, %vm3475
      %vm3497 = vmand %vm3464, %vm3473
      %vm3498 = vmand %vm3465, %vm3474
      %vm3499 = vmand %vm3466, %vm3475
      %vm3500 = vmand %vm3467, %vm3473
      %vm3501 = vmand %vm3468, %vm3474
      %vm3502 = vmand %vm3469, %vm3475
      %vm3503 = vmand %vm3470, %vm3473
      %vm3504 = vmand %vm3471, %vm3474
      %vm3505 = vmand %vm3472, %vm3475
      %v3506 = vsel %vm3476, 1, 0
      %v3507 = vsel %vm3477, 1, 0
      %v3508 = vsel %vm3478, 1, 0
      %v3509 = vsel %vm3479, 1, 0
      %v3510 = vsel %vm3480, 1, 0
      %v3511 = vsel %vm3481, 1, 0
      %v3512 = vsel %vm3482, 1, 0
      %v3513 = vsel %vm3483, 1, 0
      %v3514 = vsel %vm3484, 1, 0
      %v3515 = vsel %vm3485, 1, 0
      %v3516 = vsel %vm3486, 1, 0
      %v3517 = vsel %vm3487, 1, 0
      %v3518 = vsel %vm3488, 1, 0
      %v3519 = vsel %vm3489, 1, 0
      %v3520 = vsel %vm3490, 1, 0
      %v3521 = vsel %vm3491, 1, 0
      %v3522 = vsel %vm3492, 1, 0
      %v3523 = vsel %vm3493, 1, 0
      %v3524 = vsel %vm3494, 1, 0
      %v3525 = vsel %vm3495, 1, 0
      %v3526 = vsel %vm3496, 1, 0
      %v3527 = vsel %vm3497, 1, 0
      %v3528 = vsel %vm3498, 1, 0
      %v3529 = vsel %vm3499, 1, 0
      %v3530 = vsel %vm3500, 1, 0
      %v3531 = vsel %vm3501, 1, 0
      %v3532 = vsel %vm3502, 1, 0
      %v3533 = vsel %vm3503, 1, 0
      %v3534 = vsel %vm3504, 1, 0
      %v3535 = vsel %vm3505, 1, 0
      %vm3536 = vcmp.eq.s32.totalorder %v3506, 1
      %vm3537 = vcmp.eq.s32.totalorder %v3507, 1
      %vm3538 = vcmp.eq.s32.totalorder %v3508, 1
      %vm3539 = vcmp.eq.s32.totalorder %v3509, 1
      %vm3540 = vcmp.eq.s32.totalorder %v3510, 1
      %vm3541 = vcmp.eq.s32.totalorder %v3511, 1
      %vm3542 = vcmp.eq.s32.totalorder %v3512, 1
      %vm3543 = vcmp.eq.s32.totalorder %v3513, 1
      %vm3544 = vcmp.eq.s32.totalorder %v3514, 1
      %vm3545 = vcmp.eq.s32.totalorder %v3515, 1
      %vm3546 = vcmp.eq.s32.totalorder %v3516, 1
      %vm3547 = vcmp.eq.s32.totalorder %v3517, 1
      %vm3548 = vcmp.eq.s32.totalorder %v3518, 1
      %vm3549 = vcmp.eq.s32.totalorder %v3519, 1
      %vm3550 = vcmp.eq.s32.totalorder %v3520, 1
      %vm3551 = vcmp.eq.s32.totalorder %v3521, 1
      %vm3552 = vcmp.eq.s32.totalorder %v3522, 1
      %vm3553 = vcmp.eq.s32.totalorder %v3523, 1
      %vm3554 = vcmp.eq.s32.totalorder %v3524, 1
      %vm3555 = vcmp.eq.s32.totalorder %v3525, 1
      %vm3556 = vcmp.eq.s32.totalorder %v3526, 1
      %vm3557 = vcmp.eq.s32.totalorder %v3527, 1
      %vm3558 = vcmp.eq.s32.totalorder %v3528, 1
      %vm3559 = vcmp.eq.s32.totalorder %v3529, 1
      %vm3560 = vcmp.eq.s32.totalorder %v3530, 1
      %vm3561 = vcmp.eq.s32.totalorder %v3531, 1
      %vm3562 = vcmp.eq.s32.totalorder %v3532, 1
      %vm3563 = vcmp.eq.s32.totalorder %v3533, 1
      %vm3564 = vcmp.eq.s32.totalorder %v3534, 1
      %vm3565 = vcmp.eq.s32.totalorder %v3535, 1
      %v3566 = vsel %vm3536, %v3365, 0.0
      %v3567 = vsel %vm3537, %v3366, 0.0
      %v3568 = vsel %vm3538, %v3367, 0.0
      %v3569 = vsel %vm3539, %v3368, 0.0
      %v3570 = vsel %vm3540, %v3369, 0.0
      %v3571 = vsel %vm3541, %v3370, 0.0
      %v3572 = vsel %vm3542, %v3371, 0.0
      %v3573 = vsel %vm3543, %v3372, 0.0
      %v3574 = vsel %vm3544, %v3373, 0.0
      %v3575 = vsel %vm3545, %v3374, 0.0
      %v3576 = vsel %vm3546, %v3375, 0.0
      %v3577 = vsel %vm3547, %v3376, 0.0
      %v3578 = vsel %vm3548, %v3377, 0.0
      %v3579 = vsel %vm3549, %v3378, 0.0
      %v3580 = vsel %vm3550, %v3379, 0.0
      %v3581 = vsel %vm3551, %v3380, 0.0
      %v3582 = vsel %vm3552, %v3381, 0.0
      %v3583 = vsel %vm3553, %v3382, 0.0
      %v3584 = vsel %vm3554, %v3383, 0.0
      %v3585 = vsel %vm3555, %v3384, 0.0
      %v3586 = vsel %vm3556, %v3385, 0.0
      %v3587 = vsel %vm3557, %v3386, 0.0
      %v3588 = vsel %vm3558, %v3387, 0.0
      %v3589 = vsel %vm3559, %v3388, 0.0
      %v3590 = vsel %vm3560, %v3389, 0.0
      %v3591 = vsel %vm3561, %v3390, 0.0
      %v3592 = vsel %vm3562, %v3391, 0.0
      %v3593 = vsel %vm3563, %v3392, 0.0
      %v3594 = vsel %vm3564, %v3393, 0.0
      %v3595 = vsel %vm3565, %v3394, 0.0
      %v3596 = vpack.c.bf16 %v3567, %v3566
      %v3597 = vpack.c.bf16 %v3568, %v3568
      %v3598 = vpack.c.bf16 %v3570, %v3569
      %v3599 = vpack.c.bf16 %v3571, %v3571
      %v3600 = vpack.c.bf16 %v3573, %v3572
      %v3601 = vpack.c.bf16 %v3574, %v3574
      %v3602 = vpack.c.bf16 %v3576, %v3575
      %v3603 = vpack.c.bf16 %v3577, %v3577
      %v3604 = vpack.c.bf16 %v3579, %v3578
      %v3605 = vpack.c.bf16 %v3580, %v3580
      %v3606 = vpack.c.bf16 %v3582, %v3581
      %v3607 = vpack.c.bf16 %v3583, %v3583
      %v3608 = vpack.c.bf16 %v3585, %v3584
      %v3609 = vpack.c.bf16 %v3586, %v3586
      %v3610 = vpack.c.bf16 %v3588, %v3587
      %v3611 = vpack.c.bf16 %v3589, %v3589
      %v3612 = vpack.c.bf16 %v3591, %v3590
      %v3613 = vpack.c.bf16 %v3592, %v3592
      %v3614 = vpack.c.bf16 %v3594, %v3593
      %v3615 = vpack.c.bf16 %v3595, %v3595
      %v3616 = vld [vmem:[%s3] sm:$0xf]
      %v3617 = vld [vmem:[%s3 + $0x4] sm:$0xf]
      %v3618 = vld [vmem:[%s3 + $0x8] sm:$0xf]
      %v3619 = vld [vmem:[%s3 + $0xc] sm:$0xf]
      %v3620 = vld [vmem:[%s3 + $0x10] sm:$0xf]
      %v3621 = vld [vmem:[%s3 + $0x14] sm:$0xf]
      %v3622 = vld [vmem:[%s3 + $0x18] sm:$0xf]
      %v3623 = vld [vmem:[%s3 + $0x1c] sm:$0xf]
      %v3624 = vld [vmem:[%s3 + $0x20] sm:$0xf]
      %v3625 = vld [vmem:[%s3 + $0x24] sm:$0xf]
      %v3626 = vld [vmem:[%s3 + $0x28] sm:$0xf]
      %v3627 = vld [vmem:[%s3 + $0x2c] sm:$0xf]
      %v3628 = vld [vmem:[%s3 + $0x30] sm:$0xf]
      %v3629 = vld [vmem:[%s3 + $0x34] sm:$0xf]
      %v3630 = vld [vmem:[%s3 + $0x38] sm:$0xf]
      %v3631 = vld [vmem:[%s3 + $0x3c] sm:$0xf]
      %v3632 = vld [vmem:[%s3 + $0x40] sm:$0xf]
      %v3633 = vld [vmem:[%s3 + $0x44] sm:$0xf]
      %v3634 = vld [vmem:[%s3 + $0x48] sm:$0xf]
      %v3635 = vld [vmem:[%s3 + $0x4c] sm:$0xf]
      %v3636 = vld [vmem:[%s3 + $0x50] sm:$0xf]
      %v3637 = vld [vmem:[%s3 + $0x54] sm:$0xf]
      %v3638 = vld [vmem:[%s3 + $0x58] sm:$0xf]
      %v3639 = vld [vmem:[%s3 + $0x5c] sm:$0xf]
      %v3640 = vld [vmem:[%s3 + $0x60] sm:$0xf]
      %v3641 = vld [vmem:[%s3 + $0x64] sm:$0xf]
      %v3642 = vld [vmem:[%s3 + $0x68] sm:$0xf]
      %v3643 = vld [vmem:[%s3 + $0x6c] sm:$0xf]
      %v3644 = vld [vmem:[%s3 + $0x70] sm:$0xf]
      %v3645 = vld [vmem:[%s3 + $0x74] sm:$0xf]
      %v3646 = vld [vmem:[%s3 + $0x78] sm:$0xf]
      %v3647 = vld [vmem:[%s3 + $0x7c] sm:$0xf]
      %v3648 = vld [vmem:[%s3 + $0x80] sm:$0xf]
      %v3649 = vld [vmem:[%s3 + $0x84] sm:$0xf]
      %v3650 = vld [vmem:[%s3 + $0x88] sm:$0xf]
      %v3651 = vld [vmem:[%s3 + $0x8c] sm:$0xf]
      %v3652 = vld [vmem:[%s3 + $0x90] sm:$0xf]
      %v3653 = vld [vmem:[%s3 + $0x94] sm:$0xf]
      %v3654 = vld [vmem:[%s3 + $0x98] sm:$0xf]
      %v3655 = vld [vmem:[%s3 + $0x9c] sm:$0xf]
      %v3656 = vld [vmem:[%s3 + $0xa0] sm:$0xf]
      %v3657 = vld [vmem:[%s3 + $0xa4] sm:$0xf]
      %v3658 = vld [vmem:[%s3 + $0xa8] sm:$0xf]
      %v3659 = vld [vmem:[%s3 + $0xac] sm:$0xf]
      %v3660 = vld [vmem:[%s3 + $0xb0] sm:$0xf]
      %v3661 = vld [vmem:[%s3 + $0xb4] sm:$0xf]
      %v3662 = vld [vmem:[%s3 + $0xb8] sm:$0xf]
      %v3663 = vld [vmem:[%s3 + $0xbc] sm:$0xf]
      %vm3664 = vsmask.f32 7424
      %v3666 = vshrl.u32 %v3596, 16
      %v3668 = vshll.u32 %v3596, 16
      %v3670 = vrot.slane %v3668, 1
      %v3671 = vor.u32 %v3666, %v3670
      %v3673 = vshll.u32 %v3597, 16
      %v3675 = vrot.slane %v3673, 1
      %v3676 = vsel %vm3664, %v3671, %v3675
      %v3678 = vshrl.u32 %v3598, 16
      %v3680 = vshll.u32 %v3598, 16
      %v3682 = vrot.slane %v3680, 1
      %v3683 = vor.u32 %v3678, %v3682
      %v3685 = vshll.u32 %v3599, 16
      %v3687 = vrot.slane %v3685, 1
      %v3688 = vsel %vm3664, %v3683, %v3687
      %v3690 = vshrl.u32 %v3600, 16
      %v3692 = vshll.u32 %v3600, 16
      %v3694 = vrot.slane %v3692, 1
      %v3695 = vor.u32 %v3690, %v3694
      %v3697 = vshll.u32 %v3601, 16
      %v3699 = vrot.slane %v3697, 1
      %v3700 = vsel %vm3664, %v3695, %v3699
      %v3702 = vshrl.u32 %v3602, 16
      %v3704 = vshll.u32 %v3602, 16
      %v3706 = vrot.slane %v3704, 1
      %v3707 = vor.u32 %v3702, %v3706
      %v3709 = vshll.u32 %v3603, 16
      %v3711 = vrot.slane %v3709, 1
      %v3712 = vsel %vm3664, %v3707, %v3711
      %v3714 = vshrl.u32 %v3604, 16
      %v3716 = vshll.u32 %v3604, 16
      %v3718 = vrot.slane %v3716, 1
      %v3719 = vor.u32 %v3714, %v3718
      %v3721 = vshll.u32 %v3605, 16
      %v3723 = vrot.slane %v3721, 1
      %v3724 = vsel %vm3664, %v3719, %v3723
      %v3726 = vshrl.u32 %v3606, 16
      %v3728 = vshll.u32 %v3606, 16
      %v3730 = vrot.slane %v3728, 1
      %v3731 = vor.u32 %v3726, %v3730
      %v3733 = vshll.u32 %v3607, 16
      %v3735 = vrot.slane %v3733, 1
      %v3736 = vsel %vm3664, %v3731, %v3735
      %v3738 = vshrl.u32 %v3608, 16
      %v3740 = vshll.u32 %v3608, 16
      %v3742 = vrot.slane %v3740, 1
      %v3743 = vor.u32 %v3738, %v3742
      %v3745 = vshll.u32 %v3609, 16
      %v3747 = vrot.slane %v3745, 1
      %v3748 = vsel %vm3664, %v3743, %v3747
      %v3750 = vshrl.u32 %v3610, 16
      %v3752 = vshll.u32 %v3610, 16
      %v3754 = vrot.slane %v3752, 1
      %v3755 = vor.u32 %v3750, %v3754
      %v3757 = vshll.u32 %v3611, 16
      %v3759 = vrot.slane %v3757, 1
      %v3760 = vsel %vm3664, %v3755, %v3759
      %v3762 = vshrl.u32 %v3612, 16
      %v3764 = vshll.u32 %v3612, 16
      %v3766 = vrot.slane %v3764, 1
      %v3767 = vor.u32 %v3762, %v3766
      %v3769 = vshll.u32 %v3613, 16
      %v3771 = vrot.slane %v3769, 1
      %v3772 = vsel %vm3664, %v3767, %v3771
      %v3774 = vshrl.u32 %v3614, 16
      %v3776 = vshll.u32 %v3614, 16
      %v3778 = vrot.slane %v3776, 1
      %v3779 = vor.u32 %v3774, %v3778
      %v3781 = vshll.u32 %v3615, 16
      %v3783 = vrot.slane %v3781, 1
      %v3784 = vsel %vm3664, %v3779, %v3783
      %s3795 = scalar_lea.vmem %s3, 192
      %v3796 = vld [vmem:[%s3795] sm:$0xf]
      %v3797 = vld [vmem:[%s3795 + $0x4] sm:$0xf]
      %v3798 = vld [vmem:[%s3795 + $0x8] sm:$0xf]
      %v3799 = vld [vmem:[%s3795 + $0xc] sm:$0xf]
      %v3800 = vld [vmem:[%s3795 + $0x10] sm:$0xf]
      %v3801 = vld [vmem:[%s3795 + $0x14] sm:$0xf]
      %v3802 = vld [vmem:[%s3795 + $0x18] sm:$0xf]
      %v3803 = vld [vmem:[%s3795 + $0x1c] sm:$0xf]
      %v3804 = vld [vmem:[%s3795 + $0x20] sm:$0xf]
      %v3805 = vld [vmem:[%s3795 + $0x24] sm:$0xf]
      %v3806 = vld [vmem:[%s3795 + $0x28] sm:$0xf]
      %v3807 = vld [vmem:[%s3795 + $0x2c] sm:$0xf]
      %v3808 = vld [vmem:[%s3795 + $0x30] sm:$0xf]
      %v3809 = vld [vmem:[%s3795 + $0x34] sm:$0xf]
      %v3810 = vld [vmem:[%s3795 + $0x38] sm:$0xf]
      %v3811 = vld [vmem:[%s3795 + $0x3c] sm:$0xf]
      %v3812 = vld [vmem:[%s3795 + $0x40] sm:$0xf]
      %v3813 = vld [vmem:[%s3795 + $0x44] sm:$0xf]
      %v3814 = vld [vmem:[%s3795 + $0x48] sm:$0xf]
      %v3815 = vld [vmem:[%s3795 + $0x4c] sm:$0xf]
      %v3816 = vld [vmem:[%s3795 + $0x50] sm:$0xf]
      %v3817 = vld [vmem:[%s3795 + $0x54] sm:$0xf]
      %v3818 = vld [vmem:[%s3795 + $0x58] sm:$0xf]
      %v3819 = vld [vmem:[%s3795 + $0x5c] sm:$0xf]
      %v3820 = vld [vmem:[%s3795 + $0x60] sm:$0xf]
      %v3821 = vld [vmem:[%s3795 + $0x64] sm:$0xf]
      %v3822 = vld [vmem:[%s3795 + $0x68] sm:$0xf]
      %v3823 = vld [vmem:[%s3795 + $0x6c] sm:$0xf]
      %v3824 = vld [vmem:[%s3795 + $0x70] sm:$0xf]
      %v3825 = vld [vmem:[%s3795 + $0x74] sm:$0xf]
      %v3826 = vld [vmem:[%s3795 + $0x78] sm:$0xf]
      %v3827 = vld [vmem:[%s3795 + $0x7c] sm:$0xf]
      %v3828 = vld [vmem:[%s3795 + $0x80] sm:$0xf]
      %v3829 = vld [vmem:[%s3795 + $0x84] sm:$0xf]
      %v3830 = vld [vmem:[%s3795 + $0x88] sm:$0xf]
      %v3831 = vld [vmem:[%s3795 + $0x8c] sm:$0xf]
      %v3832 = vld [vmem:[%s3795 + $0x90] sm:$0xf]
      %v3833 = vld [vmem:[%s3795 + $0x94] sm:$0xf]
      %v3834 = vld [vmem:[%s3795 + $0x98] sm:$0xf]
      %v3835 = vld [vmem:[%s3795 + $0x9c] sm:$0xf]
      %v3836 = vld [vmem:[%s3795 + $0xa0] sm:$0xf]
      %v3837 = vld [vmem:[%s3795 + $0xa4] sm:$0xf]
      %v3838 = vld [vmem:[%s3795 + $0xa8] sm:$0xf]
      %v3839 = vld [vmem:[%s3795 + $0xac] sm:$0xf]
      %v3840 = vld [vmem:[%s3795 + $0xb0] sm:$0xf]
      %v3841 = vld [vmem:[%s3795 + $0xb4] sm:$0xf]
      %v3842 = vld [vmem:[%s3795 + $0xb8] sm:$0xf]
      %v3843 = vld [vmem:[%s3795 + $0xbc] sm:$0xf]
      %v3892 = vunpack.c.l.b16 %v3796
      %v3893 = vunpack.c.l.b16 %v3797
      %v3894 = vunpack.c.l.b16 %v3798
      %v3895 = vunpack.c.l.b16 %v3799
      %v3896 = vunpack.c.l.b16 %v3800
      %v3897 = vunpack.c.l.b16 %v3801
      %v3898 = vunpack.c.l.b16 %v3802
      %v3899 = vunpack.c.l.b16 %v3803
      %v3900 = vunpack.c.l.b16 %v3804
      %v3901 = vunpack.c.l.b16 %v3805
      %v3902 = vunpack.c.l.b16 %v3806
      %v3903 = vunpack.c.l.b16 %v3807
      %v3904 = vunpack.c.l.b16 %v3808
      %v3905 = vunpack.c.l.b16 %v3809
      %v3906 = vunpack.c.l.b16 %v3810
      %v3907 = vunpack.c.l.b16 %v3811
      %v3908 = vunpack.c.l.b16 %v3812
      %v3909 = vunpack.c.l.b16 %v3813
      %v3910 = vunpack.c.l.b16 %v3814
      %v3911 = vunpack.c.l.b16 %v3815
      %v3912 = vunpack.c.l.b16 %v3816
      %v3913 = vunpack.c.l.b16 %v3817
      %v3914 = vunpack.c.l.b16 %v3818
      %v3915 = vunpack.c.l.b16 %v3819
      %v3916 = vunpack.c.l.b16 %v3820
      %v3917 = vunpack.c.l.b16 %v3821
      %v3918 = vunpack.c.l.b16 %v3822
      %v3919 = vunpack.c.l.b16 %v3823
      %v3920 = vunpack.c.l.b16 %v3824
      %v3921 = vunpack.c.l.b16 %v3825
      %v3922 = vunpack.c.l.b16 %v3826
      %v3923 = vunpack.c.l.b16 %v3827
      %v3924 = vunpack.c.l.b16 %v3828
      %v3925 = vunpack.c.l.b16 %v3829
      %v3926 = vunpack.c.l.b16 %v3830
      %v3927 = vunpack.c.l.b16 %v3831
      %v3928 = vunpack.c.l.b16 %v3832
      %v3929 = vunpack.c.l.b16 %v3833
      %v3930 = vunpack.c.l.b16 %v3834
      %v3931 = vunpack.c.l.b16 %v3835
      %v3932 = vunpack.c.l.b16 %v3836
      %v3933 = vunpack.c.l.b16 %v3837
      %v3934 = vunpack.c.l.b16 %v3838
      %v3935 = vunpack.c.l.b16 %v3839
      %v3936 = vunpack.c.l.b16 %v3840
      %v3937 = vunpack.c.l.b16 %v3841
      %v3938 = vunpack.c.l.b16 %v3842
      %v3939 = vunpack.c.l.b16 %v3843
      %v3940 = vpack.c.b16 %v3893, %v3892
      %v3941 = vpack.c.b16 %v3895, %v3894
      %v3942 = vpack.c.b16 %v3897, %v3896
      %v3943 = vpack.c.b16 %v3899, %v3898
      %v3944 = vpack.c.b16 %v3901, %v3900
      %v3945 = vpack.c.b16 %v3903, %v3902
      %v3946 = vpack.c.b16 %v3905, %v3904
      %v3947 = vpack.c.b16 %v3907, %v3906
      %v3948 = vpack.c.b16 %v3909, %v3908
      %v3949 = vpack.c.b16 %v3911, %v3910
      %v3950 = vpack.c.b16 %v3913, %v3912
      %v3951 = vpack.c.b16 %v3915, %v3914
      %v3952 = vpack.c.b16 %v3917, %v3916
      %v3953 = vpack.c.b16 %v3919, %v3918
      %v3954 = vpack.c.b16 %v3921, %v3920
      %v3955 = vpack.c.b16 %v3923, %v3922
      %v3956 = vpack.c.b16 %v3925, %v3924
      %v3957 = vpack.c.b16 %v3927, %v3926
      %v3958 = vpack.c.b16 %v3929, %v3928
      %v3959 = vpack.c.b16 %v3931, %v3930
      %v3960 = vpack.c.b16 %v3933, %v3932
      %v3961 = vpack.c.b16 %v3935, %v3934
      %v3962 = vpack.c.b16 %v3937, %v3936
      %v3963 = vpack.c.b16 %v3939, %v3938
      %3988 = vmatprep.subr.bf16.mxu0 0
      %3989 = vmatpush1.bf16.msra.mxu0 %v3940
      %3990 = vmatprep.subr.bf16.mxu0 0
      %3991 = vmatpush1.bf16.msra.mxu0 %v3941
      %3992 = vmatprep.subr.bf16.mxu0 0
      %3993 = vmatpush1.bf16.msra.mxu0 %v3942
      %3994 = vmatprep.subr.bf16.mxu0 0
      %3995 = vmatpush1.bf16.msra.mxu0 %v3943
      %3996 = vmatprep.subr.bf16.mxu0 0
      %3997 = vmatpush1.bf16.msra.mxu0 %v3944
      %3998 = vmatprep.subr.bf16.mxu0 0
      %3999 = vmatpush1.bf16.msra.mxu0 %v3945
      %4000 = vmatprep.subr.bf16.mxu0 0
      %4001 = vmatpush1.bf16.msra.mxu0 %v3946
      %4002 = vmatprep.subr.bf16.mxu0 0
      %4003 = vmatpush1.bf16.msra.mxu0 %v3947
      %4004 = vmatprep.subr.bf16.mxu0 0
      %4005 = vmatpush1.bf16.msra.mxu0 %v3948
      %4006 = vmatprep.subr.bf16.mxu0 0
      %4007 = vmatpush1.bf16.msra.mxu0 %v3949
      %4008 = vmatprep.subr.bf16.mxu0 0
      %4009 = vmatpush1.bf16.msra.mxu0 %v3950
      %4010 = vmatprep.subr.bf16.mxu0 0
      %4011 = vmatpush1.bf16.msra.mxu0 %v3951
      %4012 = vmatprep.subr.bf16.mxu0 0
      %4013 = vmatpush1.bf16.msra.mxu0 %v3952
      %4014 = vmatprep.subr.bf16.mxu0 0
      %4015 = vmatpush1.bf16.msra.mxu0 %v3953
      %4016 = vmatprep.subr.bf16.mxu0 0
      %4017 = vmatpush1.bf16.msra.mxu0 %v3954
      %4018 = vmatprep.subr.bf16.mxu0 0
      %4019 = vmatpush1.bf16.msra.mxu0 %v3955
      %4020 = vmatprep.mubr.bf16.mxu0 %v3688
      %4021 = vmatmul.mubr.bf16.gmra.mrb[0].mxu0 %v3676
      %v4022 = vpop.f32.mrb[0].mxu0
      %v4023 = vadd.f32 0.0, %v4022
      %v4024 = vpop.f32.mrb[0].mxu0
      %v4025 = vpop.f32.mrb[0].mxu0
      %v4026 = vadd.f32 0.0, %v4025
      %v4027 = vpop.f32.mrb[0].mxu0
      %4028 = vmatprep.mubr.bf16.mxu0 %v3700
      %4029 = vmatmul.mubr.bf16.gmra.mrb[0].mxu0 %v3688
      %v4030 = vpop.f32.mrb[0].mxu0
      %v4031 = vadd.f32 0.0, %v4030
      %v4032 = vpop.f32.mrb[0].mxu0
      %v4033 = vpop.f32.mrb[0].mxu0
      %v4034 = vadd.f32 0.0, %v4033
      %v4035 = vpop.f32.mrb[0].mxu0
      %4036 = vmatprep.mubr.bf16.mxu0 %v3712
      %4037 = vmatmul.mubr.bf16.gmra.mrb[0].mxu0 %v3700
      %v4038 = vpop.f32.mrb[0].mxu0
      %v4039 = vadd.f32 0.0, %v4038
      %v4040 = vpop.f32.mrb[0].mxu0
      %v4041 = vpop.f32.mrb[0].mxu0
      %v4042 = vadd.f32 0.0, %v4041
      %v4043 = vpop.f32.mrb[0].mxu0
      %4044 = vmatprep.mubr.bf16.mxu0 %v3724
      %4045 = vmatmul.mubr.bf16.gmra.mrb[0].mxu0 %v3712
      %v4046 = vpop.f32.mrb[0].mxu0
      %v4047 = vadd.f32 0.0, %v4046
      %v4048 = vpop.f32.mrb[0].mxu0
      %v4049 = vpop.f32.mrb[0].mxu0
      %v4050 = vadd.f32 0.0, %v4049
      %v4051 = vpop.f32.mrb[0].mxu0
      %4052 = vmatprep.mubr.bf16.mxu0 %v3736
      %4053 = vmatmul.mubr.bf16.gmra.mrb[0].mxu0 %v3724
      %v4054 = vpop.f32.mrb[0].mxu0
      %v4055 = vadd.f32 0.0, %v4054
      %v4056 = vpop.f32.mrb[0].mxu0
      %v4057 = vpop.f32.mrb[0].mxu0
      %v4058 = vadd.f32 0.0, %v4057
      %v4059 = vpop.f32.mrb[0].mxu0
      %4060 = vmatprep.mubr.bf16.mxu0 %v3748
      %4061 = vmatmul.mubr.bf16.gmra.mrb[0].mxu0 %v3736
      %v4062 = vpop.f32.mrb[0].mxu0
      %v4063 = vadd.f32 0.0, %v4062
      %v4064 = vpop.f32.mrb[0].mxu0
      %v4065 = vpop.f32.mrb[0].mxu0
      %v4066 = vadd.f32 0.0, %v4065
      %v4067 = vpop.f32.mrb[0].mxu0
      %4068 = vmatprep.mubr.bf16.mxu0 %v3760
      %4069 = vmatmul.mubr.bf16.gmra.mrb[0].mxu0 %v3748
      %v4070 = vpop.f32.mrb[0].mxu0
      %v4071 = vadd.f32 0.0, %v4070
      %v4072 = vpop.f32.mrb[0].mxu0
      %v4073 = vpop.f32.mrb[0].mxu0
      %v4074 = vadd.f32 0.0, %v4073
      %v4075 = vpop.f32.mrb[0].mxu0
      %4076 = vmatprep.mubr.bf16.mxu0 %v3772
      %4077 = vmatmul.mubr.bf16.gmra.mrb[0].mxu0 %v3760
      %v4078 = vpop.f32.mrb[0].mxu0
      %v4079 = vadd.f32 0.0, %v4078
      %v4080 = vpop.f32.mrb[0].mxu0
      %v4081 = vpop.f32.mrb[0].mxu0
      %v4082 = vadd.f32 0.0, %v4081
      %v4083 = vpop.f32.mrb[0].mxu0
      %4084 = vdwg.mxu0
      %4085 = vmatprep.subr.bf16.mxu0 0
      %4086 = vmatpush1.bf16.msra.mxu0 %v3956
      %4087 = vmatprep.subr.bf16.mxu0 0
      %4088 = vmatpush1.bf16.msra.mxu0 %v3957
      %4089 = vmatprep.subr.bf16.mxu0 0
      %4090 = vmatpush1.bf16.msra.mxu0 %v3958
      %4091 = vmatprep.subr.bf16.mxu0 0
      %4092 = vmatpush1.bf16.msra.mxu0 %v3959
      %4093 = vmatprep.subr.bf16.mxu0 0
      %4094 = vmatpush1.bf16.msra.mxu0 %v3960
      %4095 = vmatprep.subr.bf16.mxu0 0
      %4096 = vmatpush1.bf16.msra.mxu0 %v3961
      %4097 = vmatprep.subr.bf16.mxu0 0
      %4098 = vmatpush1.bf16.msra.mxu0 %v3962
      %4099 = vmatprep.subr.bf16.mxu0 0
      %4100 = vmatpush1.bf16.msra.mxu0 %v3963
      %4101 = vmatprep.subr.bf16.mxu0 0
      %4102 = vmatpush1.bf16.msra.mxu0 0
      %4103 = vmatprep.subr.bf16.mxu0 0
      %4104 = vmatpush1.bf16.msra.mxu0 0
      %4105 = vmatprep.subr.bf16.mxu0 0
      %4106 = vmatpush1.bf16.msra.mxu0 0
      %4107 = vmatprep.subr.bf16.mxu0 0
      %4108 = vmatpush1.bf16.msra.mxu0 0
      %4109 = vmatprep.subr.bf16.mxu0 0
      %4110 = vmatpush1.bf16.msra.mxu0 0
      %4111 = vmatprep.subr.bf16.mxu0 0
      %4112 = vmatpush1.bf16.msra.mxu0 0
      %4113 = vmatprep.subr.bf16.mxu0 0
      %4114 = vmatpush1.bf16.msra.mxu0 0
      %4115 = vmatprep.subr.bf16.mxu0 0
      %4116 = vmatpush1.bf16.msra.mxu0 0
      %4117 = vmatprep.mubr.bf16.mxu0 0
      %4118 = vmatmul.mubr.bf16.gmra.mrb[0].mxu0 %v3700
      %v4119 = vpop.f32.mrb[0].mxu0
      %v4120 = vadd.f32 %v4023, %v4119
      %v4121 = vpop.f32.mrb[0].mxu0
      %v4122 = vpop.f32.mrb[0].mxu0
      %v4123 = vadd.f32 %v4026, %v4122
      %v4124 = vpop.f32.mrb[0].mxu0
      %4125 = vmatprep.mubr.bf16.mxu0 0
      %4126 = vmatmul.mubr.bf16.gmra.mrb[0].mxu0 %v3712
      %v4127 = vpop.f32.mrb[0].mxu0
      %v4128 = vadd.f32 %v4031, %v4127
      %v4129 = vpop.f32.mrb[0].mxu0
      %v4130 = vpop.f32.mrb[0].mxu0
      %v4131 = vadd.f32 %v4034, %v4130
      %v4132 = vpop.f32.mrb[0].mxu0
      %4133 = vmatprep.mubr.bf16.mxu0 0
      %4134 = vmatmul.mubr.bf16.gmra.mrb[0].mxu0 %v3724
      %v4135 = vpop.f32.mrb[0].mxu0
      %v4136 = vadd.f32 %v4039, %v4135
      %v4137 = vpop.f32.mrb[0].mxu0
      %v4138 = vpop.f32.mrb[0].mxu0
      %v4139 = vadd.f32 %v4042, %v4138
      %v4140 = vpop.f32.mrb[0].mxu0
      %4141 = vmatprep.mubr.bf16.mxu0 0
      %4142 = vmatmul.mubr.bf16.gmra.mrb[0].mxu0 %v3736
      %v4143 = vpop.f32.mrb[0].mxu0
      %v4144 = vadd.f32 %v4047, %v4143
      %v4145 = vpop.f32.mrb[0].mxu0
      %v4146 = vpop.f32.mrb[0].mxu0
      %v4147 = vadd.f32 %v4050, %v4146
      %v4148 = vpop.f32.mrb[0].mxu0
      %4149 = vmatprep.mubr.bf16.mxu0 0
      %4150 = vmatmul.mubr.bf16.gmra.mrb[0].mxu0 %v3748
      %v4151 = vpop.f32.mrb[0].mxu0
      %v4152 = vadd.f32 %v4055, %v4151
      %v4153 = vpop.f32.mrb[0].mxu0
      %v4154 = vpop.f32.mrb[0].mxu0
      %v4155 = vadd.f32 %v4058, %v4154
      %v4156 = vpop.f32.mrb[0].mxu0
      %4157 = vmatprep.mubr.bf16.mxu0 0
      %4158 = vmatmul.mubr.bf16.gmra.mrb[0].mxu0 %v3760
      %v4159 = vpop.f32.mrb[0].mxu0
      %v4160 = vadd.f32 %v4063, %v4159
      %v4161 = vpop.f32.mrb[0].mxu0
      %v4162 = vpop.f32.mrb[0].mxu0
      %v4163 = vadd.f32 %v4066, %v4162
      %v4164 = vpop.f32.mrb[0].mxu0
      %4165 = vmatprep.mubr.bf16.mxu0 0
      %4166 = vmatmul.mubr.bf16.gmra.mrb[0].mxu0 %v3772
      %v4167 = vpop.f32.mrb[0].mxu0
      %v4168 = vadd.f32 %v4071, %v4167
      %v4169 = vpop.f32.mrb[0].mxu0
      %v4170 = vpop.f32.mrb[0].mxu0
      %v4171 = vadd.f32 %v4074, %v4170
      %v4172 = vpop.f32.mrb[0].mxu0
      %4173 = vmatprep.mubr.bf16.mxu0 0
      %4174 = vmatmul.mubr.bf16.gmra.mrb[0].mxu0 %v3784
      %v4175 = vpop.f32.mrb[0].mxu0
      %v4176 = vadd.f32 %v4079, %v4175
      %v4177 = vpop.f32.mrb[0].mxu0
      %v4178 = vpop.f32.mrb[0].mxu0
      %v4179 = vadd.f32 %v4082, %v4178
      %v4180 = vpop.f32.mrb[0].mxu0
      %4181 = vdwg.mxu0
      %v4230 = vunpack.c.l.b16 %v3616
      %v4231 = vunpack.c.l.b16 %v3617
      %v4232 = vunpack.c.l.b16 %v3618
      %v4233 = vunpack.c.l.b16 %v3619
      %v4234 = vunpack.c.l.b16 %v3620
      %v4235 = vunpack.c.l.b16 %v3621
      %v4236 = vunpack.c.l.b16 %v3622
      %v4237 = vunpack.c.l.b16 %v3623
      %v4238 = vunpack.c.l.b16 %v3624
      %v4239 = vunpack.c.l.b16 %v3625
      %v4240 = vunpack.c.l.b16 %v3626
      %v4241 = vunpack.c.l.b16 %v3627
      %v4242 = vunpack.c.l.b16 %v3628
      %v4243 = vunpack.c.l.b16 %v3629
      %v4244 = vunpack.c.l.b16 %v3630
      %v4245 = vunpack.c.l.b16 %v3631
      %v4246 = vunpack.c.l.b16 %v3632
      %v4247 = vunpack.c.l.b16 %v3633
      %v4248 = vunpack.c.l.b16 %v3634
      %v4249 = vunpack.c.l.b16 %v3635
      %v4250 = vunpack.c.l.b16 %v3636
      %v4251 = vunpack.c.l.b16 %v3637
      %v4252 = vunpack.c.l.b16 %v3638
      %v4253 = vunpack.c.l.b16 %v3639
      %v4254 = vunpack.c.l.b16 %v3640
      %v4255 = vunpack.c.l.b16 %v3641
      %v4256 = vunpack.c.l.b16 %v3642
      %v4257 = vunpack.c.l.b16 %v3643
      %v4258 = vunpack.c.l.b16 %v3644
      %v4259 = vunpack.c.l.b16 %v3645
      %v4260 = vunpack.c.l.b16 %v3646
      %v4261 = vunpack.c.l.b16 %v3647
      %v4262 = vunpack.c.l.b16 %v3648
      %v4263 = vunpack.c.l.b16 %v3649
      %v4264 = vunpack.c.l.b16 %v3650
      %v4265 = vunpack.c.l.b16 %v3651
      %v4266 = vunpack.c.l.b16 %v3652
      %v4267 = vunpack.c.l.b16 %v3653
      %v4268 = vunpack.c.l.b16 %v3654
      %v4269 = vunpack.c.l.b16 %v3655
      %v4270 = vunpack.c.l.b16 %v3656
      %v4271 = vunpack.c.l.b16 %v3657
      %v4272 = vunpack.c.l.b16 %v3658
      %v4273 = vunpack.c.l.b16 %v3659
      %v4274 = vunpack.c.l.b16 %v3660
      %v4275 = vunpack.c.l.b16 %v3661
      %v4276 = vunpack.c.l.b16 %v3662
      %v4277 = vunpack.c.l.b16 %v3663
      %v4278 = vpack.c.b16 %v4231, %v4230
      %v4279 = vpack.c.b16 %v4233, %v4232
      %v4280 = vpack.c.b16 %v4235, %v4234
      %v4281 = vpack.c.b16 %v4237, %v4236
      %v4282 = vpack.c.b16 %v4239, %v4238
      %v4283 = vpack.c.b16 %v4241, %v4240
      %v4284 = vpack.c.b16 %v4243, %v4242
      %v4285 = vpack.c.b16 %v4245, %v4244
      %v4286 = vpack.c.b16 %v4247, %v4246
      %v4287 = vpack.c.b16 %v4249, %v4248
      %v4288 = vpack.c.b16 %v4251, %v4250
      %v4289 = vpack.c.b16 %v4253, %v4252
      %v4290 = vpack.c.b16 %v4255, %v4254
      %v4291 = vpack.c.b16 %v4257, %v4256
      %v4292 = vpack.c.b16 %v4259, %v4258
      %v4293 = vpack.c.b16 %v4261, %v4260
      %v4294 = vpack.c.b16 %v4263, %v4262
      %v4295 = vpack.c.b16 %v4265, %v4264
      %v4296 = vpack.c.b16 %v4267, %v4266
      %v4297 = vpack.c.b16 %v4269, %v4268
      %v4298 = vpack.c.b16 %v4271, %v4270
      %v4299 = vpack.c.b16 %v4273, %v4272
      %v4300 = vpack.c.b16 %v4275, %v4274
      %v4301 = vpack.c.b16 %v4277, %v4276
      %4326 = vmatprep.subr.bf16.mxu0 0
      %4327 = vmatpush1.bf16.msra.mxu0 %v4278
      %4328 = vmatprep.subr.bf16.mxu0 0
      %4329 = vmatpush1.bf16.msra.mxu0 %v4279
      %4330 = vmatprep.subr.bf16.mxu0 0
      %4331 = vmatpush1.bf16.msra.mxu0 %v4280
      %4332 = vmatprep.subr.bf16.mxu0 0
      %4333 = vmatpush1.bf16.msra.mxu0 %v4281
      %4334 = vmatprep.subr.bf16.mxu0 0
      %4335 = vmatpush1.bf16.msra.mxu0 %v4282
      %4336 = vmatprep.subr.bf16.mxu0 0
      %4337 = vmatpush1.bf16.msra.mxu0 %v4283
      %4338 = vmatprep.subr.bf16.mxu0 0
      %4339 = vmatpush1.bf16.msra.mxu0 %v4284
      %4340 = vmatprep.subr.bf16.mxu0 0
      %4341 = vmatpush1.bf16.msra.mxu0 %v4285
      %4342 = vmatprep.subr.bf16.mxu0 0
      %4343 = vmatpush1.bf16.msra.mxu0 %v4286
      %4344 = vmatprep.subr.bf16.mxu0 0
      %4345 = vmatpush1.bf16.msra.mxu0 %v4287
      %4346 = vmatprep.subr.bf16.mxu0 0
      %4347 = vmatpush1.bf16.msra.mxu0 %v4288
      %4348 = vmatprep.subr.bf16.mxu0 0
      %4349 = vmatpush1.bf16.msra.mxu0 %v4289
      %4350 = vmatprep.subr.bf16.mxu0 0
      %4351 = vmatpush1.bf16.msra.mxu0 %v4290
      %4352 = vmatprep.subr.bf16.mxu0 0
      %4353 = vmatpush1.bf16.msra.mxu0 %v4291
      %4354 = vmatprep.subr.bf16.mxu0 0
      %4355 = vmatpush1.bf16.msra.mxu0 %v4292
      %4356 = vmatprep.subr.bf16.mxu0 0
      %4357 = vmatpush1.bf16.msra.mxu0 %v4293
      %4358 = vmatprep.mubr.bf16.mxu0 %v3598
      %4359 = vmatmul.mubr.bf16.gmra.mrb[0].mxu0 %v3596
      %v4360 = vpop.f32.mrb[0].mxu0
      %v4361 = vadd.f32 %v4120, %v4360
      %v4362 = vpop.f32.mrb[0].mxu0
      %v4363 = vpop.f32.mrb[0].mxu0
      %v4364 = vadd.f32 %v4123, %v4363
      %v4365 = vpop.f32.mrb[0].mxu0
      %4366 = vmatprep.mubr.bf16.mxu0 %v3600
      %4367 = vmatmul.mubr.bf16.gmra.mrb[0].mxu0 %v3598
      %v4368 = vpop.f32.mrb[0].mxu0
      %v4369 = vadd.f32 %v4128, %v4368
      %v4370 = vpop.f32.mrb[0].mxu0
      %v4371 = vpop.f32.mrb[0].mxu0
      %v4372 = vadd.f32 %v4131, %v4371
      %v4373 = vpop.f32.mrb[0].mxu0
      %4374 = vmatprep.mubr.bf16.mxu0 %v3602
      %4375 = vmatmul.mubr.bf16.gmra.mrb[0].mxu0 %v3600
      %v4376 = vpop.f32.mrb[0].mxu0
      %v4377 = vadd.f32 %v4136, %v4376
      %v4378 = vpop.f32.mrb[0].mxu0
      %v4379 = vpop.f32.mrb[0].mxu0
      %v4380 = vadd.f32 %v4139, %v4379
      %v4381 = vpop.f32.mrb[0].mxu0
      %4382 = vmatprep.mubr.bf16.mxu0 %v3604
      %4383 = vmatmul.mubr.bf16.gmra.mrb[0].mxu0 %v3602
      %v4384 = vpop.f32.mrb[0].mxu0
      %v4385 = vadd.f32 %v4144, %v4384
      %v4386 = vpop.f32.mrb[0].mxu0
      %v4387 = vpop.f32.mrb[0].mxu0
      %v4388 = vadd.f32 %v4147, %v4387
      %v4389 = vpop.f32.mrb[0].mxu0
      %4390 = vmatprep.mubr.bf16.mxu0 %v3606
      %4391 = vmatmul.mubr.bf16.gmra.mrb[0].mxu0 %v3604
      %v4392 = vpop.f32.mrb[0].mxu0
      %v4393 = vadd.f32 %v4152, %v4392
      %v4394 = vpop.f32.mrb[0].mxu0
      %v4395 = vpop.f32.mrb[0].mxu0
      %v4396 = vadd.f32 %v4155, %v4395
      %v4397 = vpop.f32.mrb[0].mxu0
      %4398 = vmatprep.mubr.bf16.mxu0 %v3608
      %4399 = vmatmul.mubr.bf16.gmra.mrb[0].mxu0 %v3606
      %v4400 = vpop.f32.mrb[0].mxu0
      %v4401 = vadd.f32 %v4160, %v4400
      %v4402 = vpop.f32.mrb[0].mxu0
      %v4403 = vpop.f32.mrb[0].mxu0
      %v4404 = vadd.f32 %v4163, %v4403
      %v4405 = vpop.f32.mrb[0].mxu0
      %4406 = vmatprep.mubr.bf16.mxu0 %v3610
      %4407 = vmatmul.mubr.bf16.gmra.mrb[0].mxu0 %v3608
      %v4408 = vpop.f32.mrb[0].mxu0
      %v4409 = vadd.f32 %v4168, %v4408
      %v4410 = vpop.f32.mrb[0].mxu0
      %v4411 = vpop.f32.mrb[0].mxu0
      %v4412 = vadd.f32 %v4171, %v4411
      %v4413 = vpop.f32.mrb[0].mxu0
      %4414 = vmatprep.mubr.bf16.mxu0 %v3612
      %4415 = vmatmul.mubr.bf16.gmra.mrb[0].mxu0 %v3610
      %v4416 = vpop.f32.mrb[0].mxu0
      %v4417 = vadd.f32 %v4176, %v4416
      %v4418 = vpop.f32.mrb[0].mxu0
      %v4419 = vpop.f32.mrb[0].mxu0
      %v4420 = vadd.f32 %v4179, %v4419
      %v4421 = vpop.f32.mrb[0].mxu0
      %4422 = vdwg.mxu0
      %4423 = vmatprep.subr.bf16.mxu0 0
      %4424 = vmatpush1.bf16.msra.mxu0 %v4294
      %4425 = vmatprep.subr.bf16.mxu0 0
      %4426 = vmatpush1.bf16.msra.mxu0 %v4295
      %4427 = vmatprep.subr.bf16.mxu0 0
      %4428 = vmatpush1.bf16.msra.mxu0 %v4296
      %4429 = vmatprep.subr.bf16.mxu0 0
      %4430 = vmatpush1.bf16.msra.mxu0 %v4297
      %4431 = vmatprep.subr.bf16.mxu0 0
      %4432 = vmatpush1.bf16.msra.mxu0 %v4298
      %4433 = vmatprep.subr.bf16.mxu0 0
      %4434 = vmatpush1.bf16.msra.mxu0 %v4299
      %4435 = vmatprep.subr.bf16.mxu0 0
      %4436 = vmatpush1.bf16.msra.mxu0 %v4300
      %4437 = vmatprep.subr.bf16.mxu0 0
      %4438 = vmatpush1.bf16.msra.mxu0 %v4301
      %4439 = vmatprep.subr.bf16.mxu0 0
      %4440 = vmatpush1.bf16.msra.mxu0 0
      %4441 = vmatprep.subr.bf16.mxu0 0
      %4442 = vmatpush1.bf16.msra.mxu0 0
      %4443 = vmatprep.subr.bf16.mxu0 0
      %4444 = vmatpush1.bf16.msra.mxu0 0
      %4445 = vmatprep.subr.bf16.mxu0 0
      %4446 = vmatpush1.bf16.msra.mxu0 0
      %4447 = vmatprep.subr.bf16.mxu0 0
      %4448 = vmatpush1.bf16.msra.mxu0 0
      %4449 = vmatprep.subr.bf16.mxu0 0
      %4450 = vmatpush1.bf16.msra.mxu0 0
      %4451 = vmatprep.subr.bf16.mxu0 0
      %4452 = vmatpush1.bf16.msra.mxu0 0
      %4453 = vmatprep.subr.bf16.mxu0 0
      %4454 = vmatpush1.bf16.msra.mxu0 0
      %4455 = vmatprep.mubr.bf16.mxu0 0
      %4456 = vmatmul.mubr.bf16.gmra.mrb[0].mxu0 %v3600
      %v4457 = vpop.f32.mrb[0].mxu0
      %v4458 = vadd.f32 %v4361, %v4457
      %v4459 = vpop.f32.mrb[0].mxu0
      %v4460 = vpop.f32.mrb[0].mxu0
      %v4461 = vadd.f32 %v4364, %v4460
      %v4462 = vpop.f32.mrb[0].mxu0
      %4463 = vmatprep.mubr.bf16.mxu0 0
      %4464 = vmatmul.mubr.bf16.gmra.mrb[0].mxu0 %v3602
      %v4465 = vpop.f32.mrb[0].mxu0
      %v4466 = vadd.f32 %v4369, %v4465
      %v4467 = vpop.f32.mrb[0].mxu0
      %v4468 = vpop.f32.mrb[0].mxu0
      %v4469 = vadd.f32 %v4372, %v4468
      %v4470 = vpop.f32.mrb[0].mxu0
      %4471 = vmatprep.mubr.bf16.mxu0 0
      %4472 = vmatmul.mubr.bf16.gmra.mrb[0].mxu0 %v3604
      %v4473 = vpop.f32.mrb[0].mxu0
      %v4474 = vadd.f32 %v4377, %v4473
      %v4475 = vpop.f32.mrb[0].mxu0
      %v4476 = vpop.f32.mrb[0].mxu0
      %v4477 = vadd.f32 %v4380, %v4476
      %v4478 = vpop.f32.mrb[0].mxu0
      %4479 = vmatprep.mubr.bf16.mxu0 0
      %4480 = vmatmul.mubr.bf16.gmra.mrb[0].mxu0 %v3606
      %v4481 = vpop.f32.mrb[0].mxu0
      %v4482 = vadd.f32 %v4385, %v4481
      %v4483 = vpop.f32.mrb[0].mxu0
      %v4484 = vpop.f32.mrb[0].mxu0
      %v4485 = vadd.f32 %v4388, %v4484
      %v4486 = vpop.f32.mrb[0].mxu0
      %4487 = vmatprep.mubr.bf16.mxu0 0
      %4488 = vmatmul.mubr.bf16.gmra.mrb[0].mxu0 %v3608
      %v4489 = vpop.f32.mrb[0].mxu0
      %v4490 = vadd.f32 %v4393, %v4489
      %v4491 = vpop.f32.mrb[0].mxu0
      %v4492 = vpop.f32.mrb[0].mxu0
      %v4493 = vadd.f32 %v4396, %v4492
      %v4494 = vpop.f32.mrb[0].mxu0
      %4495 = vmatprep.mubr.bf16.mxu0 0
      %4496 = vmatmul.mubr.bf16.gmra.mrb[0].mxu0 %v3610
      %v4497 = vpop.f32.mrb[0].mxu0
      %v4498 = vadd.f32 %v4401, %v4497
      %v4499 = vpop.f32.mrb[0].mxu0
      %v4500 = vpop.f32.mrb[0].mxu0
      %v4501 = vadd.f32 %v4404, %v4500
      %v4502 = vpop.f32.mrb[0].mxu0
      %4503 = vmatprep.mubr.bf16.mxu0 0
      %4504 = vmatmul.mubr.bf16.gmra.mrb[0].mxu0 %v3612
      %v4505 = vpop.f32.mrb[0].mxu0
      %v4506 = vadd.f32 %v4409, %v4505
      %v4507 = vpop.f32.mrb[0].mxu0
      %v4508 = vpop.f32.mrb[0].mxu0
      %v4509 = vadd.f32 %v4412, %v4508
      %v4510 = vpop.f32.mrb[0].mxu0
      %4511 = vmatprep.mubr.bf16.mxu0 0
      %4512 = vmatmul.mubr.bf16.gmra.mrb[0].mxu0 %v3614
      %v4513 = vpop.f32.mrb[0].mxu0
      %v4514 = vadd.f32 %v4417, %v4513
      %v4515 = vpop.f32.mrb[0].mxu0
      %v4516 = vpop.f32.mrb[0].mxu0
      %v4517 = vadd.f32 %v4420, %v4516
      %v4518 = vpop.f32.mrb[0].mxu0
      %4519 = vdwg.mxu0
      %vm4540 = vcmask 1046528
      %v4541 = vrot.slane %v3596, 1
      %v4542 = vrot.slane %v3597, 1
      %v4543 = vsel %vm4540, %v4541, %v4542
      %v4544 = vrot.slane %v3598, 1
      %v4545 = vrot.slane %v3599, 1
      %v4546 = vsel %vm4540, %v4544, %v4545
      %v4547 = vrot.slane %v3600, 1
      %v4548 = vrot.slane %v3601, 1
      %v4549 = vsel %vm4540, %v4547, %v4548
      %v4550 = vrot.slane %v3602, 1
      %v4551 = vrot.slane %v3603, 1
      %v4552 = vsel %vm4540, %v4550, %v4551
      %v4553 = vrot.slane %v3604, 1
      %v4554 = vrot.slane %v3605, 1
      %v4555 = vsel %vm4540, %v4553, %v4554
      %v4556 = vrot.slane %v3606, 1
      %v4557 = vrot.slane %v3607, 1
      %v4558 = vsel %vm4540, %v4556, %v4557
      %v4559 = vrot.slane %v3608, 1
      %v4560 = vrot.slane %v3609, 1
      %v4561 = vsel %vm4540, %v4559, %v4560
      %v4562 = vrot.slane %v3610, 1
      %v4563 = vrot.slane %v3611, 1
      %v4564 = vsel %vm4540, %v4562, %v4563
      %v4565 = vrot.slane %v3612, 1
      %v4566 = vrot.slane %v3613, 1
      %v4567 = vsel %vm4540, %v4565, %v4566
      %v4568 = vrot.slane %v3614, 1
      %v4569 = vrot.slane %v3615, 1
      %v4570 = vsel %vm4540, %v4568, %v4569
      %s4581 = scalar_lea.vmem %s3, 384
      %v4582 = vld [vmem:[%s4581] sm:$0xf]
      %v4583 = vld [vmem:[%s4581 + $0x4] sm:$0xf]
      %v4584 = vld [vmem:[%s4581 + $0x8] sm:$0xf]
      %v4585 = vld [vmem:[%s4581 + $0xc] sm:$0xf]
      %v4586 = vld [vmem:[%s4581 + $0x10] sm:$0xf]
      %v4587 = vld [vmem:[%s4581 + $0x14] sm:$0xf]
      %v4588 = vld [vmem:[%s4581 + $0x18] sm:$0xf]
      %v4589 = vld [vmem:[%s4581 + $0x1c] sm:$0xf]
      %v4590 = vld [vmem:[%s4581 + $0x20] sm:$0xf]
      %v4591 = vld [vmem:[%s4581 + $0x24] sm:$0xf]
      %v4592 = vld [vmem:[%s4581 + $0x28] sm:$0xf]
      %v4593 = vld [vmem:[%s4581 + $0x2c] sm:$0xf]
      %v4594 = vld [vmem:[%s4581 + $0x30] sm:$0xf]
      %v4595 = vld [vmem:[%s4581 + $0x34] sm:$0xf]
      %v4596 = vld [vmem:[%s4581 + $0x38] sm:$0xf]
      %v4597 = vld [vmem:[%s4581 + $0x3c] sm:$0xf]
      %v4598 = vld [vmem:[%s4581 + $0x40] sm:$0xf]
      %v4599 = vld [vmem:[%s4581 + $0x44] sm:$0xf]
      %v4600 = vld [vmem:[%s4581 + $0x48] sm:$0xf]
      %v4601 = vld [vmem:[%s4581 + $0x4c] sm:$0xf]
      %v4602 = vld [vmem:[%s4581 + $0x50] sm:$0xf]
      %v4603 = vld [vmem:[%s4581 + $0x54] sm:$0xf]
      %v4604 = vld [vmem:[%s4581 + $0x58] sm:$0xf]
      %v4605 = vld [vmem:[%s4581 + $0x5c] sm:$0xf]
      %v4606 = vld [vmem:[%s4581 + $0x60] sm:$0xf]
      %v4607 = vld [vmem:[%s4581 + $0x64] sm:$0xf]
      %v4608 = vld [vmem:[%s4581 + $0x68] sm:$0xf]
      %v4609 = vld [vmem:[%s4581 + $0x6c] sm:$0xf]
      %v4610 = vld [vmem:[%s4581 + $0x70] sm:$0xf]
      %v4611 = vld [vmem:[%s4581 + $0x74] sm:$0xf]
      %v4612 = vld [vmem:[%s4581 + $0x78] sm:$0xf]
      %v4613 = vld [vmem:[%s4581 + $0x7c] sm:$0xf]
      %v4614 = vld [vmem:[%s4581 + $0x80] sm:$0xf]
      %v4615 = vld [vmem:[%s4581 + $0x84] sm:$0xf]
      %v4616 = vld [vmem:[%s4581 + $0x88] sm:$0xf]
      %v4617 = vld [vmem:[%s4581 + $0x8c] sm:$0xf]
      %v4618 = vld [vmem:[%s4581 + $0x90] sm:$0xf]
      %v4619 = vld [vmem:[%s4581 + $0x94] sm:$0xf]
      %v4620 = vld [vmem:[%s4581 + $0x98] sm:$0xf]
      %v4621 = vld [vmem:[%s4581 + $0x9c] sm:$0xf]
      %v4622 = vld [vmem:[%s4581 + $0xa0] sm:$0xf]
      %v4623 = vld [vmem:[%s4581 + $0xa4] sm:$0xf]
      %v4624 = vld [vmem:[%s4581 + $0xa8] sm:$0xf]
      %v4625 = vld [vmem:[%s4581 + $0xac] sm:$0xf]
      %v4626 = vld [vmem:[%s4581 + $0xb0] sm:$0xf]
      %v4627 = vld [vmem:[%s4581 + $0xb4] sm:$0xf]
      %v4628 = vld [vmem:[%s4581 + $0xb8] sm:$0xf]
      %v4629 = vld [vmem:[%s4581 + $0xbc] sm:$0xf]
      %v4678 = vunpack.c.l.b16 %v4582
      %v4679 = vunpack.c.l.b16 %v4583
      %v4680 = vunpack.c.l.b16 %v4584
      %v4681 = vunpack.c.l.b16 %v4585
      %v4682 = vunpack.c.l.b16 %v4586
      %v4683 = vunpack.c.l.b16 %v4587
      %v4684 = vunpack.c.l.b16 %v4588
      %v4685 = vunpack.c.l.b16 %v4589
      %v4686 = vunpack.c.l.b16 %v4590
      %v4687 = vunpack.c.l.b16 %v4591
      %v4688 = vunpack.c.l.b16 %v4592
      %v4689 = vunpack.c.l.b16 %v4593
      %v4690 = vunpack.c.l.b16 %v4594
      %v4691 = vunpack.c.l.b16 %v4595
      %v4692 = vunpack.c.l.b16 %v4596
      %v4693 = vunpack.c.l.b16 %v4597
      %v4694 = vunpack.c.l.b16 %v4598
      %v4695 = vunpack.c.l.b16 %v4599
      %v4696 = vunpack.c.l.b16 %v4600
      %v4697 = vunpack.c.l.b16 %v4601
      %v4698 = vunpack.c.l.b16 %v4602
      %v4699 = vunpack.c.l.b16 %v4603
      %v4700 = vunpack.c.l.b16 %v4604
      %v4701 = vunpack.c.l.b16 %v4605
      %v4702 = vunpack.c.l.b16 %v4606
      %v4703 = vunpack.c.l.b16 %v4607
      %v4704 = vunpack.c.l.b16 %v4608
      %v4705 = vunpack.c.l.b16 %v4609
      %v4706 = vunpack.c.l.b16 %v4610
      %v4707 = vunpack.c.l.b16 %v4611
      %v4708 = vunpack.c.l.b16 %v4612
      %v4709 = vunpack.c.l.b16 %v4613
      %v4710 = vunpack.c.l.b16 %v4614
      %v4711 = vunpack.c.l.b16 %v4615
      %v4712 = vunpack.c.l.b16 %v4616
      %v4713 = vunpack.c.l.b16 %v4617
      %v4714 = vunpack.c.l.b16 %v4618
      %v4715 = vunpack.c.l.b16 %v4619
      %v4716 = vunpack.c.l.b16 %v4620
      %v4717 = vunpack.c.l.b16 %v4621
      %v4718 = vunpack.c.l.b16 %v4622
      %v4719 = vunpack.c.l.b16 %v4623
      %v4720 = vunpack.c.l.b16 %v4624
      %v4721 = vunpack.c.l.b16 %v4625
      %v4722 = vunpack.c.l.b16 %v4626
      %v4723 = vunpack.c.l.b16 %v4627
      %v4724 = vunpack.c.l.b16 %v4628
      %v4725 = vunpack.c.l.b16 %v4629
      %v4726 = vpack.c.b16 %v4679, %v4678
      %v4727 = vpack.c.b16 %v4681, %v4680
      %v4728 = vpack.c.b16 %v4683, %v4682
      %v4729 = vpack.c.b16 %v4685, %v4684
      %v4730 = vpack.c.b16 %v4687, %v4686
      %v4731 = vpack.c.b16 %v4689, %v4688
      %v4732 = vpack.c.b16 %v4691, %v4690
      %v4733 = vpack.c.b16 %v4693, %v4692
      %v4734 = vpack.c.b16 %v4695, %v4694
      %v4735 = vpack.c.b16 %v4697, %v4696
      %v4736 = vpack.c.b16 %v4699, %v4698
      %v4737 = vpack.c.b16 %v4701, %v4700
      %v4738 = vpack.c.b16 %v4703, %v4702
      %v4739 = vpack.c.b16 %v4705, %v4704
      %v4740 = vpack.c.b16 %v4707, %v4706
      %v4741 = vpack.c.b16 %v4709, %v4708
      %v4742 = vpack.c.b16 %v4711, %v4710
      %v4743 = vpack.c.b16 %v4713, %v4712
      %v4744 = vpack.c.b16 %v4715, %v4714
      %v4745 = vpack.c.b16 %v4717, %v4716
      %v4746 = vpack.c.b16 %v4719, %v4718
      %v4747 = vpack.c.b16 %v4721, %v4720
      %v4748 = vpack.c.b16 %v4723, %v4722
      %v4749 = vpack.c.b16 %v4725, %v4724
      %4774 = vmatprep.subr.bf16.mxu0 0
      %4775 = vmatpush1.bf16.msra.mxu0 %v4726
      %4776 = vmatprep.subr.bf16.mxu0 0
      %4777 = vmatpush1.bf16.msra.mxu0 %v4727
      %4778 = vmatprep.subr.bf16.mxu0 0
      %4779 = vmatpush1.bf16.msra.mxu0 %v4728
      %4780 = vmatprep.subr.bf16.mxu0 0
      %4781 = vmatpush1.bf16.msra.mxu0 %v4729
      %4782 = vmatprep.subr.bf16.mxu0 0
      %4783 = vmatpush1.bf16.msra.mxu0 %v4730
      %4784 = vmatprep.subr.bf16.mxu0 0
      %4785 = vmatpush1.bf16.msra.mxu0 %v4731
      %4786 = vmatprep.subr.bf16.mxu0 0
      %4787 = vmatpush1.bf16.msra.mxu0 %v4732
      %4788 = vmatprep.subr.bf16.mxu0 0
      %4789 = vmatpush1.bf16.msra.mxu0 %v4733
      %4790 = vmatprep.subr.bf16.mxu0 0
      %4791 = vmatpush1.bf16.msra.mxu0 %v4734
      %4792 = vmatprep.subr.bf16.mxu0 0
      %4793 = vmatpush1.bf16.msra.mxu0 %v4735
      %4794 = vmatprep.subr.bf16.mxu0 0
      %4795 = vmatpush1.bf16.msra.mxu0 %v4736
      %4796 = vmatprep.subr.bf16.mxu0 0
      %4797 = vmatpush1.bf16.msra.mxu0 %v4737
      %4798 = vmatprep.subr.bf16.mxu0 0
      %4799 = vmatpush1.bf16.msra.mxu0 %v4738
      %4800 = vmatprep.subr.bf16.mxu0 0
      %4801 = vmatpush1.bf16.msra.mxu0 %v4739
      %4802 = vmatprep.subr.bf16.mxu0 0
      %4803 = vmatpush1.bf16.msra.mxu0 %v4740
      %4804 = vmatprep.subr.bf16.mxu0 0
      %4805 = vmatpush1.bf16.msra.mxu0 %v4741
      %4806 = vmatprep.mubr.bf16.mxu0 %v4546
      %4807 = vmatmul.mubr.bf16.gmra.mrb[0].mxu0 %v4543
      %v4808 = vpop.f32.mrb[0].mxu0
      %v4809 = vadd.f32 0.0, %v4808
      %v4810 = vpop.f32.mrb[0].mxu0
      %v4811 = vpop.f32.mrb[0].mxu0
      %v4812 = vadd.f32 0.0, %v4811
      %v4813 = vpop.f32.mrb[0].mxu0
      %4814 = vmatprep.mubr.bf16.mxu0 %v4549
      %4815 = vmatmul.mubr.bf16.gmra.mrb[0].mxu0 %v4546
      %v4816 = vpop.f32.mrb[0].mxu0
      %v4817 = vadd.f32 0.0, %v4816
      %v4818 = vpop.f32.mrb[0].mxu0
      %v4819 = vpop.f32.mrb[0].mxu0
      %v4820 = vadd.f32 0.0, %v4819
      %v4821 = vpop.f32.mrb[0].mxu0
      %4822 = vmatprep.mubr.bf16.mxu0 %v4552
      %4823 = vmatmul.mubr.bf16.gmra.mrb[0].mxu0 %v4549
      %v4824 = vpop.f32.mrb[0].mxu0
      %v4825 = vadd.f32 0.0, %v4824
      %v4826 = vpop.f32.mrb[0].mxu0
      %v4827 = vpop.f32.mrb[0].mxu0
      %v4828 = vadd.f32 0.0, %v4827
      %v4829 = vpop.f32.mrb[0].mxu0
      %4830 = vmatprep.mubr.bf16.mxu0 %v4555
      %4831 = vmatmul.mubr.bf16.gmra.mrb[0].mxu0 %v4552
      %v4832 = vpop.f32.mrb[0].mxu0
      %v4833 = vadd.f32 0.0, %v4832
      %v4834 = vpop.f32.mrb[0].mxu0
      %v4835 = vpop.f32.mrb[0].mxu0
      %v4836 = vadd.f32 0.0, %v4835
      %v4837 = vpop.f32.mrb[0].mxu0
      %4838 = vmatprep.mubr.bf16.mxu0 %v4558
      %4839 = vmatmul.mubr.bf16.gmra.mrb[0].mxu0 %v4555
      %v4840 = vpop.f32.mrb[0].mxu0
      %v4841 = vadd.f32 0.0, %v4840
      %v4842 = vpop.f32.mrb[0].mxu0
      %v4843 = vpop.f32.mrb[0].mxu0
      %v4844 = vadd.f32 0.0, %v4843
      %v4845 = vpop.f32.mrb[0].mxu0
      %4846 = vmatprep.mubr.bf16.mxu0 %v4561
      %4847 = vmatmul.mubr.bf16.gmra.mrb[0].mxu0 %v4558
      %v4848 = vpop.f32.mrb[0].mxu0
      %v4849 = vadd.f32 0.0, %v4848
      %v4850 = vpop.f32.mrb[0].mxu0
      %v4851 = vpop.f32.mrb[0].mxu0
      %v4852 = vadd.f32 0.0, %v4851
      %v4853 = vpop.f32.mrb[0].mxu0
      %4854 = vmatprep.mubr.bf16.mxu0 %v4564
      %4855 = vmatmul.mubr.bf16.gmra.mrb[0].mxu0 %v4561
      %v4856 = vpop.f32.mrb[0].mxu0
      %v4857 = vadd.f32 0.0, %v4856
      %v4858 = vpop.f32.mrb[0].mxu0
      %v4859 = vpop.f32.mrb[0].mxu0
      %v4860 = vadd.f32 0.0, %v4859
      %v4861 = vpop.f32.mrb[0].mxu0
      %4862 = vmatprep.mubr.bf16.mxu0 %v4567
      %4863 = vmatmul.mubr.bf16.gmra.mrb[0].mxu0 %v4564
      %v4864 = vpop.f32.mrb[0].mxu0
      %v4865 = vadd.f32 0.0, %v4864
      %v4866 = vpop.f32.mrb[0].mxu0
      %v4867 = vpop.f32.mrb[0].mxu0
      %v4868 = vadd.f32 0.0, %v4867
      %v4869 = vpop.f32.mrb[0].mxu0
      %4870 = vdwg.mxu0
      %4871 = vmatprep.subr.bf16.mxu0 0
      %4872 = vmatpush1.bf16.msra.mxu0 %v4742
      %4873 = vmatprep.subr.bf16.mxu0 0
      %4874 = vmatpush1.bf16.msra.mxu0 %v4743
      %4875 = vmatprep.subr.bf16.mxu0 0
      %4876 = vmatpush1.bf16.msra.mxu0 %v4744
      %4877 = vmatprep.subr.bf16.mxu0 0
      %4878 = vmatpush1.bf16.msra.mxu0 %v4745
      %4879 = vmatprep.subr.bf16.mxu0 0
      %4880 = vmatpush1.bf16.msra.mxu0 %v4746
      %4881 = vmatprep.subr.bf16.mxu0 0
      %4882 = vmatpush1.bf16.msra.mxu0 %v4747
      %4883 = vmatprep.subr.bf16.mxu0 0
      %4884 = vmatpush1.bf16.msra.mxu0 %v4748
      %4885 = vmatprep.subr.bf16.mxu0 0
      %4886 = vmatpush1.bf16.msra.mxu0 %v4749
      %4887 = vmatprep.subr.bf16.mxu0 0
      %4888 = vmatpush1.bf16.msra.mxu0 0
      %4889 = vmatprep.subr.bf16.mxu0 0
      %4890 = vmatpush1.bf16.msra.mxu0 0
      %4891 = vmatprep.subr.bf16.mxu0 0
      %4892 = vmatpush1.bf16.msra.mxu0 0
      %4893 = vmatprep.subr.bf16.mxu0 0
      %4894 = vmatpush1.bf16.msra.mxu0 0
      %4895 = vmatprep.subr.bf16.mxu0 0
      %4896 = vmatpush1.bf16.msra.mxu0 0
      %4897 = vmatprep.subr.bf16.mxu0 0
      %4898 = vmatpush1.bf16.msra.mxu0 0
      %4899 = vmatprep.subr.bf16.mxu0 0
      %4900 = vmatpush1.bf16.msra.mxu0 0
      %4901 = vmatprep.subr.bf16.mxu0 0
      %4902 = vmatpush1.bf16.msra.mxu0 0
      %4903 = vmatprep.mubr.bf16.mxu0 0
      %4904 = vmatmul.mubr.bf16.gmra.mrb[0].mxu0 %v4549
      %v4905 = vpop.f32.mrb[0].mxu0
      %v4906 = vadd.f32 %v4809, %v4905
      %v4907 = vpop.f32.mrb[0].mxu0
      %v4908 = vpop.f32.mrb[0].mxu0
      %v4909 = vadd.f32 %v4812, %v4908
      %v4910 = vpop.f32.mrb[0].mxu0
      %4911 = vmatprep.mubr.bf16.mxu0 0
      %4912 = vmatmul.mubr.bf16.gmra.mrb[0].mxu0 %v4552
      %v4913 = vpop.f32.mrb[0].mxu0
      %v4914 = vadd.f32 %v4817, %v4913
      %v4915 = vpop.f32.mrb[0].mxu0
      %v4916 = vpop.f32.mrb[0].mxu0
      %v4917 = vadd.f32 %v4820, %v4916
      %v4918 = vpop.f32.mrb[0].mxu0
      %4919 = vmatprep.mubr.bf16.mxu0 0
      %4920 = vmatmul.mubr.bf16.gmra.mrb[0].mxu0 %v4555
      %v4921 = vpop.f32.mrb[0].mxu0
      %v4922 = vadd.f32 %v4825, %v4921
      %v4923 = vpop.f32.mrb[0].mxu0
      %v4924 = vpop.f32.mrb[0].mxu0
      %v4925 = vadd.f32 %v4828, %v4924
      %v4926 = vpop.f32.mrb[0].mxu0
      %4927 = vmatprep.mubr.bf16.mxu0 0
      %4928 = vmatmul.mubr.bf16.gmra.mrb[0].mxu0 %v4558
      %v4929 = vpop.f32.mrb[0].mxu0
      %v4930 = vadd.f32 %v4833, %v4929
      %v4931 = vpop.f32.mrb[0].mxu0
      %v4932 = vpop.f32.mrb[0].mxu0
      %v4933 = vadd.f32 %v4836, %v4932
      %v4934 = vpop.f32.mrb[0].mxu0
      %4935 = vmatprep.mubr.bf16.mxu0 0
      %4936 = vmatmul.mubr.bf16.gmra.mrb[0].mxu0 %v4561
      %v4937 = vpop.f32.mrb[0].mxu0
      %v4938 = vadd.f32 %v4841, %v4937
      %v4939 = vpop.f32.mrb[0].mxu0
      %v4940 = vpop.f32.mrb[0].mxu0
      %v4941 = vadd.f32 %v4844, %v4940
      %v4942 = vpop.f32.mrb[0].mxu0
      %4943 = vmatprep.mubr.bf16.mxu0 0
      %4944 = vmatmul.mubr.bf16.gmra.mrb[0].mxu0 %v4564
      %v4945 = vpop.f32.mrb[0].mxu0
      %v4946 = vadd.f32 %v4849, %v4945
      %v4947 = vpop.f32.mrb[0].mxu0
      %v4948 = vpop.f32.mrb[0].mxu0
      %v4949 = vadd.f32 %v4852, %v4948
      %v4950 = vpop.f32.mrb[0].mxu0
      %4951 = vmatprep.mubr.bf16.mxu0 0
      %4952 = vmatmul.mubr.bf16.gmra.mrb[0].mxu0 %v4567
      %v4953 = vpop.f32.mrb[0].mxu0
      %v4954 = vadd.f32 %v4857, %v4953
      %v4955 = vpop.f32.mrb[0].mxu0
      %v4956 = vpop.f32.mrb[0].mxu0
      %v4957 = vadd.f32 %v4860, %v4956
      %v4958 = vpop.f32.mrb[0].mxu0
      %4959 = vmatprep.mubr.bf16.mxu0 0
      %4960 = vmatmul.mubr.bf16.gmra.mrb[0].mxu0 %v4570
      %v4961 = vpop.f32.mrb[0].mxu0
      %v4962 = vadd.f32 %v4865, %v4961
      %v4963 = vpop.f32.mrb[0].mxu0
      %v4964 = vpop.f32.mrb[0].mxu0
      %v4965 = vadd.f32 %v4868, %v4964
      %v4966 = vpop.f32.mrb[0].mxu0
      %4967 = vdwg.mxu0
      %v4968 = vadd.f32 %v4458, %v4906
      %v4969 = vadd.f32 %v4461, %v4909
      %v4970 = vadd.f32 %v4466, %v4914
      %v4971 = vadd.f32 %v4469, %v4917
      %v4972 = vadd.f32 %v4474, %v4922
      %v4973 = vadd.f32 %v4477, %v4925
      %v4974 = vadd.f32 %v4482, %v4930
      %v4975 = vadd.f32 %v4485, %v4933
      %v4976 = vadd.f32 %v4490, %v4938
      %v4977 = vadd.f32 %v4493, %v4941
      %v4978 = vadd.f32 %v4498, %v4946
      %v4979 = vadd.f32 %v4501, %v4949
      %v4980 = vadd.f32 %v4506, %v4954
      %v4981 = vadd.f32 %v4509, %v4957
      %v4982 = vadd.f32 %v4514, %v4962
      %v4983 = vadd.f32 %v4517, %v4965
      %v4984 = vld [vmem:[%s4] sm:$0x1]
      %v4986 = vlaneseq
      %v4987 = vshrl.u32 %v4986, 7
      %v4988 = vsub.s32 0, %v4987
      %v4989 = vrot.slane %v4984, %v4988
      %v4991 = vadd.f32 %v4968, %v4989
      %v4992 = vadd.f32 %v4969, %v4989
      %v4993 = vadd.f32 %v4970, %v4989
      %v4994 = vadd.f32 %v4971, %v4989
      %v4995 = vadd.f32 %v4972, %v4989
      %v4996 = vadd.f32 %v4973, %v4989
      %v4997 = vadd.f32 %v4974, %v4989
      %v4998 = vadd.f32 %v4975, %v4989
      %v4999 = vadd.f32 %v4976, %v4989
      %v5000 = vadd.f32 %v4977, %v4989
      %v5001 = vadd.f32 %v4978, %v4989
      %v5002 = vadd.f32 %v4979, %v4989
      %v5003 = vadd.f32 %v4980, %v4989
      %v5004 = vadd.f32 %v4981, %v4989
      %v5005 = vadd.f32 %v4982, %v4989
      %v5006 = vadd.f32 %v4983, %v4989
      %v5007 = vmax.f32 %v4991, 0.0
      %v5008 = vmax.f32 %v4992, 0.0
      %v5009 = vmax.f32 %v4993, 0.0
      %v5010 = vmax.f32 %v4994, 0.0
      %v5011 = vmax.f32 %v4995, 0.0
      %v5012 = vmax.f32 %v4996, 0.0
      %v5013 = vmax.f32 %v4997, 0.0
      %v5014 = vmax.f32 %v4998, 0.0
      %v5015 = vmax.f32 %v4999, 0.0
      %v5016 = vmax.f32 %v5000, 0.0
      %v5017 = vmax.f32 %v5001, 0.0
      %v5018 = vmax.f32 %v5002, 0.0
      %v5019 = vmax.f32 %v5003, 0.0
      %v5020 = vmax.f32 %v5004, 0.0
      %v5021 = vmax.f32 %v5005, 0.0
      %v5022 = vmax.f32 %v5006, 0.0
      %v5023 = vpack.c.bf16 %v5008, %v5007
      %v5024 = vpack.c.bf16 %v5010, %v5009
      %v5025 = vpack.c.bf16 %v5012, %v5011
      %v5026 = vpack.c.bf16 %v5014, %v5013
      %v5027 = vpack.c.bf16 %v5016, %v5015
      %v5028 = vpack.c.bf16 %v5018, %v5017
      %v5029 = vpack.c.bf16 %v5020, %v5019
      %v5030 = vpack.c.bf16 %v5022, %v5021
      %v5039 = vunpack.c.l.b16 %v5023
      %v5040 = vunpack.c.h.b16 %v5023
      %v5041 = vunpack.c.l.b16 %v5024
      %v5042 = vunpack.c.h.b16 %v5024
      %v5043 = vunpack.c.l.b16 %v5025
      %v5044 = vunpack.c.h.b16 %v5025
      %v5045 = vunpack.c.l.b16 %v5026
      %v5046 = vunpack.c.h.b16 %v5026
      %v5047 = vunpack.c.l.b16 %v5027
      %v5048 = vunpack.c.h.b16 %v5027
      %v5049 = vunpack.c.l.b16 %v5028
      %v5050 = vunpack.c.h.b16 %v5028
      %v5051 = vunpack.c.l.b16 %v5029
      %v5052 = vunpack.c.h.b16 %v5029
      %v5053 = vunpack.c.l.b16 %v5030
      %v5054 = vunpack.c.h.b16 %v5030
      %v5055 = vpack.c.b16 %v5039, %v5039
      %v5056 = vpack.c.b16 %v5040, %v5040
      %v5057 = vpack.c.b16 %v5041, %v5041
      %v5058 = vpack.c.b16 %v5042, %v5042
      %v5059 = vpack.c.b16 %v5043, %v5043
      %v5060 = vpack.c.b16 %v5044, %v5044
      %v5061 = vpack.c.b16 %v5045, %v5045
      %v5062 = vpack.c.b16 %v5046, %v5046
      %v5063 = vpack.c.b16 %v5047, %v5047
      %v5064 = vpack.c.b16 %v5048, %v5048
      %v5065 = vpack.c.b16 %v5049, %v5049
      %v5066 = vpack.c.b16 %v5050, %v5050
      %v5067 = vpack.c.b16 %v5051, %v5051
      %v5068 = vpack.c.b16 %v5052, %v5052
      %v5069 = vpack.c.b16 %v5053, %v5053
      %v5070 = vpack.c.b16 %v5054, %v5054
      %5087 = vst [vmem:[%s262] sm:$0xf] %v5055
      %5088 = vst [vmem:[%s262 + $0x4] sm:$0xf] %v5056
      %5089 = vst [vmem:[%s262 + $0x8] sm:$0xf] %v5057
      %5090 = vst [vmem:[%s262 + $0xc] sm:$0xf] %v5058
      %5091 = vst [vmem:[%s262 + $0x10] sm:$0xf] %v5059
      %5092 = vst [vmem:[%s262 + $0x14] sm:$0xf] %v5060
      %5093 = vst [vmem:[%s262 + $0x18] sm:$0xf] %v5061
      %5094 = vst [vmem:[%s262 + $0x1c] sm:$0xf] %v5062
      %5095 = vst [vmem:[%s262 + $0x20] sm:$0xf] %v5063
      %5096 = vst [vmem:[%s262 + $0x24] sm:$0xf] %v5064
      %5097 = vst [vmem:[%s262 + $0x28] sm:$0xf] %v5065
      %5098 = vst [vmem:[%s262 + $0x2c] sm:$0xf] %v5066
      %5099 = vst [vmem:[%s262 + $0x30] sm:$0xf] %v5067
      %5100 = vst [vmem:[%s262 + $0x34] sm:$0xf] %v5068
      %5101 = vst [vmem:[%s262 + $0x38] sm:$0xf] %v5069
      %5102 = vst [vmem:[%s262 + $0x3c] sm:$0xf] %v5070
      %s5103 = smul.u32 8, %s21
      %p5104 = scmp.lt.s32.totalorder %s20, 1
      %s5105 = scalar_select %p5104, %s20, 1
      %p5106 = scmp.lt.s32.totalorder %s5103, 15
      %s5107 = scalar_select %p5106, %s5103, 15
      %s5108 = smul.addr %s5107, 2
      %s5109 = smul.addr %s5105, 32
      %s5110 = sadd.s32 %s5108, %s5109
      %s5111 = smul.addr %s5110, 4
      %s5112 = scalar_lea.vmem %s5, %s5111
      // Predicated region
      $region41: #{up_conv_forward.1} parent=39 // pred_check
        %p5113 = pneg %p160
      $region42: #{up_conv_forward.1} parent=39 // pred_check_branch
        %5115 = sbr.rel (%p5113) target = $region44
      $region43: #{up_conv_forward.1} parent=39 // pred_region
        %s5116 = smul.u32 8, %s21
      $region44: #{up_conv_forward.1} parent=39 // pred_fallthru
        _
    $region40: #{up_conv_forward.1} parent=5 // pred_fallthru
      _
    %p5117 = scmp.le.s32.totalorder 2, %s11
    // Predicated region
    $region45: #{up_conv_forward.1} parent=5 // pred_check
      %p5118 = pneg %p5117
    $region46: #{up_conv_forward.1} parent=5 // pred_check_branch
      %5120 = sbr.rel (%p5118) target = $region48
    $region47: #{up_conv_forward.1} parent=5 // pred_region
      %s5121 = ssub.s32 %s11, 2
      // Predicated region
      $region49: #{up_conv_forward.1} parent=47 // pred_check
        %p5122 = pneg %p166
      $region50: #{up_conv_forward.1} parent=47 // pred_check_branch
        %5124 = sbr.rel (%p5122) target = $region52
      $region51: #{up_conv_forward.1} parent=47 // pred_region
        %s5125 = smul.u32 8, %s23
        %p5126 = scmp.lt.s32.totalorder %s22, 1
        %s5127 = scalar_select %p5126, %s22, 1
        %p5128 = scmp.lt.s32.totalorder %s5125, 15
        %s5129 = scalar_select %p5128, %s5125, 15
        %s5130 = smul.addr %s5129, 2
        %s5131 = smul.addr %s5127, 32
        %s5132 = sadd.s32 %s5130, %s5131
        %s5133 = smul.addr %s5132, 4
        %s5134 = scalar_lea.vmem %s5, %s5133
      $region52: #{up_conv_forward.1} parent=47 // pred_fallthru
        _
    $region48: #{up_conv_forward.1} parent=5 // pred_fallthru
      _
  $region6: #{up_conv_forward.1} parent=0 // loop_footer
    %s15 = sadd.s32 1, %s11
  $region7: #{up_conv_forward.1} parent=0 // loop_footer_branch
    %10 = sbr.rel target = $region3
  $region8: #{up_conv_forward.1} parent=0 // loop_exit
    _

</llo_original>
